<compile_context>
chip_gen: v5e
topology: v5e:2x2
jax: 0.10.0
libtpu: 0.0.40
codegen_flags: <defaults>
</compile_context>

<pallas_src>
import functools

import jax
import jax.numpy as jnp
from jax import lax
from jax.experimental import pallas as pl
from jax.experimental.pallas import tpu as pltpu

_GUARD = 8  # guard rows around the flattened padded-h1 scratch (keeps tap windows in-bounds)


def _bottleneck_kernel(x_ref, w1_ref, s1_ref, b1_ref,
                       w2_ref, s2_ref, b2_ref,
                       w3_ref, s3_ref, b3_ref,
                       o_ref, pad_ref, *, H, W, TH):
    # x_ref:  (1, H, W, Cin) bf16 — full image for this batch element
    # w1_ref: (Cin, P) bf16; w2_ref: (9*P, P) bf16 (rows ordered ky,kx,ci); w3_ref: (P, Cout) bf16
    # s*/b*:  (1, C) f32 folded BN scale / bias
    # o_ref:  (1, TH, W, Cout) bf16 — one H-tile of output
    # pad_ref: (2*_GUARD + (TH+2)*W, P) f32 scratch — flattened H-padded h1 for this tile
    Cin = x_ref.shape[-1]
    P = w1_ref.shape[-1]
    Cout = w3_ref.shape[-1]
    M = TH * W

    h_idx = pl.program_id(1)
    n_h = pl.num_programs(1)
    row0 = h_idx * TH
    if TH % 8 == 0:
        row0 = pl.multiple_of(row0, 8)

    def conv1_bn_relu(x_rows):                       # x_rows: (rows, W, Cin) bf16
        rows = x_rows.shape[0]
        h = jnp.dot(x_rows.reshape(rows * W, Cin), w1_ref[...],
                    preferred_element_type=jnp.float32)
        return jnp.maximum(h * s1_ref[...] + b1_ref[...], 0.0)   # (rows*W, P) f32

    # Guard rows are never meaningful (their tap contributions are masked below),
    # but keep them zero/deterministic.
    zero_rows = jnp.zeros((_GUARD, P), jnp.float32)
    pad_ref[pl.ds(0, _GUARD), :] = zero_rows
    pad_ref[pl.ds(_GUARD + (TH + 2) * W, _GUARD), :] = zero_rows

    # ---- conv1 (1x1) + bn1 + relu, written straight into the padded-h1 scratch ----
    # Top halo row (zeros at the image top edge).
    r_top = jnp.maximum(row0 - 1, 0)
    valid_top = (h_idx > 0).astype(jnp.float32)
    pad_ref[pl.ds(_GUARD, W), :] = conv1_bn_relu(x_ref[0, pl.ds(r_top, 1)]) * valid_top
    # Interior TH rows.
    pad_ref[pl.ds(_GUARD + W, M), :] = conv1_bn_relu(x_ref[0, pl.ds(row0, TH)])
    # Bottom halo row (zeros at the image bottom edge).
    r_bot = jnp.minimum(row0 + TH, H - 1)
    valid_bot = (h_idx < n_h - 1).astype(jnp.float32)
    pad_ref[pl.ds(_GUARD + (TH + 1) * W, W), :] = (
        conv1_bn_relu(x_ref[0, pl.ds(r_bot, 1)]) * valid_bot)

    # ---- conv2 (3x3, pad=1) + bn2 + relu: 9 accumulating K=P matmuls over
    # row-shifted windows of the flattened padded-h1 scratch (no im2col buffer).
    col = lax.broadcasted_iota(jnp.int32, (M, 1), 0) % W
    not_left = col != 0          # kx==0 taps would read the (zero) left pad at x == 0
    not_right = col != (W - 1)   # kx==2 taps would read the (zero) right pad at x == W-1

    acc = jnp.zeros((M, P), jnp.float32)
    for ky in range(3):
        for kx in range(3):
            kp = ky * 3 + kx
            off = _GUARD + ky * W + (kx - 1)
            tap = pad_ref[pl.ds(off, M), :].astype(jnp.bfloat16)
            w_tap = w2_ref[pl.ds(kp * P, P), :]
            contrib = jnp.dot(tap, w_tap, preferred_element_type=jnp.float32)
            if kx == 0:
                contrib = jnp.where(not_left, contrib, 0.0)
            elif kx == 2:
                contrib = jnp.where(not_right, contrib, 0.0)
            acc = acc + contrib
    h2 = jnp.maximum(acc * s2_ref[...] + b2_ref[...], 0.0)        # (M, P) f32

    # ---- conv3 (1x1) + bn3 + residual + relu ---------------------------------
    h3 = jnp.dot(h2.astype(jnp.bfloat16), w3_ref[...],
                 preferred_element_type=jnp.float32)
    h3 = h3 * s3_ref[...] + b3_ref[...]
    # Re-read the identity tile here instead of keeping it live across conv2.
    x_res = x_ref[0, pl.ds(row0, TH)].astype(jnp.float32).reshape(M, Cin)
    out = jnp.maximum(h3 + x_res, 0.0)
    o_ref[...] = out.reshape(1, TH, W, Cout).astype(o_ref.dtype)


def bottleneck_forward(x_nhwc, params, *, tile_h=8):
    """Fused Bottleneck forward. x_nhwc: (N, H, W, Cin) bf16, returns bf16 NHWC."""
    (w1, s1, b1, w2, s2, b2, w3, s3, b3) = params
    N, H, W, Cin = x_nhwc.shape
    P = w1.shape[-1]
    Cout = w3.shape[-1]
    assert Cin == Cout, "identity residual requires Cin == Cout (no downsample branch)"
    TH = min(tile_h, H)
    assert H % TH == 0, "H must be divisible by the H-tile size"
    assert W % 8 == 0, "W must be a multiple of 8 (sublane alignment)"
    n_h = H // TH

    kernel = functools.partial(_bottleneck_kernel, H=H, W=W, TH=TH)
    flops = 2 * N * H * W * (Cin * P + 9 * P * P + P * Cout)
    bytes_accessed = (N * H * W * (Cin + Cout) * 2
                      + (w1.size + w2.size + w3.size) * 2
                      + (s1.size + b1.size + s2.size + b2.size + s3.size + b3.size) * 4)

    return pl.pallas_call(
        kernel,
        out_shape=jax.ShapeDtypeStruct((N, H, W, Cout), jnp.bfloat16),
        grid_spec=pltpu.PrefetchScalarGridSpec(
            num_scalar_prefetch=0,
            grid=(N, n_h),
            in_specs=[
                # Full image per batch element; block index ignores the H-tile axis,
                # so the DMA happens once per n and is revisited across h tiles.
                pl.BlockSpec((1, H, W, Cin), lambda n, h: (n, 0, 0, 0)),
                pl.BlockSpec(w1.shape, lambda n, h: (0, 0)),
                pl.BlockSpec(s1.shape, lambda n, h: (0, 0)),
                pl.BlockSpec(b1.shape, lambda n, h: (0, 0)),
                pl.BlockSpec(w2.shape, lambda n, h: (0, 0)),
                pl.BlockSpec(s2.shape, lambda n, h: (0, 0)),
                pl.BlockSpec(b2.shape, lambda n, h: (0, 0)),
                pl.BlockSpec(w3.shape, lambda n, h: (0, 0)),
                pl.BlockSpec(s3.shape, lambda n, h: (0, 0)),
                pl.BlockSpec(b3.shape, lambda n, h: (0, 0)),
            ],
            out_specs=pl.BlockSpec((1, TH, W, Cout), lambda n, h: (n, h, 0, 0)),
            scratch_shapes=[
                # Flattened H-padded h1 for one tile: (TH+2)*W data rows + guard rows.
                pltpu.VMEM((2 * _GUARD + (TH + 2) * W, P), jnp.float32),
            ],
        ),
        compiler_params=pltpu.CompilerParams(
            dimension_semantics=("parallel", "parallel"),
            vmem_limit_bytes=48 * 1024 * 1024),
        cost_estimate=pl.CostEstimate(
            flops=flops, transcendentals=0, bytes_accessed=bytes_accessed),
    )(x_nhwc, w1, s1, b1, w2, s2, b2, w3, s3, b3)


class BottleneckPallas:
    """JAX/Pallas Bottleneck (stride=1, no downsample), NHWC in / NHWC out (bf16)."""

    expansion = 4

    def __init__(self, inplanes, planes, key, eps=1e-5):
        # Without a downsample branch, the residual requires inplanes == planes*4.
        assert inplanes == planes * self.expansion
        cout = planes * self.expansion
        k = jax.random.split(key, 9)

        # Conv weights in PyTorch layout, repacked as bf16 MXU operands.
        w1 = jax.random.normal(k[0], (planes, inplanes, 1, 1), jnp.float32) * 0.05
        w2 = jax.random.normal(k[1], (planes, planes, 3, 3), jnp.float32) * 0.05
        w3 = jax.random.normal(k[2], (cout, planes, 1, 1), jnp.float32) * 0.05
        self.w1 = jnp.transpose(w1[:, :, 0, 0], (1, 0)).astype(jnp.bfloat16)      # (Cin, P)
        self.w2 = (jnp.transpose(w2, (2, 3, 1, 0))                                # (ky,kx,ci,co)
                   .reshape(9 * planes, planes).astype(jnp.bfloat16))             # (9P, P)
        self.w3 = jnp.transpose(w3[:, :, 0, 0], (1, 0)).astype(jnp.bfloat16)      # (P, Cout)

        # BatchNorm (eval mode), folded to scale/bias.
        def bn(kg, kb, c):
            g = 1.0 + 0.1 * jax.random.normal(kg, (c,), jnp.float32)
            b = 0.1 * jax.random.normal(kb, (c,), jnp.float32)
            m = jnp.zeros((c,), jnp.float32)
            v = jnp.ones((c,), jnp.float32)
            s = g / jnp.sqrt(v + eps)
            return s.reshape(1, c), (b - m * s).reshape(1, c)

        self.scale1, self.bias1 = bn(k[3], k[4], planes)
        self.scale2, self.bias2 = bn(k[5], k[6], planes)
        self.scale3, self.bias3 = bn(k[7], k[8], cout)

    def params(self):
        return (self.w1, self.scale1, self.bias1,
                self.w2, self.scale2, self.bias2,
                self.w3, self.scale3, self.bias3)

    def __call__(self, x_nhwc, tile_h=8):
        # NHWC bf16 in / out; keeping the network channels-last avoids the two
        # full-HBM transpose passes an NCHW boundary would add.
        return bottleneck_forward(x_nhwc.astype(jnp.bfloat16), self.params(),
                                  tile_h=tile_h)


def _reference_forward(block, x_nhwc):
    """Pure-JAX reference (lax conv) with the same bf16-operand / f32-accum policy."""
    x = x_nhwc.astype(jnp.bfloat16)
    dn = ("NHWC", "HWIO", "NHWC")

    def conv(inp, w_hwio):
        return lax.conv_general_dilated(
            inp.astype(jnp.bfloat16), w_hwio, (1, 1), "SAME",
            dimension_numbers=dn, preferred_element_type=jnp.float32)

    cin, p = block.w1.shape
    cout = block.w3.shape[1]
    w1 = block.w1.reshape(1, 1, cin, p)
    w2 = block.w2.reshape(3, 3, p, p)
    w3 = block.w3.reshape(1, 1, p, cout)

    out = jnp.maximum(conv(x, w1) * block.scale1 + block.bias1, 0.0)
    out = jnp.maximum(conv(out, w2) * block.scale2 + block.bias2, 0.0)
    out = conv(out, w3) * block.scale3 + block.bias3
    out = jnp.maximum(out + x.astype(jnp.float32), 0.0)
    return out.astype(jnp.bfloat16)


if __name__ == "__main__":
    key = jax.random.PRNGKey(0)
    kx, kp = jax.random.split(key)

    # planes=128 -> in/out channels = 512 (lane-dense intermediates), 16x16 spatial, batch 2.
    N, planes, H, W = 2, 128, 16, 16
    inplanes = planes * BottleneckPallas.expansion   # 512
    x = jax.random.normal(kx, (N, H, W, inplanes), jnp.float32).astype(jnp.bfloat16)

    block = BottleneckPallas(inplanes=inplanes, planes=planes, key=kp)

    y = jax.block_until_ready(block(x))
    y_ref = jax.block_until_ready(_reference_forward(block, x))

    assert y.shape == (N, H, W, inplanes)
    assert y.dtype == jnp.bfloat16
    y32 = y.astype(jnp.float32)
    r32 = y_ref.astype(jnp.float32)
    max_err = jnp.max(jnp.abs(y32 - r32))
    assert jnp.allclose(y32, r32, atol=3e-2, rtol=3e-2), \
        f"mismatch vs reference (max abs err {max_err})"

    print("KERNEL_OK")
</pallas_src>

<mosaic_0001>
module attributes {stable_mosaic.version = 11 : i64} {
  func.func @_bottleneck_kernel(%arg0: i32, %arg1: i32, %arg2: memref<1x16x16x512xbf16, #tpu.memory_space<vmem>>, %arg3: memref<512x128xbf16, #tpu.memory_space<vmem>>, %arg4: memref<1x128xf32, #tpu.memory_space<vmem>>, %arg5: memref<1x128xf32, #tpu.memory_space<vmem>>, %arg6: memref<1152x128xbf16, #tpu.memory_space<vmem>>, %arg7: memref<1x128xf32, #tpu.memory_space<vmem>>, %arg8: memref<1x128xf32, #tpu.memory_space<vmem>>, %arg9: memref<128x512xbf16, #tpu.memory_space<vmem>>, %arg10: memref<1x512xf32, #tpu.memory_space<vmem>>, %arg11: memref<1x512xf32, #tpu.memory_space<vmem>>, %arg12: memref<1x8x16x512xbf16, #tpu.memory_space<vmem>>, %arg13: memref<176x128xf32, #tpu.memory_space<vmem>>) attributes {dimension_semantics = [#tpu.dimension_semantics<parallel>, #tpu.dimension_semantics<parallel>], iteration_bounds = array<i64: 2, 2>, scalar_prefetch = 0 : i64, scratch_operands = 1 : i64, tpu.core_type = #tpu.core_type<tc>, window_params = [{transform_indices = @transform_0, window_bounds = array<i64: 1, 16, 16, 512>}, {pipeline_mode = #tpu.pipeline_mode<synchronous>, transform_indices = @transform_1, window_bounds = array<i64: 512, 128>}, {pipeline_mode = #tpu.pipeline_mode<synchronous>, transform_indices = @transform_2, window_bounds = array<i64: 1, 128>}, {pipeline_mode = #tpu.pipeline_mode<synchronous>, transform_indices = @transform_3, window_bounds = array<i64: 1, 128>}, {pipeline_mode = #tpu.pipeline_mode<synchronous>, transform_indices = @transform_4, window_bounds = array<i64: 1152, 128>}, {pipeline_mode = #tpu.pipeline_mode<synchronous>, transform_indices = @transform_5, window_bounds = array<i64: 1, 128>}, {pipeline_mode = #tpu.pipeline_mode<synchronous>, transform_indices = @transform_6, window_bounds = array<i64: 1, 128>}, {pipeline_mode = #tpu.pipeline_mode<synchronous>, transform_indices = @transform_7, window_bounds = array<i64: 128, 512>}, {pipeline_mode = #tpu.pipeline_mode<synchronous>, transform_indices = @transform_8, window_bounds = array<i64: 1, 512>}, {pipeline_mode = #tpu.pipeline_mode<synchronous>, transform_indices = @transform_9, window_bounds = array<i64: 1, 512>}, {transform_indices = @transform_10, window_bounds = array<i64: 1, 8, 16, 512>}]} {
    %c8_i32 = arith.constant 8 : i32
    %0 = arith.muli %arg1, %c8_i32 : i32
    %1 = tpu.assume_multiple %0, 8 : i32
    %cst = arith.constant 0.000000e+00 : f32
    %2 = vector.broadcast %cst : f32 to vector<8x128xf32>
    %c0 = arith.constant 0 : index
    %c0_0 = arith.constant 0 : index
    %3 = vector.load %arg13[%c0, %c0_0] : memref<176x128xf32, #tpu.memory_space<vmem>>, vector<8x128xf32>
    tpu.vector_store %arg13[%c0, %c0_0], %2 {strides = array<i32>} : memref<176x128xf32, #tpu.memory_space<vmem>>, vector<8x128xf32>,
    %c168 = arith.constant 168 : index
    %c0_1 = arith.constant 0 : index
    %4 = vector.load %arg13[%c168, %c0_1] : memref<176x128xf32, #tpu.memory_space<vmem>>, vector<8x128xf32>
    tpu.vector_store %arg13[%c168, %c0_1], %2 {strides = array<i32>} : memref<176x128xf32, #tpu.memory_space<vmem>>, vector<8x128xf32>,
    %c1_i32 = arith.constant 1 : i32
    %5 = arith.subi %1, %c1_i32 : i32
    %c0_i32 = arith.constant 0 : i32
    %6 = arith.maxsi %5, %c0_i32 : i32
    %c0_i32_2 = arith.constant 0 : i32
    %7 = arith.cmpi sgt, %arg1, %c0_i32_2 : i32
    %8 = arith.extui %7 : i1 to i32
    %9 = arith.sitofp %8 : i32 to f32
    %c0_3 = arith.constant 0 : index
    %10 = arith.index_cast %6 : i32 to index
    %c0_4 = arith.constant 0 : index
    %c0_5 = arith.constant 0 : index
    %11 = vector.load %arg2[%c0_3, %10, %c0_4, %c0_5] : memref<1x16x16x512xbf16, #tpu.memory_space<vmem>>, vector<1x1x16x512xbf16>
    %12 = vector.shape_cast %11 : vector<1x1x16x512xbf16> to vector<1x16x512xbf16>
    %13 = vector.shape_cast %12 : vector<1x16x512xbf16> to vector<16x512xbf16>
    %c0_6 = arith.constant 0 : index
    %c0_7 = arith.constant 0 : index
    %14 = vector.load %arg3[%c0_6, %c0_7] : memref<512x128xbf16, #tpu.memory_space<vmem>>, vector<512x128xbf16>
    %cst_8 = arith.constant dense<0.000000e+00> : vector<16x128xf32>
    %15 = tpu.matmul %13, %14, %cst_8 {dimension_numbers = #tpu.dot_dimension_numbers<[1], [0], [0], [1], [0, 0, 1, 1], [], []>} : vector<16x512xbf16>, vector<512x128xbf16>, vector<16x128xf32> -> vector<16x128xf32>
    %c0_9 = arith.constant 0 : index
    %c0_10 = arith.constant 0 : index
    %16 = vector.load %arg4[%c0_9, %c0_10] : memref<1x128xf32, #tpu.memory_space<vmem>>, vector<1x128xf32>
    %17 = vector.broadcast %16 : vector<1x128xf32> to vector<16x128xf32>
    %18 = arith.mulf %15, %17 : vector<16x128xf32>
    %c0_11 = arith.constant 0 : index
    %c0_12 = arith.constant 0 : index
    %19 = vector.load %arg5[%c0_11, %c0_12] : memref<1x128xf32, #tpu.memory_space<vmem>>, vector<1x128xf32>
    %20 = vector.broadcast %19 : vector<1x128xf32> to vector<16x128xf32>
    %21 = arith.addf %18, %20 : vector<16x128xf32>
    %cst_13 = arith.constant 0.000000e+00 : f32
    %22 = vector.broadcast %cst_13 : f32 to vector<16x128xf32>
    %23 = arith.maximumf %21, %22 : vector<16x128xf32>
    %24 = vector.broadcast %9 : f32 to vector<16x128xf32>
    %25 = arith.mulf %23, %24 : vector<16x128xf32>
    %c8 = arith.constant 8 : index
    %c0_14 = arith.constant 0 : index
    %26 = vector.load %arg13[%c8, %c0_14] : memref<176x128xf32, #tpu.memory_space<vmem>>, vector<16x128xf32>
    tpu.vector_store %arg13[%c8, %c0_14], %25 {strides = array<i32>} : memref<176x128xf32, #tpu.memory_space<vmem>>, vector<16x128xf32>,
    %c0_15 = arith.constant 0 : index
    %27 = arith.index_cast %1 : i32 to index
    %c0_16 = arith.constant 0 : index
    %c0_17 = arith.constant 0 : index
    %28 = vector.load %arg2[%c0_15, %27, %c0_16, %c0_17] : memref<1x16x16x512xbf16, #tpu.memory_space<vmem>>, vector<1x8x16x512xbf16>
    %29 = vector.shape_cast %28 : vector<1x8x16x512xbf16> to vector<8x16x512xbf16>
    %30 = vector.shape_cast %29 : vector<8x16x512xbf16> to vector<128x512xbf16>
    %c0_18 = arith.constant 0 : index
    %c0_19 = arith.constant 0 : index
    %31 = vector.load %arg3[%c0_18, %c0_19] : memref<512x128xbf16, #tpu.memory_space<vmem>>, vector<512x128xbf16>
    %cst_20 = arith.constant dense<0.000000e+00> : vector<128x128xf32>
    %32 = tpu.matmul %30, %31, %cst_20 {dimension_numbers = #tpu.dot_dimension_numbers<[1], [0], [0], [1], [0, 0, 1, 1], [], []>} : vector<128x512xbf16>, vector<512x128xbf16>, vector<128x128xf32> -> vector<128x128xf32>
    %c0_21 = arith.constant 0 : index
    %c0_22 = arith.constant 0 : index
    %33 = vector.load %arg4[%c0_21, %c0_22] : memref<1x128xf32, #tpu.memory_space<vmem>>, vector<1x128xf32>
    %34 = vector.broadcast %33 : vector<1x128xf32> to vector<128x128xf32>
    %35 = arith.mulf %32, %34 : vector<128x128xf32>
    %c0_23 = arith.constant 0 : index
    %c0_24 = arith.constant 0 : index
    %36 = vector.load %arg5[%c0_23, %c0_24] : memref<1x128xf32, #tpu.memory_space<vmem>>, vector<1x128xf32>
    %37 = vector.broadcast %36 : vector<1x128xf32> to vector<128x128xf32>
    %38 = arith.addf %35, %37 : vector<128x128xf32>
    %cst_25 = arith.constant 0.000000e+00 : f32
    %39 = vector.broadcast %cst_25 : f32 to vector<128x128xf32>
    %40 = arith.maximumf %38, %39 : vector<128x128xf32>
    %c24 = arith.constant 24 : index
    %c0_26 = arith.constant 0 : index
    %41 = vector.load %arg13[%c24, %c0_26] : memref<176x128xf32, #tpu.memory_space<vmem>>, vector<128x128xf32>
    tpu.vector_store %arg13[%c24, %c0_26], %40 {strides = array<i32>} : memref<176x128xf32, #tpu.memory_space<vmem>>, vector<128x128xf32>,
    %c8_i32_27 = arith.constant 8 : i32
    %42 = arith.addi %1, %c8_i32_27 : i32
    %c15_i32 = arith.constant 15 : i32
    %43 = arith.minsi %42, %c15_i32 : i32
    %c1_i32_28 = arith.constant 1 : i32
    %44 = arith.cmpi slt, %arg1, %c1_i32_28 : i32
    %45 = arith.extui %44 : i1 to i32
    %46 = arith.sitofp %45 : i32 to f32
    %c0_29 = arith.constant 0 : index
    %47 = arith.index_cast %43 : i32 to index
    %c0_30 = arith.constant 0 : index
    %c0_31 = arith.constant 0 : index
    %48 = vector.load %arg2[%c0_29, %47, %c0_30, %c0_31] : memref<1x16x16x512xbf16, #tpu.memory_space<vmem>>, vector<1x1x16x512xbf16>
    %49 = vector.shape_cast %48 : vector<1x1x16x512xbf16> to vector<1x16x512xbf16>
    %50 = vector.shape_cast %49 : vector<1x16x512xbf16> to vector<16x512xbf16>
    %c0_32 = arith.constant 0 : index
    %c0_33 = arith.constant 0 : index
    %51 = vector.load %arg3[%c0_32, %c0_33] : memref<512x128xbf16, #tpu.memory_space<vmem>>, vector<512x128xbf16>
    %cst_34 = arith.constant dense<0.000000e+00> : vector<16x128xf32>
    %52 = tpu.matmul %50, %51, %cst_34 {dimension_numbers = #tpu.dot_dimension_numbers<[1], [0], [0], [1], [0, 0, 1, 1], [], []>} : vector<16x512xbf16>, vector<512x128xbf16>, vector<16x128xf32> -> vector<16x128xf32>
    %c0_35 = arith.constant 0 : index
    %c0_36 = arith.constant 0 : index
    %53 = vector.load %arg4[%c0_35, %c0_36] : memref<1x128xf32, #tpu.memory_space<vmem>>, vector<1x128xf32>
    %54 = vector.broadcast %53 : vector<1x128xf32> to vector<16x128xf32>
    %55 = arith.mulf %52, %54 : vector<16x128xf32>
    %c0_37 = arith.constant 0 : index
    %c0_38 = arith.constant 0 : index
    %56 = vector.load %arg5[%c0_37, %c0_38] : memref<1x128xf32, #tpu.memory_space<vmem>>, vector<1x128xf32>
    %57 = vector.broadcast %56 : vector<1x128xf32> to vector<16x128xf32>
    %58 = arith.addf %55, %57 : vector<16x128xf32>
    %cst_39 = arith.constant 0.000000e+00 : f32
    %59 = vector.broadcast %cst_39 : f32 to vector<16x128xf32>
    %60 = arith.maximumf %58, %59 : vector<16x128xf32>
    %61 = vector.broadcast %46 : f32 to vector<16x128xf32>
    %62 = arith.mulf %60, %61 : vector<16x128xf32>
    %c152 = arith.constant 152 : index
    %c0_40 = arith.constant 0 : index
    %63 = vector.load %arg13[%c152, %c0_40] : memref<176x128xf32, #tpu.memory_space<vmem>>, vector<16x128xf32>
    tpu.vector_store %arg13[%c152, %c0_40], %62 {strides = array<i32>} : memref<176x128xf32, #tpu.memory_space<vmem>>, vector<16x128xf32>,
    %64 = tpu.iota {dimensions = array<i32: 0>} : vector<128x1xi32>
    %c16_i32 = arith.constant 16 : i32
    %c0_i32_41 = arith.constant 0 : i32
    %65 = arith.cmpi eq, %c16_i32, %c0_i32_41 : i32
    %c1_i32_42 = arith.constant 1 : i32
    %66 = arith.select %65, %c1_i32_42, %c16_i32 : i32
    %67 = vector.broadcast %66 : i32 to vector<128x1xi32>
    %68 = arith.remsi %64, %67 : vector<128x1xi32>
    %c0_i32_43 = arith.constant 0 : i32
    %69 = vector.broadcast %c0_i32_43 : i32 to vector<128x1xi32>
    %70 = arith.cmpi ne, %68, %69 : vector<128x1xi32>
    %c0_i32_44 = arith.constant 0 : i32
    %71 = vector.broadcast %c0_i32_44 : i32 to vector<128x1xi32>
    %72 = arith.cmpi slt, %68, %71 : vector<128x1xi32>
    %c0_i32_45 = arith.constant 0 : i32
    %73 = arith.cmpi slt, %66, %c0_i32_45 : i32
    %74 = vector.broadcast %73 : i1 to vector<128x1xi1>
    %75 = vector.broadcast %74 : vector<128x1xi1> to vector<128x1xi1>
    %76 = arith.xori %72, %75 : vector<128x1xi1>
    %77 = arith.andi %76, %70 : vector<128x1xi1>
    %78 = vector.broadcast %66 : i32 to vector<128x1xi32>
    %79 = arith.addi %68, %78 : vector<128x1xi32>
    %80 = arith.select %77, %79, %68 : vector<128x1xi1>, vector<128x1xi32>
    %c0_i32_46 = arith.constant 0 : i32
    %81 = vector.broadcast %c0_i32_46 : i32 to vector<128x1xi32>
    %82 = arith.cmpi ne, %80, %81 : vector<128x1xi32>
    %c15_i32_47 = arith.constant 15 : i32
    %83 = vector.broadcast %c15_i32_47 : i32 to vector<128x1xi32>
    %84 = arith.cmpi ne, %80, %83 : vector<128x1xi32>
    %cst_48 = arith.constant 0.000000e+00 : f32
    %85 = vector.broadcast %cst_48 : f32 to vector<128x128xf32>
    %c7 = arith.constant 7 : index
    %c0_49 = arith.constant 0 : index
    %86 = vector.load %arg13[%c7, %c0_49] : memref<176x128xf32, #tpu.memory_space<vmem>>, vector<128x128xf32>
    %87 = arith.truncf %86 : vector<128x128xf32> to vector<128x128xbf16>
    %c0_50 = arith.constant 0 : index
    %c0_51 = arith.constant 0 : index
    %88 = vector.load %arg6[%c0_50, %c0_51] : memref<1152x128xbf16, #tpu.memory_space<vmem>>, vector<128x128xbf16>
    %cst_52 = arith.constant dense<0.000000e+00> : vector<128x128xf32>
    %89 = tpu.matmul %87, %88, %cst_52 {dimension_numbers = #tpu.dot_dimension_numbers<[1], [0], [0], [1], [0, 0, 1, 1], [], []>} : vector<128x128xbf16>, vector<128x128xbf16>, vector<128x128xf32> -> vector<128x128xf32>
    %cst_53 = arith.constant 0.000000e+00 : f32
    %90 = vector.shape_cast %82 : vector<128x1xi1> to vector<128x1xi1>
    %91 = vector.broadcast %90 : vector<128x1xi1> to vector<128x128xi1>
    %92 = vector.broadcast %cst_53 : f32 to vector<128x128xf32>
    %93 = arith.select %91, %89, %92 : vector<128x128xi1>, vector<128x128xf32>
    %94 = arith.addf %85, %93 : vector<128x128xf32>
    %c8_54 = arith.constant 8 : index
    %c0_55 = arith.constant 0 : index
    %95 = vector.load %arg13[%c8_54, %c0_55] : memref<176x128xf32, #tpu.memory_space<vmem>>, vector<128x128xf32>
    %96 = arith.truncf %95 : vector<128x128xf32> to vector<128x128xbf16>
    %c128 = arith.constant 128 : index
    %c0_56 = arith.constant 0 : index
    %97 = vector.load %arg6[%c128, %c0_56] : memref<1152x128xbf16, #tpu.memory_space<vmem>>, vector<128x128xbf16>
    %cst_57 = arith.constant dense<0.000000e+00> : vector<128x128xf32>
    %98 = tpu.matmul %96, %97, %cst_57 {dimension_numbers = #tpu.dot_dimension_numbers<[1], [0], [0], [1], [0, 0, 1, 1], [], []>} : vector<128x128xbf16>, vector<128x128xbf16>, vector<128x128xf32> -> vector<128x128xf32>
    %99 = arith.addf %94, %98 : vector<128x128xf32>
    %c9 = arith.constant 9 : index
    %c0_58 = arith.constant 0 : index
    %100 = vector.load %arg13[%c9, %c0_58] : memref<176x128xf32, #tpu.memory_space<vmem>>, vector<128x128xf32>
    %101 = arith.truncf %100 : vector<128x128xf32> to vector<128x128xbf16>
    %c256 = arith.constant 256 : index
    %c0_59 = arith.constant 0 : index
    %102 = vector.load %arg6[%c256, %c0_59] : memref<1152x128xbf16, #tpu.memory_space<vmem>>, vector<128x128xbf16>
    %cst_60 = arith.constant dense<0.000000e+00> : vector<128x128xf32>
    %103 = tpu.matmul %101, %102, %cst_60 {dimension_numbers = #tpu.dot_dimension_numbers<[1], [0], [0], [1], [0, 0, 1, 1], [], []>} : vector<128x128xbf16>, vector<128x128xbf16>, vector<128x128xf32> -> vector<128x128xf32>
    %cst_61 = arith.constant 0.000000e+00 : f32
    %104 = vector.shape_cast %84 : vector<128x1xi1> to vector<128x1xi1>
    %105 = vector.broadcast %104 : vector<128x1xi1> to vector<128x128xi1>
    %106 = vector.broadcast %cst_61 : f32 to vector<128x128xf32>
    %107 = arith.select %105, %103, %106 : vector<128x128xi1>, vector<128x128xf32>
    %108 = arith.addf %99, %107 : vector<128x128xf32>
    %c23 = arith.constant 23 : index
    %c0_62 = arith.constant 0 : index
    %109 = vector.load %arg13[%c23, %c0_62] : memref<176x128xf32, #tpu.memory_space<vmem>>, vector<128x128xf32>
    %110 = arith.truncf %109 : vector<128x128xf32> to vector<128x128xbf16>
    %c384 = arith.constant 384 : index
    %c0_63 = arith.constant 0 : index
    %111 = vector.load %arg6[%c384, %c0_63] : memref<1152x128xbf16, #tpu.memory_space<vmem>>, vector<128x128xbf16>
    %cst_64 = arith.constant dense<0.000000e+00> : vector<128x128xf32>
    %112 = tpu.matmul %110, %111, %cst_64 {dimension_numbers = #tpu.dot_dimension_numbers<[1], [0], [0], [1], [0, 0, 1, 1], [], []>} : vector<128x128xbf16>, vector<128x128xbf16>, vector<128x128xf32> -> vector<128x128xf32>
    %cst_65 = arith.constant 0.000000e+00 : f32
    %113 = vector.shape_cast %82 : vector<128x1xi1> to vector<128x1xi1>
    %114 = vector.broadcast %113 : vector<128x1xi1> to vector<128x128xi1>
    %115 = vector.broadcast %cst_65 : f32 to vector<128x128xf32>
    %116 = arith.select %114, %112, %115 : vector<128x128xi1>, vector<128x128xf32>
    %117 = arith.addf %108, %116 : vector<128x128xf32>
    %c24_66 = arith.constant 24 : index
    %c0_67 = arith.constant 0 : index
    %118 = vector.load %arg13[%c24_66, %c0_67] : memref<176x128xf32, #tpu.memory_space<vmem>>, vector<128x128xf32>
    %119 = arith.truncf %118 : vector<128x128xf32> to vector<128x128xbf16>
    %c512 = arith.constant 512 : index
    %c0_68 = arith.constant 0 : index
    %120 = vector.load %arg6[%c512, %c0_68] : memref<1152x128xbf16, #tpu.memory_space<vmem>>, vector<128x128xbf16>
    %cst_69 = arith.constant dense<0.000000e+00> : vector<128x128xf32>
    %121 = tpu.matmul %119, %120, %cst_69 {dimension_numbers = #tpu.dot_dimension_numbers<[1], [0], [0], [1], [0, 0, 1, 1], [], []>} : vector<128x128xbf16>, vector<128x128xbf16>, vector<128x128xf32> -> vector<128x128xf32>
    %122 = arith.addf %117, %121 : vector<128x128xf32>
    %c25 = arith.constant 25 : index
    %c0_70 = arith.constant 0 : index
    %123 = vector.load %arg13[%c25, %c0_70] : memref<176x128xf32, #tpu.memory_space<vmem>>, vector<128x128xf32>
    %124 = arith.truncf %123 : vector<128x128xf32> to vector<128x128xbf16>
    %c640 = arith.constant 640 : index
    %c0_71 = arith.constant 0 : index
    %125 = vector.load %arg6[%c640, %c0_71] : memref<1152x128xbf16, #tpu.memory_space<vmem>>, vector<128x128xbf16>
    %cst_72 = arith.constant dense<0.000000e+00> : vector<128x128xf32>
    %126 = tpu.matmul %124, %125, %cst_72 {dimension_numbers = #tpu.dot_dimension_numbers<[1], [0], [0], [1], [0, 0, 1, 1], [], []>} : vector<128x128xbf16>, vector<128x128xbf16>, vector<128x128xf32> -> vector<128x128xf32>
    %cst_73 = arith.constant 0.000000e+00 : f32
    %127 = vector.shape_cast %84 : vector<128x1xi1> to vector<128x1xi1>
    %128 = vector.broadcast %127 : vector<128x1xi1> to vector<128x128xi1>
    %129 = vector.broadcast %cst_73 : f32 to vector<128x128xf32>
    %130 = arith.select %128, %126, %129 : vector<128x128xi1>, vector<128x128xf32>
    %131 = arith.addf %122, %130 : vector<128x128xf32>
    %c39 = arith.constant 39 : index
    %c0_74 = arith.constant 0 : index
    %132 = vector.load %arg13[%c39, %c0_74] : memref<176x128xf32, #tpu.memory_space<vmem>>, vector<128x128xf32>
    %133 = arith.truncf %132 : vector<128x128xf32> to vector<128x128xbf16>
    %c768 = arith.constant 768 : index
    %c0_75 = arith.constant 0 : index
    %134 = vector.load %arg6[%c768, %c0_75] : memref<1152x128xbf16, #tpu.memory_space<vmem>>, vector<128x128xbf16>
    %cst_76 = arith.constant dense<0.000000e+00> : vector<128x128xf32>
    %135 = tpu.matmul %133, %134, %cst_76 {dimension_numbers = #tpu.dot_dimension_numbers<[1], [0], [0], [1], [0, 0, 1, 1], [], []>} : vector<128x128xbf16>, vector<128x128xbf16>, vector<128x128xf32> -> vector<128x128xf32>
    %cst_77 = arith.constant 0.000000e+00 : f32
    %136 = vector.shape_cast %82 : vector<128x1xi1> to vector<128x1xi1>
    %137 = vector.broadcast %136 : vector<128x1xi1> to vector<128x128xi1>
    %138 = vector.broadcast %cst_77 : f32 to vector<128x128xf32>
    %139 = arith.select %137, %135, %138 : vector<128x128xi1>, vector<128x128xf32>
    %140 = arith.addf %131, %139 : vector<128x128xf32>
    %c40 = arith.constant 40 : index
    %c0_78 = arith.constant 0 : index
    %141 = vector.load %arg13[%c40, %c0_78] : memref<176x128xf32, #tpu.memory_space<vmem>>, vector<128x128xf32>
    %142 = arith.truncf %141 : vector<128x128xf32> to vector<128x128xbf16>
    %c896 = arith.constant 896 : index
    %c0_79 = arith.constant 0 : index
    %143 = vector.load %arg6[%c896, %c0_79] : memref<1152x128xbf16, #tpu.memory_space<vmem>>, vector<128x128xbf16>
    %cst_80 = arith.constant dense<0.000000e+00> : vector<128x128xf32>
    %144 = tpu.matmul %142, %143, %cst_80 {dimension_numbers = #tpu.dot_dimension_numbers<[1], [0], [0], [1], [0, 0, 1, 1], [], []>} : vector<128x128xbf16>, vector<128x128xbf16>, vector<128x128xf32> -> vector<128x128xf32>
    %145 = arith.addf %140, %144 : vector<128x128xf32>
    %c41 = arith.constant 41 : index
    %c0_81 = arith.constant 0 : index
    %146 = vector.load %arg13[%c41, %c0_81] : memref<176x128xf32, #tpu.memory_space<vmem>>, vector<128x128xf32>
    %147 = arith.truncf %146 : vector<128x128xf32> to vector<128x128xbf16>
    %c1024 = arith.constant 1024 : index
    %c0_82 = arith.constant 0 : index
    %148 = vector.load %arg6[%c1024, %c0_82] : memref<1152x128xbf16, #tpu.memory_space<vmem>>, vector<128x128xbf16>
    %cst_83 = arith.constant dense<0.000000e+00> : vector<128x128xf32>
    %149 = tpu.matmul %147, %148, %cst_83 {dimension_numbers = #tpu.dot_dimension_numbers<[1], [0], [0], [1], [0, 0, 1, 1], [], []>} : vector<128x128xbf16>, vector<128x128xbf16>, vector<128x128xf32> -> vector<128x128xf32>
    %cst_84 = arith.constant 0.000000e+00 : f32
    %150 = vector.shape_cast %84 : vector<128x1xi1> to vector<128x1xi1>
    %151 = vector.broadcast %150 : vector<128x1xi1> to vector<128x128xi1>
    %152 = vector.broadcast %cst_84 : f32 to vector<128x128xf32>
    %153 = arith.select %151, %149, %152 : vector<128x128xi1>, vector<128x128xf32>
    %154 = arith.addf %145, %153 : vector<128x128xf32>
    %c0_85 = arith.constant 0 : index
    %c0_86 = arith.constant 0 : index
    %155 = vector.load %arg7[%c0_85, %c0_86] : memref<1x128xf32, #tpu.memory_space<vmem>>, vector<1x128xf32>
    %156 = vector.broadcast %155 : vector<1x128xf32> to vector<128x128xf32>
    %157 = arith.mulf %154, %156 : vector<128x128xf32>
    %c0_87 = arith.constant 0 : index
    %c0_88 = arith.constant 0 : index
    %158 = vector.load %arg8[%c0_87, %c0_88] : memref<1x128xf32, #tpu.memory_space<vmem>>, vector<1x128xf32>
    %159 = vector.broadcast %158 : vector<1x128xf32> to vector<128x128xf32>
    %160 = arith.addf %157, %159 : vector<128x128xf32>
    %cst_89 = arith.constant 0.000000e+00 : f32
    %161 = vector.broadcast %cst_89 : f32 to vector<128x128xf32>
    %162 = arith.maximumf %160, %161 : vector<128x128xf32>
    %163 = arith.truncf %162 : vector<128x128xf32> to vector<128x128xbf16>
    %c0_90 = arith.constant 0 : index
    %c0_91 = arith.constant 0 : index
    %164 = vector.load %arg9[%c0_90, %c0_91] : memref<128x512xbf16, #tpu.memory_space<vmem>>, vector<128x512xbf16>
    %cst_92 = arith.constant dense<0.000000e+00> : vector<128x512xf32>
    %165 = tpu.matmul %163, %164, %cst_92 {dimension_numbers = #tpu.dot_dimension_numbers<[1], [0], [0], [1], [0, 0, 1, 1], [], []>} : vector<128x128xbf16>, vector<128x512xbf16>, vector<128x512xf32> -> vector<128x512xf32>
    %c0_93 = arith.constant 0 : index
    %c0_94 = arith.constant 0 : index
    %166 = vector.load %arg10[%c0_93, %c0_94] : memref<1x512xf32, #tpu.memory_space<vmem>>, vector<1x512xf32>
    %167 = vector.broadcast %166 : vector<1x512xf32> to vector<128x512xf32>
    %168 = arith.mulf %165, %167 : vector<128x512xf32>
    %c0_95 = arith.constant 0 : index
    %c0_96 = arith.constant 0 : index
    %169 = vector.load %arg11[%c0_95, %c0_96] : memref<1x512xf32, #tpu.memory_space<vmem>>, vector<1x512xf32>
    %170 = vector.broadcast %169 : vector<1x512xf32> to vector<128x512xf32>
    %171 = arith.addf %168, %170 : vector<128x512xf32>
    %c0_97 = arith.constant 0 : index
    %172 = arith.index_cast %1 : i32 to index
    %c0_98 = arith.constant 0 : index
    %c0_99 = arith.constant 0 : index
    %173 = vector.load %arg2[%c0_97, %172, %c0_98, %c0_99] : memref<1x16x16x512xbf16, #tpu.memory_space<vmem>>, vector<1x8x16x512xbf16>
    %174 = vector.shape_cast %173 : vector<1x8x16x512xbf16> to vector<8x16x512xbf16>
    %175 = arith.extf %174 : vector<8x16x512xbf16> to vector<8x16x512xf32>
    %176 = vector.shape_cast %175 : vector<8x16x512xf32> to vector<128x512xf32>
    %177 = arith.addf %171, %176 : vector<128x512xf32>
    %cst_100 = arith.constant 0.000000e+00 : f32
    %178 = vector.broadcast %cst_100 : f32 to vector<128x512xf32>
    %179 = arith.maximumf %177, %178 : vector<128x512xf32>
    %180 = vector.shape_cast %179 : vector<128x512xf32> to vector<1x8x16x512xf32>
    %181 = arith.truncf %180 : vector<1x8x16x512xf32> to vector<1x8x16x512xbf16>
    %c0_101 = arith.constant 0 : index
    %c0_102 = arith.constant 0 : index
    %c0_103 = arith.constant 0 : index
    %c0_104 = arith.constant 0 : index
    %182 = vector.load %arg12[%c0_101, %c0_102, %c0_103, %c0_104] : memref<1x8x16x512xbf16, #tpu.memory_space<vmem>>, vector<1x8x16x512xbf16>
    tpu.vector_store %arg12[%c0_101, %c0_102, %c0_103, %c0_104], %181 {strides = array<i32>} : memref<1x8x16x512xbf16, #tpu.memory_space<vmem>>, vector<1x8x16x512xbf16>,
    return
  }
  func.func @transform_0(%arg0: i32, %arg1: i32) -> (i32, i32, i32, i32) {
    %c0_i32 = arith.constant 0 : i32
    %c0_i32_0 = arith.constant 0 : i32
    %c0_i32_1 = arith.constant 0 : i32
    %c0_i32_2 = arith.constant 0 : i32
    return %arg0, %c0_i32, %c0_i32_0, %c0_i32_1 : i32, i32, i32, i32
  }
  func.func @transform_1(%arg0: i32, %arg1: i32) -> (i32, i32) {
    %c0_i32 = arith.constant 0 : i32
    %c0_i32_0 = arith.constant 0 : i32
    %c0_i32_1 = arith.constant 0 : i32
    return %c0_i32, %c0_i32_0 : i32, i32
  }
  func.func @transform_2(%arg0: i32, %arg1: i32) -> (i32, i32) {
    %c0_i32 = arith.constant 0 : i32
    %c0_i32_0 = arith.constant 0 : i32
    %c0_i32_1 = arith.constant 0 : i32
    return %c0_i32, %c0_i32_0 : i32, i32
  }
  func.func @transform_3(%arg0: i32, %arg1: i32) -> (i32, i32) {
    %c0_i32 = arith.constant 0 : i32
    %c0_i32_0 = arith.constant 0 : i32
    %c0_i32_1 = arith.constant 0 : i32
    return %c0_i32, %c0_i32_0 : i32, i32
  }
  func.func @transform_4(%arg0: i32, %arg1: i32) -> (i32, i32) {
    %c0_i32 = arith.constant 0 : i32
    %c0_i32_0 = arith.constant 0 : i32
    %c0_i32_1 = arith.constant 0 : i32
    return %c0_i32, %c0_i32_0 : i32, i32
  }
  func.func @transform_5(%arg0: i32, %arg1: i32) -> (i32, i32) {
    %c0_i32 = arith.constant 0 : i32
    %c0_i32_0 = arith.constant 0 : i32
    %c0_i32_1 = arith.constant 0 : i32
    return %c0_i32, %c0_i32_0 : i32, i32
  }
  func.func @transform_6(%arg0: i32, %arg1: i32) -> (i32, i32) {
    %c0_i32 = arith.constant 0 : i32
    %c0_i32_0 = arith.constant 0 : i32
    %c0_i32_1 = arith.constant 0 : i32
    return %c0_i32, %c0_i32_0 : i32, i32
  }
  func.func @transform_7(%arg0: i32, %arg1: i32) -> (i32, i32) {
    %c0_i32 = arith.constant 0 : i32
    %c0_i32_0 = arith.constant 0 : i32
    %c0_i32_1 = arith.constant 0 : i32
    return %c0_i32, %c0_i32_0 : i32, i32
  }
  func.func @transform_8(%arg0: i32, %arg1: i32) -> (i32, i32) {
    %c0_i32 = arith.constant 0 : i32
    %c0_i32_0 = arith.constant 0 : i32
    %c0_i32_1 = arith.constant 0 : i32
    return %c0_i32, %c0_i32_0 : i32, i32
  }
  func.func @transform_9(%arg0: i32, %arg1: i32) -> (i32, i32) {
    %c0_i32 = arith.constant 0 : i32
    %c0_i32_0 = arith.constant 0 : i32
    %c0_i32_1 = arith.constant 0 : i32
    return %c0_i32, %c0_i32_0 : i32, i32
  }
  func.func @transform_10(%arg0: i32, %arg1: i32) -> (i32, i32, i32, i32) {
    %c0_i32 = arith.constant 0 : i32
    %c0_i32_0 = arith.constant 0 : i32
    %c0_i32_1 = arith.constant 0 : i32
    return %arg0, %arg1, %c0_i32, %c0_i32_0 : i32, i32, i32, i32
  }
}

</mosaic_0001>

<llo_original>
// kernel: tpu_custom_call.1
$region0: #{tpu_custom_call.1}
  #allocation0 [shape = 'u32[]', space=smem, size = 0x4, offset = 0x4, fixed_abs, tag = 'smem constant byte address 0x4 - core index']
  #allocation1 [shape = 'u32[72,128]{1,0:T(1,128)}', space=vmem, size = 0x9000, scoped, tag = 'internal scratch']
  #allocation2 [shape = 'f32[176,128]{1,0:T(8,128)}', space=vmem, size = 0x16000, scoped, tag = 'scratch operand']
  %s0 = inlined_call_operand.hbm [shape: bf16[2,16,16,512], index: 0, kind: input, shape index: {}]
  %s1 = inlined_call_operand.hbm [shape: bf16[512,128], index: 1, kind: input, shape index: {}]
  %s2 = inlined_call_operand.hbm [shape: f32[1,128], index: 2, kind: input, shape index: {}]
  %s3 = inlined_call_operand.hbm [shape: f32[1,128], index: 3, kind: input, shape index: {}]
  %s4 = inlined_call_operand.hbm [shape: bf16[1152,128], index: 4, kind: input, shape index: {}]
  %s5 = inlined_call_operand.hbm [shape: f32[1,128], index: 5, kind: input, shape index: {}]
  %s6 = inlined_call_operand.hbm [shape: f32[1,128], index: 6, kind: input, shape index: {}]
  %s7 = inlined_call_operand.hbm [shape: bf16[128,512], index: 7, kind: input, shape index: {}]
  %s8 = inlined_call_operand.vmem [shape: f32[1,512], index: 8, kind: input, shape index: {}]
  %s9 = inlined_call_operand.vmem [shape: f32[1,512], index: 9, kind: input, shape index: {}]
  %s10 = inlined_call_operand.hbm [shape: bf16[2,16,16,512], index: 10, kind: output, shape index: {}]
  %s11 = sld [smem:[#allocation0]]
  $region105: #{tpu_custom_call.1} parent=0
    _
  %s13 = ssub.s32 1, %s11
  %s14 = scalar_select 0, %s13, %s11
  $region1: #{tpu_custom_call.1} parent=0
    #allocation3 [shape = 'u8[524288]{0}', space=vmem, size = 0x80000, scoped, tag = 'input window, operand 0']
    #allocation4 [shape = 's32[2]{0}', space=sflag, size = 0x8, scoped, tag = 'scoped memory for tpu_custom_call.1']
    #allocation5 [shape = 's32[2]{0}', space=sflag, size = 0x8, scoped, tag = 'scoped memory for tpu_custom_call.1']
    #allocation6 [shape = 'u8[131072]{0}', space=vmem, size = 0x20000, scoped, tag = 'input window, operand 1, single buffered']
    #allocation7 [shape = 's32[1]{0}', space=sflag, size = 0x4, scoped, tag = 'scoped memory for tpu_custom_call.1']
    #allocation8 [shape = 'u8[512]{0}', space=vmem, size = 0x400, scoped, tag = 'input window, operand 2, single buffered']
    #allocation9 [shape = 'u8[512]{0}', space=vmem, size = 0x400, scoped, tag = 'input window, operand 3, single buffered']
    #allocation10 [shape = 's32[1]{0}', space=sflag, size = 0x4, scoped, tag = 'scoped memory for tpu_custom_call.1']
    #allocation11 [shape = 'u8[294912]{0}', space=vmem, size = 0x48000, scoped, tag = 'input window, operand 4, single buffered']
    #allocation12 [shape = 'u8[512]{0}', space=vmem, size = 0x400, scoped, tag = 'input window, operand 5, single buffered']
    #allocation13 [shape = 's32[1]{0}', space=sflag, size = 0x4, scoped, tag = 'scoped memory for tpu_custom_call.1']
    #allocation14 [shape = 'u8[512]{0}', space=vmem, size = 0x400, scoped, tag = 'input window, operand 6, single buffered']
    #allocation15 [shape = 'u8[131072]{0}', space=vmem, size = 0x20000, scoped, tag = 'input window, operand 7, single buffered']
    #allocation16 [shape = 's32[1]{0}', space=sflag, size = 0x4, scoped, tag = 'scoped memory for tpu_custom_call.1']
    #allocation17 [shape = 'u8[262144]{0}', space=vmem, size = 0x40000, scoped, tag = 'output window, operand 0']
    %15 = vsyncpa [#allocation4], 0
    %s16 = scalar_lea.sflag [#allocation4], 1
    %17 = vsyncpa %s16, 0
    %18 = vsyncpa [#allocation7], 0
    %19 = vsyncpa [#allocation10], 0
    %20 = vsyncpa [#allocation13], 0
    %21 = vsyncpa [#allocation16], 0
    %22 = vsyncpa [#allocation5], 0
    %s23 = scalar_lea.sflag [#allocation5], 1
    %24 = vsyncpa %s23, 0
    loop: start=0, step=1, limit=6
    $region2: #{tpu_custom_call.1} parent=1 // loop_pre_header
      _
    $region3: #{tpu_custom_call.1} parent=1 // loop_header
      %s26 = sphi 0, %s30
      %p27 = scmp.ge.s32.totalorder %s26, 6
      %s33 = sphi 0, %s45
      %s34 = sphi 0, %s41
      %s35 = sphi 0, %s33
      %s36 = sphi 0, %s34
      %s37 = sphi 0, %s35
      %s38 = sphi 0, %s36
      %s48 = sphi 0, %s50
      %s51 = sphi 0, %s48
      %s52 = sphi 0, %s51
      %s68 = sphi 0, %s52
      %s72 = sphi 0, %s72
      %s74 = sphi 0, %s72
      %s75 = sphi 0, %s74
      %s89 = sphi 0, %s75
      %s93 = sphi 0, %s93
      %s95 = sphi 0, %s93
      %s96 = sphi 0, %s95
      %s110 = sphi 0, %s96
      %s114 = sphi 0, %s114
      %s116 = sphi 0, %s114
      %s117 = sphi 0, %s116
      %s131 = sphi 0, %s117
      %s135 = sphi 0, %s135
      %s137 = sphi 0, %s135
      %s138 = sphi 0, %s137
      %s152 = sphi 0, %s138
      %s156 = sphi 0, %s156
      %s158 = sphi 0, %s156
      %s159 = sphi 0, %s158
      %s173 = sphi 0, %s159
      %s177 = sphi 0, %s177
      %s179 = sphi 0, %s177
      %s180 = sphi 0, %s179
      %s194 = sphi 0, %s180
      %s198 = sphi 0, %s198
      %s200 = sphi 0, %s198
      %s201 = sphi 0, %s200
      %s215 = sphi 0, %s201
      %s219 = sphi 0, %s219
      %s221 = sphi 0, %s219
      %s222 = sphi 0, %s221
      %s236 = sphi 0, %s222
      %s240 = sphi 0, %s240
      %s242 = sphi 0, %s240
      %s243 = sphi 0, %s242
      %s257 = sphi 0, %s243
      %s265 = sphi 0, %s267
      %s268 = sphi 0, %s265
      %s269 = sphi 0, %s268
      %s285 = sphi 0, %s269
    $region4: #{tpu_custom_call.1} parent=1 // loop_header_branch
      %29 = sbr.rel (%p27) target = $region8
    $region5: #{tpu_custom_call.1} parent=1 // loop_body
      %s31 = ssub.s32 %s26, 1
      %s32 = ssub.s32 %s26, 2
      %s39 = sadd.s32 1, %s34
      %p40 = scmp.ge.s32.totalorder %s39, 2
      %s41 = scalar_select %p40, 0, %s39
      %s42 = sadd.s32 1, %s33
      %s43 = scalar_select %p40, %s42, %s33
      %p44 = scmp.ge.s32.totalorder %s43, 2
      %s45 = scalar_select %p44, 0, %s43
      %s46 = ssub.s32 %s33, %s45
      %p47 = scmp.eq.s32.totalorder %s46, 0
      %s49 = sadd.s32 %s48, 1
      %s50 = scalar_select %p47, %s48, %s49
      %p53 = pneg %p47
      %p54 = scmp.eq.s32.totalorder %s26, 3
      %p55 = por %p53, %p54
      %p56 = scmp.ne.s32.totalorder %s48, %s51
      %p57 = scmp.eq.s32.totalorder %s26, 0
      %p58 = por %p56, %p57
      %p59 = scmp.ne.s32.totalorder %s48, %s51
      %p60 = scmp.eq.s32.totalorder %s31, 3
      %p61 = por %p59, %p60
      %p62 = scmp.ne.s32.totalorder %s51, %s52
      %p63 = scmp.eq.s32.totalorder %s31, 0
      %p64 = por %p62, %p63
      %p65 = scmp.ne.s32.totalorder %s51, %s52
      %p66 = scmp.eq.s32.totalorder %s32, 3
      %p67 = por %p65, %p66
      %p69 = scmp.ne.s32.totalorder %s52, %s68
      %p70 = scmp.eq.s32.totalorder %s32, 0
      %p71 = por %p69, %p70
      %s73 = sadd.s32 %s72, 1
      %p76 = scmp.eq.s32.totalorder %s26, 3
      %p77 = scmp.ne.s32.totalorder %s72, %s74
      %p78 = scmp.eq.s32.totalorder %s26, 0
      %p79 = por %p77, %p78
      %p80 = scmp.ne.s32.totalorder %s72, %s74
      %p81 = scmp.eq.s32.totalorder %s31, 3
      %p82 = por %p80, %p81
      %p83 = scmp.ne.s32.totalorder %s74, %s75
      %p84 = scmp.eq.s32.totalorder %s31, 0
      %p85 = por %p83, %p84
      %p86 = scmp.ne.s32.totalorder %s74, %s75
      %p87 = scmp.eq.s32.totalorder %s32, 3
      %p88 = por %p86, %p87
      %p90 = scmp.ne.s32.totalorder %s75, %s89
      %p91 = scmp.eq.s32.totalorder %s32, 0
      %p92 = por %p90, %p91
      %s94 = sadd.s32 %s93, 1
      %p97 = scmp.eq.s32.totalorder %s26, 3
      %p98 = scmp.ne.s32.totalorder %s93, %s95
      %p99 = scmp.eq.s32.totalorder %s26, 0
      %p100 = por %p98, %p99
      %p101 = scmp.ne.s32.totalorder %s93, %s95
      %p102 = scmp.eq.s32.totalorder %s31, 3
      %p103 = por %p101, %p102
      %p104 = scmp.ne.s32.totalorder %s95, %s96
      %p105 = scmp.eq.s32.totalorder %s31, 0
      %p106 = por %p104, %p105
      %p107 = scmp.ne.s32.totalorder %s95, %s96
      %p108 = scmp.eq.s32.totalorder %s32, 3
      %p109 = por %p107, %p108
      %p111 = scmp.ne.s32.totalorder %s96, %s110
      %p112 = scmp.eq.s32.totalorder %s32, 0
      %p113 = por %p111, %p112
      %s115 = sadd.s32 %s114, 1
      %p118 = scmp.eq.s32.totalorder %s26, 3
      %p119 = scmp.ne.s32.totalorder %s114, %s116
      %p120 = scmp.eq.s32.totalorder %s26, 0
      %p121 = por %p119, %p120
      %p122 = scmp.ne.s32.totalorder %s114, %s116
      %p123 = scmp.eq.s32.totalorder %s31, 3
      %p124 = por %p122, %p123
      %p125 = scmp.ne.s32.totalorder %s116, %s117
      %p126 = scmp.eq.s32.totalorder %s31, 0
      %p127 = por %p125, %p126
      %p128 = scmp.ne.s32.totalorder %s116, %s117
      %p129 = scmp.eq.s32.totalorder %s32, 3
      %p130 = por %p128, %p129
      %p132 = scmp.ne.s32.totalorder %s117, %s131
      %p133 = scmp.eq.s32.totalorder %s32, 0
      %p134 = por %p132, %p133
      %s136 = sadd.s32 %s135, 1
      %p139 = scmp.eq.s32.totalorder %s26, 3
      %p140 = scmp.ne.s32.totalorder %s135, %s137
      %p141 = scmp.eq.s32.totalorder %s26, 0
      %p142 = por %p140, %p141
      %p143 = scmp.ne.s32.totalorder %s135, %s137
      %p144 = scmp.eq.s32.totalorder %s31, 3
      %p145 = por %p143, %p144
      %p146 = scmp.ne.s32.totalorder %s137, %s138
      %p147 = scmp.eq.s32.totalorder %s31, 0
      %p148 = por %p146, %p147
      %p149 = scmp.ne.s32.totalorder %s137, %s138
      %p150 = scmp.eq.s32.totalorder %s32, 3
      %p151 = por %p149, %p150
      %p153 = scmp.ne.s32.totalorder %s138, %s152
      %p154 = scmp.eq.s32.totalorder %s32, 0
      %p155 = por %p153, %p154
      %s157 = sadd.s32 %s156, 1
      %p160 = scmp.eq.s32.totalorder %s26, 3
      %p161 = scmp.ne.s32.totalorder %s156, %s158
      %p162 = scmp.eq.s32.totalorder %s26, 0
      %p163 = por %p161, %p162
      %p164 = scmp.ne.s32.totalorder %s156, %s158
      %p165 = scmp.eq.s32.totalorder %s31, 3
      %p166 = por %p164, %p165
      %p167 = scmp.ne.s32.totalorder %s158, %s159
      %p168 = scmp.eq.s32.totalorder %s31, 0
      %p169 = por %p167, %p168
      %p170 = scmp.ne.s32.totalorder %s158, %s159
      %p171 = scmp.eq.s32.totalorder %s32, 3
      %p172 = por %p170, %p171
      %p174 = scmp.ne.s32.totalorder %s159, %s173
      %p175 = scmp.eq.s32.totalorder %s32, 0
      %p176 = por %p174, %p175
      %s178 = sadd.s32 %s177, 1
      %p181 = scmp.eq.s32.totalorder %s26, 3
      %p182 = scmp.ne.s32.totalorder %s177, %s179
      %p183 = scmp.eq.s32.totalorder %s26, 0
      %p184 = por %p182, %p183
      %p185 = scmp.ne.s32.totalorder %s177, %s179
      %p186 = scmp.eq.s32.totalorder %s31, 3
      %p187 = por %p185, %p186
      %p188 = scmp.ne.s32.totalorder %s179, %s180
      %p189 = scmp.eq.s32.totalorder %s31, 0
      %p190 = por %p188, %p189
      %p191 = scmp.ne.s32.totalorder %s179, %s180
      %p192 = scmp.eq.s32.totalorder %s32, 3
      %p193 = por %p191, %p192
      %p195 = scmp.ne.s32.totalorder %s180, %s194
      %p196 = scmp.eq.s32.totalorder %s32, 0
      %p197 = por %p195, %p196
      %s199 = sadd.s32 %s198, 1
      %p202 = scmp.eq.s32.totalorder %s26, 3
      %p203 = scmp.ne.s32.totalorder %s198, %s200
      %p204 = scmp.eq.s32.totalorder %s26, 0
      %p205 = por %p203, %p204
      %p206 = scmp.ne.s32.totalorder %s198, %s200
      %p207 = scmp.eq.s32.totalorder %s31, 3
      %p208 = por %p206, %p207
      %p209 = scmp.ne.s32.totalorder %s200, %s201
      %p210 = scmp.eq.s32.totalorder %s31, 0
      %p211 = por %p209, %p210
      %p212 = scmp.ne.s32.totalorder %s200, %s201
      %p213 = scmp.eq.s32.totalorder %s32, 3
      %p214 = por %p212, %p213
      %p216 = scmp.ne.s32.totalorder %s201, %s215
      %p217 = scmp.eq.s32.totalorder %s32, 0
      %p218 = por %p216, %p217
      %s220 = sadd.s32 %s219, 1
      %p223 = scmp.eq.s32.totalorder %s26, 3
      %p224 = scmp.ne.s32.totalorder %s219, %s221
      %p225 = scmp.eq.s32.totalorder %s26, 0
      %p226 = por %p224, %p225
      %p227 = scmp.ne.s32.totalorder %s219, %s221
      %p228 = scmp.eq.s32.totalorder %s31, 3
      %p229 = por %p227, %p228
      %p230 = scmp.ne.s32.totalorder %s221, %s222
      %p231 = scmp.eq.s32.totalorder %s31, 0
      %p232 = por %p230, %p231
      %p233 = scmp.ne.s32.totalorder %s221, %s222
      %p234 = scmp.eq.s32.totalorder %s32, 3
      %p235 = por %p233, %p234
      %p237 = scmp.ne.s32.totalorder %s222, %s236
      %p238 = scmp.eq.s32.totalorder %s32, 0
      %p239 = por %p237, %p238
      %s241 = sadd.s32 %s240, 1
      %p244 = scmp.eq.s32.totalorder %s26, 3
      %p245 = scmp.ne.s32.totalorder %s240, %s242
      %p246 = scmp.eq.s32.totalorder %s26, 0
      %p247 = por %p245, %p246
      %p248 = scmp.ne.s32.totalorder %s240, %s242
      %p249 = scmp.eq.s32.totalorder %s31, 3
      %p250 = por %p248, %p249
      %p251 = scmp.ne.s32.totalorder %s242, %s243
      %p252 = scmp.eq.s32.totalorder %s31, 0
      %p253 = por %p251, %p252
      %p254 = scmp.ne.s32.totalorder %s242, %s243
      %p255 = scmp.eq.s32.totalorder %s32, 3
      %p256 = por %p254, %p255
      %p258 = scmp.ne.s32.totalorder %s243, %s257
      %p259 = scmp.eq.s32.totalorder %s32, 0
      %p260 = por %p258, %p259
      %s261 = ssub.s32 %s33, %s45
      %s262 = ssub.s32 %s34, %s41
      %s263 = sor.u32 %s261, %s262
      %p264 = scmp.eq.s32.totalorder %s263, 0
      %s266 = sadd.s32 %s265, 1
      %s267 = scalar_select %p264, %s265, %s266
      %p270 = pneg %p264
      %p271 = scmp.eq.s32.totalorder %s26, 3
      %p272 = por %p270, %p271
      %p273 = scmp.ne.s32.totalorder %s265, %s268
      %p274 = scmp.eq.s32.totalorder %s26, 0
      %p275 = por %p273, %p274
      %p276 = scmp.ne.s32.totalorder %s265, %s268
      %p277 = scmp.eq.s32.totalorder %s31, 3
      %p278 = por %p276, %p277
      %p279 = scmp.ne.s32.totalorder %s268, %s269
      %p280 = scmp.eq.s32.totalorder %s31, 0
      %p281 = por %p279, %p280
      %p282 = scmp.ne.s32.totalorder %s268, %s269
      %p283 = scmp.eq.s32.totalorder %s32, 3
      %p284 = por %p282, %p283
      %p286 = scmp.ne.s32.totalorder %s269, %s285
      %p287 = scmp.eq.s32.totalorder %s32, 0
      %p288 = por %p286, %p287
      %p289 = scmp.le.s32.totalorder 1, %s26
      %p290 = scmp.lt.s32.totalorder %s26, 5
      %p291 = pnand %p289, %p290
      %p292 = pneg %p291
      // Predicated region
      $region9: #{tpu_custom_call.1} parent=5 // pred_check
        _
      $region10: #{tpu_custom_call.1} parent=5 // pred_check_branch
        %294 = sbr.rel (%p291) target = $region12
      $region11: #{tpu_custom_call.1} parent=5 // pred_region
        %s295 = ssub.s32 %s26, 1
        // Predicated region
        $region13: #{tpu_custom_call.1} parent=11 // pred_check
          %p296 = pneg %p85
        $region14: #{tpu_custom_call.1} parent=11 // pred_check_branch
          %298 = sbr.rel (%p296) target = $region16
        $region15: #{tpu_custom_call.1} parent=11 // pred_region
          %300 = vsyncadd [#allocation7], 0
          %s301 = sshll.u32 %s1, 4
          %s302 = int_to_ptr.hbm [resolvable:$true] %s301
          %s303 = sshll.u32 [#allocation6], 4
          %s304 = int_to_ptr.vmem [resolvable:$true] %s303
          %309 = dma.hbm_to_vmem [thread:$0]  %s302, 4096, %s304, [#allocation7], 64, 64, 4
        $region16: #{tpu_custom_call.1} parent=11 // pred_fallthru
          _
        // Predicated region
        $region17: #{tpu_custom_call.1} parent=11 // pred_check
          %p310 = pneg %p106
        $region18: #{tpu_custom_call.1} parent=11 // pred_check_branch
          %312 = sbr.rel (%p310) target = $region20
        $region19: #{tpu_custom_call.1} parent=11 // pred_region
          %314 = vsyncadd [#allocation7], 0
          %s316 = sshll.u32 %s2, 4
          %s317 = int_to_ptr.hbm [resolvable:$true] %s316
          %s318 = sshll.u32 [#allocation8], 4
          %s319 = int_to_ptr.vmem [resolvable:$true] %s318
          %321 = dma.hbm_to_vmem [thread:$0]  %s317, 16, %s319, [#allocation7]
        $region20: #{tpu_custom_call.1} parent=11 // pred_fallthru
          _
        // Predicated region
        $region21: #{tpu_custom_call.1} parent=11 // pred_check
          %p322 = pneg %p127
        $region22: #{tpu_custom_call.1} parent=11 // pred_check_branch
          %324 = sbr.rel (%p322) target = $region24
        $region23: #{tpu_custom_call.1} parent=11 // pred_region
          %326 = vsyncadd [#allocation10], 0
          %s328 = sshll.u32 %s3, 4
          %s329 = int_to_ptr.hbm [resolvable:$true] %s328
          %s330 = sshll.u32 [#allocation9], 4
          %s331 = int_to_ptr.vmem [resolvable:$true] %s330
          %333 = dma.hbm_to_vmem [thread:$0]  %s329, 16, %s331, [#allocation10]
        $region24: #{tpu_custom_call.1} parent=11 // pred_fallthru
          _
        // Predicated region
        $region25: #{tpu_custom_call.1} parent=11 // pred_check
          %p334 = pneg %p148
        $region26: #{tpu_custom_call.1} parent=11 // pred_check_branch
          %336 = sbr.rel (%p334) target = $region28
        $region27: #{tpu_custom_call.1} parent=11 // pred_region
          %338 = vsyncadd [#allocation10], 0
          %s339 = sshll.u32 %s4, 4
          %s340 = int_to_ptr.hbm [resolvable:$true] %s339
          %s341 = sshll.u32 [#allocation11], 4
          %s342 = int_to_ptr.vmem [resolvable:$true] %s341
          %347 = dma.hbm_to_vmem [thread:$0]  %s340, 9216, %s342, [#allocation10], 64, 64, 4
        $region28: #{tpu_custom_call.1} parent=11 // pred_fallthru
          _
        // Predicated region
        $region29: #{tpu_custom_call.1} parent=11 // pred_check
          %p348 = pneg %p169
        $region30: #{tpu_custom_call.1} parent=11 // pred_check_branch
          %350 = sbr.rel (%p348) target = $region32
        $region31: #{tpu_custom_call.1} parent=11 // pred_region
          %352 = vsyncadd [#allocation13], 0
          %s354 = sshll.u32 %s5, 4
          %s355 = int_to_ptr.hbm [resolvable:$true] %s354
          %s356 = sshll.u32 [#allocation12], 4
          %s357 = int_to_ptr.vmem [resolvable:$true] %s356
          %359 = dma.hbm_to_vmem [thread:$0]  %s355, 16, %s357, [#allocation13]
        $region32: #{tpu_custom_call.1} parent=11 // pred_fallthru
          _
        // Predicated region
        $region33: #{tpu_custom_call.1} parent=11 // pred_check
          %p360 = pneg %p190
        $region34: #{tpu_custom_call.1} parent=11 // pred_check_branch
          %362 = sbr.rel (%p360) target = $region36
        $region35: #{tpu_custom_call.1} parent=11 // pred_region
          %364 = vsyncadd [#allocation13], 0
          %s366 = sshll.u32 %s6, 4
          %s367 = int_to_ptr.hbm [resolvable:$true] %s366
          %s368 = sshll.u32 [#allocation14], 4
          %s369 = int_to_ptr.vmem [resolvable:$true] %s368
          %371 = dma.hbm_to_vmem [thread:$0]  %s367, 16, %s369, [#allocation13]
        $region36: #{tpu_custom_call.1} parent=11 // pred_fallthru
          _
        // Predicated region
        $region37: #{tpu_custom_call.1} parent=11 // pred_check
          %p372 = pneg %p211
        $region38: #{tpu_custom_call.1} parent=11 // pred_check_branch
          %374 = sbr.rel (%p372) target = $region40
        $region39: #{tpu_custom_call.1} parent=11 // pred_region
          %376 = vsyncadd [#allocation16], 0
          %s377 = sshll.u32 %s7, 4
          %s378 = int_to_ptr.hbm [resolvable:$true] %s377
          %s379 = sshll.u32 [#allocation15], 4
          %s380 = int_to_ptr.vmem [resolvable:$true] %s379
          %385 = dma.hbm_to_vmem [thread:$0]  %s378, 4096, %s380, [#allocation16], 256, 256, 16
        $region40: #{tpu_custom_call.1} parent=11 // pred_fallthru
          _
        // Predicated region
        $region41: #{tpu_custom_call.1} parent=11 // pred_check
          %p386 = pneg %p232
        $region42: #{tpu_custom_call.1} parent=11 // pred_check_branch
          %388 = sbr.rel (%p386) target = $region44
        $region43: #{tpu_custom_call.1} parent=11 // pred_region
          _
        $region44: #{tpu_custom_call.1} parent=11 // pred_fallthru
          _
        // Predicated region
        $region45: #{tpu_custom_call.1} parent=11 // pred_check
          %p389 = pneg %p253
        $region46: #{tpu_custom_call.1} parent=11 // pred_check_branch
          %391 = sbr.rel (%p389) target = $region48
        $region47: #{tpu_custom_call.1} parent=11 // pred_region
          _
        $region48: #{tpu_custom_call.1} parent=11 // pred_fallthru
          _
      $region12: #{tpu_custom_call.1} parent=5 // pred_fallthru
        _
      %p392 = scmp.lt.s32.totalorder %s26, 4
      // Predicated region
      $region49: #{tpu_custom_call.1} parent=5 // pred_check
        %p393 = pneg %p392
      $region50: #{tpu_custom_call.1} parent=5 // pred_check_branch
        %395 = sbr.rel (%p393) target = $region52
      $region51: #{tpu_custom_call.1} parent=5 // pred_region
        // Predicated region
        $region53: #{tpu_custom_call.1} parent=51 // pred_check
          %p396 = pneg %p58
        $region54: #{tpu_custom_call.1} parent=51 // pred_check_branch
          %398 = sbr.rel (%p396) target = $region56
        $region55: #{tpu_custom_call.1} parent=51 // pred_region
          %s399 = sand.u32 %s48, 1
          %s400 = scalar_lea.sflag [#allocation4], %s399
          %s401 = sand.u32 %s48, 1
          %s402 = smul.addr %s401, 512
          %s403 = scalar_lea.vmem [#allocation3], %s402
          %405 = vsyncadd %s400, 0
          %s406 = smul.addr %s33, 128
          %s407 = smul.addr %s406, 4
          %s408 = scalar_lea.hbm %s0, %s407
          %s409 = sshll.u32 %s408, 4
          %s410 = int_to_ptr.hbm [resolvable:$true] %s409
          %s411 = sshll.u32 %s403, 4
          %s412 = int_to_ptr.vmem [resolvable:$true] %s411
          %417 = dma.hbm_to_vmem [thread:$0]  %s410, 8192, %s412, %s400, 256, 256, 16
        $region56: #{tpu_custom_call.1} parent=51 // pred_fallthru
          _
      $region52: #{tpu_custom_call.1} parent=5 // pred_fallthru
        _
      %p418 = scmp.le.s32.totalorder 1, %s26
      %p419 = scmp.lt.s32.totalorder %s26, 5
      %p420 = pnand %p418, %p419
      %p421 = pneg %p420
      // Predicated region
      $region57: #{tpu_custom_call.1} parent=5 // pred_check
        _
      $region58: #{tpu_custom_call.1} parent=5 // pred_check_branch
        %423 = sbr.rel (%p420) target = $region60
      $region59: #{tpu_custom_call.1} parent=5 // pred_region
        %s424 = ssub.s32 %s26, 1
        %s425 = sand.u32 %s51, 1
        %s426 = scalar_lea.sflag [#allocation4], %s425
        %s427 = sand.u32 %s51, 1
        %s428 = smul.addr %s427, 512
        %s429 = scalar_lea.vmem [#allocation3], %s428
        // Predicated region
        $region61: #{tpu_custom_call.1} parent=59 // pred_check
          %p430 = pneg %p64
        $region62: #{tpu_custom_call.1} parent=59 // pred_check_branch
          %432 = sbr.rel (%p430) target = $region64
        $region63: #{tpu_custom_call.1} parent=59 // pred_region
          %434 = dma.done %s426, 8192
        $region64: #{tpu_custom_call.1} parent=59 // pred_fallthru
          _
        // Predicated region
        $region65: #{tpu_custom_call.1} parent=59 // pred_check
          %p435 = pneg %p85
        $region66: #{tpu_custom_call.1} parent=59 // pred_check_branch
          %437 = sbr.rel (%p435) target = $region68
        $region67: #{tpu_custom_call.1} parent=59 // pred_region
          %439 = dma.done [#allocation7], 4096
        $region68: #{tpu_custom_call.1} parent=59 // pred_fallthru
          _
        // Predicated region
        $region69: #{tpu_custom_call.1} parent=59 // pred_check
          %p440 = pneg %p106
        $region70: #{tpu_custom_call.1} parent=59 // pred_check_branch
          %442 = sbr.rel (%p440) target = $region72
        $region71: #{tpu_custom_call.1} parent=59 // pred_region
          %444 = dma.done [#allocation7], 16
        $region72: #{tpu_custom_call.1} parent=59 // pred_fallthru
          _
        // Predicated region
        $region73: #{tpu_custom_call.1} parent=59 // pred_check
          %p445 = pneg %p127
        $region74: #{tpu_custom_call.1} parent=59 // pred_check_branch
          %447 = sbr.rel (%p445) target = $region76
        $region75: #{tpu_custom_call.1} parent=59 // pred_region
          %449 = dma.done [#allocation10], 16
        $region76: #{tpu_custom_call.1} parent=59 // pred_fallthru
          _
        // Predicated region
        $region77: #{tpu_custom_call.1} parent=59 // pred_check
          %p450 = pneg %p148
        $region78: #{tpu_custom_call.1} parent=59 // pred_check_branch
          %452 = sbr.rel (%p450) target = $region80
        $region79: #{tpu_custom_call.1} parent=59 // pred_region
          %454 = dma.done [#allocation10], 9216
        $region80: #{tpu_custom_call.1} parent=59 // pred_fallthru
          _
        // Predicated region
        $region81: #{tpu_custom_call.1} parent=59 // pred_check
          %p455 = pneg %p169
        $region82: #{tpu_custom_call.1} parent=59 // pred_check_branch
          %457 = sbr.rel (%p455) target = $region84
        $region83: #{tpu_custom_call.1} parent=59 // pred_region
          %459 = dma.done [#allocation13], 16
        $region84: #{tpu_custom_call.1} parent=59 // pred_fallthru
          _
        // Predicated region
        $region85: #{tpu_custom_call.1} parent=59 // pred_check
          %p460 = pneg %p190
        $region86: #{tpu_custom_call.1} parent=59 // pred_check_branch
          %462 = sbr.rel (%p460) target = $region88
        $region87: #{tpu_custom_call.1} parent=59 // pred_region
          %464 = dma.done [#allocation13], 16
        $region88: #{tpu_custom_call.1} parent=59 // pred_fallthru
          _
        // Predicated region
        $region89: #{tpu_custom_call.1} parent=59 // pred_check
          %p465 = pneg %p211
        $region90: #{tpu_custom_call.1} parent=59 // pred_check_branch
          %467 = sbr.rel (%p465) target = $region92
        $region91: #{tpu_custom_call.1} parent=59 // pred_region
          %469 = dma.done [#allocation16], 4096
        $region92: #{tpu_custom_call.1} parent=59 // pred_fallthru
          _
        %s470 = sand.u32 %s51, 1
        %s471 = scalar_lea.sflag [#allocation4], %s470
        %s472 = sand.u32 %s51, 1
        %s473 = smul.addr %s472, 512
        %s474 = scalar_lea.vmem [#allocation3], %s473
        %p475 = pneg %p64
        %p476 = pneg %p61
        %p477 = pneg %p85
        %p478 = pneg %p82
        %p479 = pneg %p106
        %p480 = pneg %p103
        %p481 = pneg %p127
        %p482 = pneg %p124
        %p483 = pneg %p148
        %p484 = pneg %p145
        %p485 = pneg %p169
        %p486 = pneg %p166
        %p487 = pneg %p190
        %p488 = pneg %p187
        %p489 = pneg %p211
        %p490 = pneg %p208
        %p491 = pneg %p232
        %p492 = pneg %p229
        %p493 = pneg %p253
        %p494 = pneg %p250
        %p495 = pneg %p281
        %p496 = pneg %p278
        %s497 = sand.u32 %s268, 1
        %s498 = scalar_lea.sflag [#allocation5], %s497
        %s499 = sand.u32 %s268, 1
        %s500 = smul.addr %s499, 256
        %s501 = scalar_lea.vmem [#allocation17], %s500
        %s502 = smul.u32 8, %s36
        %s503 = smul.u32 %s36, 8
        %504 = vst [vmem:[#allocation2] sm:$0xff] 0.0
        %505 = vst [vmem:[#allocation2 + $0xa8] sm:$0xff] 0.0
        %s506 = ssub.s32 %s503, 1
        %p507 = scmp.gt.s32.totalorder %s506, 0
        %s508 = scalar_select %p507, %s506, 0
        %p509 = scmp.gt.s32.totalorder %s36, 0
        %s510 = scalar_select %p509, 1, 0
        %s511 = scvt.s32.f32 %s510
        %s512 = smul.u32 %s508, 8
        %s513 = smul.addr %s512, 4
        %s514 = scalar_lea.vmem %s429, %s513 [#allocation3]
        %v515 = vld [vmem:[%s514] sm:$0xff]
        %v516 = vld [vmem:[%s514 + $0x8] sm:$0xff]
        %v517 = vld [vmem:[%s514 + $0x10] sm:$0xff]
        %v518 = vld [vmem:[%s514 + $0x18] sm:$0xff]
        %v519 = vld [vmem:[#allocation6] sm:$0xf]
        %v520 = vld [vmem:[#allocation6 + $0x4] sm:$0xf]
        %v521 = vld [vmem:[#allocation6 + $0x8] sm:$0xf]
        %v522 = vld [vmem:[#allocation6 + $0xc] sm:$0xf]
        %v523 = vld [vmem:[#allocation6 + $0x10] sm:$0xf]
        %v524 = vld [vmem:[#allocation6 + $0x14] sm:$0xf]
        %v525 = vld [vmem:[#allocation6 + $0x18] sm:$0xf]
        %v526 = vld [vmem:[#allocation6 + $0x1c] sm:$0xf]
        %v527 = vld [vmem:[#allocation6 + $0x20] sm:$0xf]
        %v528 = vld [vmem:[#allocation6 + $0x24] sm:$0xf]
        %v529 = vld [vmem:[#allocation6 + $0x28] sm:$0xf]
        %v530 = vld [vmem:[#allocation6 + $0x2c] sm:$0xf]
        %v531 = vld [vmem:[#allocation6 + $0x30] sm:$0xf]
        %v532 = vld [vmem:[#allocation6 + $0x34] sm:$0xf]
        %v533 = vld [vmem:[#allocation6 + $0x38] sm:$0xf]
        %v534 = vld [vmem:[#allocation6 + $0x3c] sm:$0xf]
        %v535 = vld [vmem:[#allocation6 + $0x40] sm:$0xf]
        %v536 = vld [vmem:[#allocation6 + $0x44] sm:$0xf]
        %v537 = vld [vmem:[#allocation6 + $0x48] sm:$0xf]
        %v538 = vld [vmem:[#allocation6 + $0x4c] sm:$0xf]
        %v539 = vld [vmem:[#allocation6 + $0x50] sm:$0xf]
        %v540 = vld [vmem:[#allocation6 + $0x54] sm:$0xf]
        %v541 = vld [vmem:[#allocation6 + $0x58] sm:$0xf]
        %v542 = vld [vmem:[#allocation6 + $0x5c] sm:$0xf]
        %v543 = vld [vmem:[#allocation6 + $0x60] sm:$0xf]
        %v544 = vld [vmem:[#allocation6 + $0x64] sm:$0xf]
        %v545 = vld [vmem:[#allocation6 + $0x68] sm:$0xf]
        %v546 = vld [vmem:[#allocation6 + $0x6c] sm:$0xf]
        %v547 = vld [vmem:[#allocation6 + $0x70] sm:$0xf]
        %v548 = vld [vmem:[#allocation6 + $0x74] sm:$0xf]
        %v549 = vld [vmem:[#allocation6 + $0x78] sm:$0xf]
        %v550 = vld [vmem:[#allocation6 + $0x7c] sm:$0xf]
        %v551 = vld [vmem:[#allocation6 + $0x80] sm:$0xf]
        %v552 = vld [vmem:[#allocation6 + $0x84] sm:$0xf]
        %v553 = vld [vmem:[#allocation6 + $0x88] sm:$0xf]
        %v554 = vld [vmem:[#allocation6 + $0x8c] sm:$0xf]
        %v555 = vld [vmem:[#allocation6 + $0x90] sm:$0xf]
        %v556 = vld [vmem:[#allocation6 + $0x94] sm:$0xf]
        %v557 = vld [vmem:[#allocation6 + $0x98] sm:$0xf]
        %v558 = vld [vmem:[#allocation6 + $0x9c] sm:$0xf]
        %v559 = vld [vmem:[#allocation6 + $0xa0] sm:$0xf]
        %v560 = vld [vmem:[#allocation6 + $0xa4] sm:$0xf]
        %v561 = vld [vmem:[#allocation6 + $0xa8] sm:$0xf]
        %v562 = vld [vmem:[#allocation6 + $0xac] sm:$0xf]
        %v563 = vld [vmem:[#allocation6 + $0xb0] sm:$0xf]
        %v564 = vld [vmem:[#allocation6 + $0xb4] sm:$0xf]
        %v565 = vld [vmem:[#allocation6 + $0xb8] sm:$0xf]
        %v566 = vld [vmem:[#allocation6 + $0xbc] sm:$0xf]
        %v567 = vld [vmem:[#allocation6 + $0xc0] sm:$0xf]
        %v568 = vld [vmem:[#allocation6 + $0xc4] sm:$0xf]
        %v569 = vld [vmem:[#allocation6 + $0xc8] sm:$0xf]
        %v570 = vld [vmem:[#allocation6 + $0xcc] sm:$0xf]
        %v571 = vld [vmem:[#allocation6 + $0xd0] sm:$0xf]
        %v572 = vld [vmem:[#allocation6 + $0xd4] sm:$0xf]
        %v573 = vld [vmem:[#allocation6 + $0xd8] sm:$0xf]
        %v574 = vld [vmem:[#allocation6 + $0xdc] sm:$0xf]
        %v575 = vld [vmem:[#allocation6 + $0xe0] sm:$0xf]
        %v576 = vld [vmem:[#allocation6 + $0xe4] sm:$0xf]
        %v577 = vld [vmem:[#allocation6 + $0xe8] sm:$0xf]
        %v578 = vld [vmem:[#allocation6 + $0xec] sm:$0xf]
        %v579 = vld [vmem:[#allocation6 + $0xf0] sm:$0xf]
        %v580 = vld [vmem:[#allocation6 + $0xf4] sm:$0xf]
        %v581 = vld [vmem:[#allocation6 + $0xf8] sm:$0xf]
        %v582 = vld [vmem:[#allocation6 + $0xfc] sm:$0xf]
        %v587 = vunpack.c.l.b16 %v515
        %v588 = vunpack.c.h.b16 %v515
        %v589 = vunpack.c.l.b16 %v516
        %v590 = vunpack.c.h.b16 %v516
        %v591 = vunpack.c.l.b16 %v517
        %v592 = vunpack.c.h.b16 %v517
        %v593 = vunpack.c.l.b16 %v518
        %v594 = vunpack.c.h.b16 %v518
        %v595 = vpack.c.b16 %v591, %v587
        %v596 = vpack.c.b16 %v592, %v588
        %v597 = vpack.c.b16 %v593, %v589
        %v598 = vpack.c.b16 %v594, %v590
        %v667 = vunpack.c.l.b16 %v519
        %v668 = vunpack.c.l.b16 %v520
        %v669 = vunpack.c.l.b16 %v521
        %v670 = vunpack.c.l.b16 %v522
        %v671 = vunpack.c.l.b16 %v523
        %v672 = vunpack.c.l.b16 %v524
        %v673 = vunpack.c.l.b16 %v525
        %v674 = vunpack.c.l.b16 %v526
        %v675 = vunpack.c.l.b16 %v527
        %v676 = vunpack.c.l.b16 %v528
        %v677 = vunpack.c.l.b16 %v529
        %v678 = vunpack.c.l.b16 %v530
        %v679 = vunpack.c.l.b16 %v531
        %v680 = vunpack.c.l.b16 %v532
        %v681 = vunpack.c.l.b16 %v533
        %v682 = vunpack.c.l.b16 %v534
        %v683 = vunpack.c.l.b16 %v535
        %v684 = vunpack.c.l.b16 %v536
        %v685 = vunpack.c.l.b16 %v537
        %v686 = vunpack.c.l.b16 %v538
        %v687 = vunpack.c.l.b16 %v539
        %v688 = vunpack.c.l.b16 %v540
        %v689 = vunpack.c.l.b16 %v541
        %v690 = vunpack.c.l.b16 %v542
        %v691 = vunpack.c.l.b16 %v543
        %v692 = vunpack.c.l.b16 %v544
        %v693 = vunpack.c.l.b16 %v545
        %v694 = vunpack.c.l.b16 %v546
        %v695 = vunpack.c.l.b16 %v547
        %v696 = vunpack.c.l.b16 %v548
        %v697 = vunpack.c.l.b16 %v549
        %v698 = vunpack.c.l.b16 %v550
        %v699 = vunpack.c.l.b16 %v551
        %v700 = vunpack.c.l.b16 %v552
        %v701 = vunpack.c.l.b16 %v553
        %v702 = vunpack.c.l.b16 %v554
        %v703 = vunpack.c.l.b16 %v555
        %v704 = vunpack.c.l.b16 %v556
        %v705 = vunpack.c.l.b16 %v557
        %v706 = vunpack.c.l.b16 %v558
        %v707 = vunpack.c.l.b16 %v559
        %v708 = vunpack.c.l.b16 %v560
        %v709 = vunpack.c.l.b16 %v561
        %v710 = vunpack.c.l.b16 %v562
        %v711 = vunpack.c.l.b16 %v563
        %v712 = vunpack.c.l.b16 %v564
        %v713 = vunpack.c.l.b16 %v565
        %v714 = vunpack.c.l.b16 %v566
        %v715 = vunpack.c.l.b16 %v567
        %v716 = vunpack.c.l.b16 %v568
        %v717 = vunpack.c.l.b16 %v569
        %v718 = vunpack.c.l.b16 %v570
        %v719 = vunpack.c.l.b16 %v571
        %v720 = vunpack.c.l.b16 %v572
        %v721 = vunpack.c.l.b16 %v573
        %v722 = vunpack.c.l.b16 %v574
        %v723 = vunpack.c.l.b16 %v575
        %v724 = vunpack.c.l.b16 %v576
        %v725 = vunpack.c.l.b16 %v577
        %v726 = vunpack.c.l.b16 %v578
        %v727 = vunpack.c.l.b16 %v579
        %v728 = vunpack.c.l.b16 %v580
        %v729 = vunpack.c.l.b16 %v581
        %v730 = vunpack.c.l.b16 %v582
        %v731 = vpack.c.b16 %v668, %v667
        %v732 = vpack.c.b16 %v670, %v669
        %v733 = vpack.c.b16 %v672, %v671
        %v734 = vpack.c.b16 %v674, %v673
        %v735 = vpack.c.b16 %v676, %v675
        %v736 = vpack.c.b16 %v678, %v677
        %v737 = vpack.c.b16 %v680, %v679
        %v738 = vpack.c.b16 %v682, %v681
        %v739 = vpack.c.b16 %v684, %v683
        %v740 = vpack.c.b16 %v686, %v685
        %v741 = vpack.c.b16 %v688, %v687
        %v742 = vpack.c.b16 %v690, %v689
        %v743 = vpack.c.b16 %v692, %v691
        %v744 = vpack.c.b16 %v694, %v693
        %v745 = vpack.c.b16 %v696, %v695
        %v746 = vpack.c.b16 %v698, %v697
        %v747 = vpack.c.b16 %v700, %v699
        %v748 = vpack.c.b16 %v702, %v701
        %v749 = vpack.c.b16 %v704, %v703
        %v750 = vpack.c.b16 %v706, %v705
        %v751 = vpack.c.b16 %v708, %v707
        %v752 = vpack.c.b16 %v710, %v709
        %v753 = vpack.c.b16 %v712, %v711
        %v754 = vpack.c.b16 %v714, %v713
        %v755 = vpack.c.b16 %v716, %v715
        %v756 = vpack.c.b16 %v718, %v717
        %v757 = vpack.c.b16 %v720, %v719
        %v758 = vpack.c.b16 %v722, %v721
        %v759 = vpack.c.b16 %v724, %v723
        %v760 = vpack.c.b16 %v726, %v725
        %v761 = vpack.c.b16 %v728, %v727
        %v762 = vpack.c.b16 %v730, %v729
        %795 = vmatpush.bf16.msra.mxu0 %v738
        %796 = vmatpush.bf16.msra.mxu0 %v737
        %797 = vmatpush.bf16.msra.mxu0 %v736
        %798 = vmatpush.bf16.msra.mxu0 %v735
        %799 = vmatpush.bf16.msra.mxu0 %v734
        %800 = vmatpush.bf16.msra.mxu0 %v733
        %801 = vmatpush.bf16.msra.mxu0 %v732
        %802 = vmatpush.bf16.msra.mxu0 %v731
        %803 = vmatmul.bf16.gmra.mxu0 %v595
        %v804 = vpop.f32.mrf.mxu0
        %v805 = vadd.f32 0.0, %v804
        %v806 = vpop.f32.mrf.mxu0
        %v807 = vadd.f32 0.0, %v806
        %808 = vdwg.mxu0
        %809 = vmatpush.bf16.msra.mxu0 %v746
        %810 = vmatpush.bf16.msra.mxu0 %v745
        %811 = vmatpush.bf16.msra.mxu0 %v744
        %812 = vmatpush.bf16.msra.mxu0 %v743
        %813 = vmatpush.bf16.msra.mxu0 %v742
        %814 = vmatpush.bf16.msra.mxu0 %v741
        %815 = vmatpush.bf16.msra.mxu0 %v740
        %816 = vmatpush.bf16.msra.mxu0 %v739
        %817 = vmatmul.bf16.gmra.mxu0 %v596
        %v818 = vpop.f32.mrf.mxu0
        %v819 = vadd.f32 %v805, %v818
        %v820 = vpop.f32.mrf.mxu0
        %v821 = vadd.f32 %v807, %v820
        %822 = vdwg.mxu0
        %823 = vmatpush.bf16.msra.mxu0 %v754
        %824 = vmatpush.bf16.msra.mxu0 %v753
        %825 = vmatpush.bf16.msra.mxu0 %v752
        %826 = vmatpush.bf16.msra.mxu0 %v751
        %827 = vmatpush.bf16.msra.mxu0 %v750
        %828 = vmatpush.bf16.msra.mxu0 %v749
        %829 = vmatpush.bf16.msra.mxu0 %v748
        %830 = vmatpush.bf16.msra.mxu0 %v747
        %831 = vmatmul.bf16.gmra.mxu0 %v597
        %v832 = vpop.f32.mrf.mxu0
        %v833 = vadd.f32 %v819, %v832
        %v834 = vpop.f32.mrf.mxu0
        %v835 = vadd.f32 %v821, %v834
        %836 = vdwg.mxu0
        %837 = vmatpush.bf16.msra.mxu0 %v762
        %838 = vmatpush.bf16.msra.mxu0 %v761
        %839 = vmatpush.bf16.msra.mxu0 %v760
        %840 = vmatpush.bf16.msra.mxu0 %v759
        %841 = vmatpush.bf16.msra.mxu0 %v758
        %842 = vmatpush.bf16.msra.mxu0 %v757
        %843 = vmatpush.bf16.msra.mxu0 %v756
        %844 = vmatpush.bf16.msra.mxu0 %v755
        %845 = vmatmul.bf16.gmra.mxu0 %v598
        %v846 = vpop.f32.mrf.mxu0
        %v847 = vadd.f32 %v833, %v846
        %v848 = vpop.f32.mrf.mxu0
        %v849 = vadd.f32 %v835, %v848
        %850 = vdwg.mxu0
        %v851 = vld [vmem:[#allocation8] sm:$0x1]
        %v853 = vperm.slane %v851, 0
        %v855 = vmul.f32 %v847, %v853
        %v856 = vmul.f32 %v849, %v853
        %v857 = vld [vmem:[#allocation9] sm:$0x1]
        %v859 = vperm.slane %v857, 0
        %v861 = vadd.f32 %v855, %v859
        %v862 = vadd.f32 %v856, %v859
        %v863 = vmax.f32 %v861, 0.0
        %v864 = vmax.f32 %v862, 0.0
        %v865 = vstv %s511
        %v866 = vmul.f32 %v863, %v865
        %v867 = vmul.f32 %v864, %v865
        %868 = vst [vmem:[#allocation2 + $0x8] sm:$0xff] %v866
        %869 = vst [vmem:[#allocation2 + $0x10] sm:$0xff] %v867
        %s870 = smul.u32 %s503, 8
        %s871 = smul.addr %s870, 4
        %s872 = scalar_lea.vmem %s429, %s871 [#allocation3]
        %v873 = vld [vmem:[%s872] sm:$0xff]
        %v874 = vld [vmem:[%s872 + $0x8] sm:$0xff]
        %v875 = vld [vmem:[%s872 + $0x10] sm:$0xff]
        %v876 = vld [vmem:[%s872 + $0x18] sm:$0xff]
        %v877 = vld [vmem:[%s872 + $0x20] sm:$0xff]
        %v878 = vld [vmem:[%s872 + $0x28] sm:$0xff]
        %v879 = vld [vmem:[%s872 + $0x30] sm:$0xff]
        %v880 = vld [vmem:[%s872 + $0x38] sm:$0xff]
        %v881 = vld [vmem:[%s872 + $0x40] sm:$0xff]
        %v882 = vld [vmem:[%s872 + $0x48] sm:$0xff]
        %v883 = vld [vmem:[%s872 + $0x50] sm:$0xff]
        %v884 = vld [vmem:[%s872 + $0x58] sm:$0xff]
        %v885 = vld [vmem:[%s872 + $0x60] sm:$0xff]
        %v886 = vld [vmem:[%s872 + $0x68] sm:$0xff]
        %v887 = vld [vmem:[%s872 + $0x70] sm:$0xff]
        %v888 = vld [vmem:[%s872 + $0x78] sm:$0xff]
        %v889 = vld [vmem:[%s872 + $0x80] sm:$0xff]
        %v890 = vld [vmem:[%s872 + $0x88] sm:$0xff]
        %v891 = vld [vmem:[%s872 + $0x90] sm:$0xff]
        %v892 = vld [vmem:[%s872 + $0x98] sm:$0xff]
        %v893 = vld [vmem:[%s872 + $0xa0] sm:$0xff]
        %v894 = vld [vmem:[%s872 + $0xa8] sm:$0xff]
        %v895 = vld [vmem:[%s872 + $0xb0] sm:$0xff]
        %v896 = vld [vmem:[%s872 + $0xb8] sm:$0xff]
        %v897 = vld [vmem:[%s872 + $0xc0] sm:$0xff]
        %v898 = vld [vmem:[%s872 + $0xc8] sm:$0xff]
        %v899 = vld [vmem:[%s872 + $0xd0] sm:$0xff]
        %v900 = vld [vmem:[%s872 + $0xd8] sm:$0xff]
        %v901 = vld [vmem:[%s872 + $0xe0] sm:$0xff]
        %v902 = vld [vmem:[%s872 + $0xe8] sm:$0xff]
        %v903 = vld [vmem:[%s872 + $0xf0] sm:$0xff]
        %v904 = vld [vmem:[%s872 + $0xf8] sm:$0xff]
        %v905 = vld [vmem:[#allocation6] sm:$0xf]
        %v906 = vld [vmem:[#allocation6 + $0x4] sm:$0xf]
        %v907 = vld [vmem:[#allocation6 + $0x8] sm:$0xf]
        %v908 = vld [vmem:[#allocation6 + $0xc] sm:$0xf]
        %v909 = vld [vmem:[#allocation6 + $0x10] sm:$0xf]
        %v910 = vld [vmem:[#allocation6 + $0x14] sm:$0xf]
        %v911 = vld [vmem:[#allocation6 + $0x18] sm:$0xf]
        %v912 = vld [vmem:[#allocation6 + $0x1c] sm:$0xf]
        %v913 = vld [vmem:[#allocation6 + $0x20] sm:$0xf]
        %v914 = vld [vmem:[#allocation6 + $0x24] sm:$0xf]
        %v915 = vld [vmem:[#allocation6 + $0x28] sm:$0xf]
        %v916 = vld [vmem:[#allocation6 + $0x2c] sm:$0xf]
        %v917 = vld [vmem:[#allocation6 + $0x30] sm:$0xf]
        %v918 = vld [vmem:[#allocation6 + $0x34] sm:$0xf]
        %v919 = vld [vmem:[#allocation6 + $0x38] sm:$0xf]
        %v920 = vld [vmem:[#allocation6 + $0x3c] sm:$0xf]
        %v921 = vld [vmem:[#allocation6 + $0x40] sm:$0xf]
        %v922 = vld [vmem:[#allocation6 + $0x44] sm:$0xf]
        %v923 = vld [vmem:[#allocation6 + $0x48] sm:$0xf]
        %v924 = vld [vmem:[#allocation6 + $0x4c] sm:$0xf]
        %v925 = vld [vmem:[#allocation6 + $0x50] sm:$0xf]
        %v926 = vld [vmem:[#allocation6 + $0x54] sm:$0xf]
        %v927 = vld [vmem:[#allocation6 + $0x58] sm:$0xf]
        %v928 = vld [vmem:[#allocation6 + $0x5c] sm:$0xf]
        %v929 = vld [vmem:[#allocation6 + $0x60] sm:$0xf]
        %v930 = vld [vmem:[#allocation6 + $0x64] sm:$0xf]
        %v931 = vld [vmem:[#allocation6 + $0x68] sm:$0xf]
        %v932 = vld [vmem:[#allocation6 + $0x6c] sm:$0xf]
        %v933 = vld [vmem:[#allocation6 + $0x70] sm:$0xf]
        %v934 = vld [vmem:[#allocation6 + $0x74] sm:$0xf]
        %v935 = vld [vmem:[#allocation6 + $0x78] sm:$0xf]
        %v936 = vld [vmem:[#allocation6 + $0x7c] sm:$0xf]
        %v937 = vld [vmem:[#allocation6 + $0x80] sm:$0xf]
        %v938 = vld [vmem:[#allocation6 + $0x84] sm:$0xf]
        %v939 = vld [vmem:[#allocation6 + $0x88] sm:$0xf]
        %v940 = vld [vmem:[#allocation6 + $0x8c] sm:$0xf]
        %v941 = vld [vmem:[#allocation6 + $0x90] sm:$0xf]
        %v942 = vld [vmem:[#allocation6 + $0x94] sm:$0xf]
        %v943 = vld [vmem:[#allocation6 + $0x98] sm:$0xf]
        %v944 = vld [vmem:[#allocation6 + $0x9c] sm:$0xf]
        %v945 = vld [vmem:[#allocation6 + $0xa0] sm:$0xf]
        %v946 = vld [vmem:[#allocation6 + $0xa4] sm:$0xf]
        %v947 = vld [vmem:[#allocation6 + $0xa8] sm:$0xf]
        %v948 = vld [vmem:[#allocation6 + $0xac] sm:$0xf]
        %v949 = vld [vmem:[#allocation6 + $0xb0] sm:$0xf]
        %v950 = vld [vmem:[#allocation6 + $0xb4] sm:$0xf]
        %v951 = vld [vmem:[#allocation6 + $0xb8] sm:$0xf]
        %v952 = vld [vmem:[#allocation6 + $0xbc] sm:$0xf]
        %v953 = vld [vmem:[#allocation6 + $0xc0] sm:$0xf]
        %v954 = vld [vmem:[#allocation6 + $0xc4] sm:$0xf]
        %v955 = vld [vmem:[#allocation6 + $0xc8] sm:$0xf]
        %v956 = vld [vmem:[#allocation6 + $0xcc] sm:$0xf]
        %v957 = vld [vmem:[#allocation6 + $0xd0] sm:$0xf]
        %v958 = vld [vmem:[#allocation6 + $0xd4] sm:$0xf]
        %v959 = vld [vmem:[#allocation6 + $0xd8] sm:$0xf]
        %v960 = vld [vmem:[#allocation6 + $0xdc] sm:$0xf]
        %v961 = vld [vmem:[#allocation6 + $0xe0] sm:$0xf]
        %v962 = vld [vmem:[#allocation6 + $0xe4] sm:$0xf]
        %v963 = vld [vmem:[#allocation6 + $0xe8] sm:$0xf]
        %v964 = vld [vmem:[#allocation6 + $0xec] sm:$0xf]
        %v965 = vld [vmem:[#allocation6 + $0xf0] sm:$0xf]
        %v966 = vld [vmem:[#allocation6 + $0xf4] sm:$0xf]
        %v967 = vld [vmem:[#allocation6 + $0xf8] sm:$0xf]
        %v968 = vld [vmem:[#allocation6 + $0xfc] sm:$0xf]
        %v1001 = vunpack.c.l.b16 %v873
        %v1002 = vunpack.c.h.b16 %v873
        %v1003 = vunpack.c.l.b16 %v874
        %v1004 = vunpack.c.h.b16 %v874
        %v1005 = vunpack.c.l.b16 %v875
        %v1006 = vunpack.c.h.b16 %v875
        %v1007 = vunpack.c.l.b16 %v876
        %v1008 = vunpack.c.h.b16 %v876
        %v1009 = vunpack.c.l.b16 %v877
        %v1010 = vunpack.c.h.b16 %v877
        %v1011 = vunpack.c.l.b16 %v878
        %v1012 = vunpack.c.h.b16 %v878
        %v1013 = vunpack.c.l.b16 %v879
        %v1014 = vunpack.c.h.b16 %v879
        %v1015 = vunpack.c.l.b16 %v880
        %v1016 = vunpack.c.h.b16 %v880
        %v1017 = vunpack.c.l.b16 %v881
        %v1018 = vunpack.c.h.b16 %v881
        %v1019 = vunpack.c.l.b16 %v882
        %v1020 = vunpack.c.h.b16 %v882
        %v1021 = vunpack.c.l.b16 %v883
        %v1022 = vunpack.c.h.b16 %v883
        %v1023 = vunpack.c.l.b16 %v884
        %v1024 = vunpack.c.h.b16 %v884
        %v1025 = vunpack.c.l.b16 %v885
        %v1026 = vunpack.c.h.b16 %v885
        %v1027 = vunpack.c.l.b16 %v886
        %v1028 = vunpack.c.h.b16 %v886
        %v1029 = vunpack.c.l.b16 %v887
        %v1030 = vunpack.c.h.b16 %v887
        %v1031 = vunpack.c.l.b16 %v888
        %v1032 = vunpack.c.h.b16 %v888
        %v1033 = vunpack.c.l.b16 %v889
        %v1034 = vunpack.c.h.b16 %v889
        %v1035 = vunpack.c.l.b16 %v890
        %v1036 = vunpack.c.h.b16 %v890
        %v1037 = vunpack.c.l.b16 %v891
        %v1038 = vunpack.c.h.b16 %v891
        %v1039 = vunpack.c.l.b16 %v892
        %v1040 = vunpack.c.h.b16 %v892
        %v1041 = vunpack.c.l.b16 %v893
        %v1042 = vunpack.c.h.b16 %v893
        %v1043 = vunpack.c.l.b16 %v894
        %v1044 = vunpack.c.h.b16 %v894
        %v1045 = vunpack.c.l.b16 %v895
        %v1046 = vunpack.c.h.b16 %v895
        %v1047 = vunpack.c.l.b16 %v896
        %v1048 = vunpack.c.h.b16 %v896
        %v1049 = vunpack.c.l.b16 %v897
        %v1050 = vunpack.c.h.b16 %v897
        %v1051 = vunpack.c.l.b16 %v898
        %v1052 = vunpack.c.h.b16 %v898
        %v1053 = vunpack.c.l.b16 %v899
        %v1054 = vunpack.c.h.b16 %v899
        %v1055 = vunpack.c.l.b16 %v900
        %v1056 = vunpack.c.h.b16 %v900
        %v1057 = vunpack.c.l.b16 %v901
        %v1058 = vunpack.c.h.b16 %v901
        %v1059 = vunpack.c.l.b16 %v902
        %v1060 = vunpack.c.h.b16 %v902
        %v1061 = vunpack.c.l.b16 %v903
        %v1062 = vunpack.c.h.b16 %v903
        %v1063 = vunpack.c.l.b16 %v904
        %v1064 = vunpack.c.h.b16 %v904
        %v1065 = vpack.c.b16 %v1005, %v1001
        %v1066 = vpack.c.b16 %v1006, %v1002
        %v1067 = vpack.c.b16 %v1007, %v1003
        %v1068 = vpack.c.b16 %v1008, %v1004
        %v1069 = vpack.c.b16 %v1013, %v1009
        %v1070 = vpack.c.b16 %v1014, %v1010
        %v1071 = vpack.c.b16 %v1015, %v1011
        %v1072 = vpack.c.b16 %v1016, %v1012
        %v1073 = vpack.c.b16 %v1021, %v1017
        %v1074 = vpack.c.b16 %v1022, %v1018
        %v1075 = vpack.c.b16 %v1023, %v1019
        %v1076 = vpack.c.b16 %v1024, %v1020
        %v1077 = vpack.c.b16 %v1029, %v1025
        %v1078 = vpack.c.b16 %v1030, %v1026
        %v1079 = vpack.c.b16 %v1031, %v1027
        %v1080 = vpack.c.b16 %v1032, %v1028
        %v1081 = vpack.c.b16 %v1037, %v1033
        %v1082 = vpack.c.b16 %v1038, %v1034
        %v1083 = vpack.c.b16 %v1039, %v1035
        %v1084 = vpack.c.b16 %v1040, %v1036
        %v1085 = vpack.c.b16 %v1045, %v1041
        %v1086 = vpack.c.b16 %v1046, %v1042
        %v1087 = vpack.c.b16 %v1047, %v1043
        %v1088 = vpack.c.b16 %v1048, %v1044
        %v1089 = vpack.c.b16 %v1053, %v1049
        %v1090 = vpack.c.b16 %v1054, %v1050
        %v1091 = vpack.c.b16 %v1055, %v1051
        %v1092 = vpack.c.b16 %v1056, %v1052
        %v1093 = vpack.c.b16 %v1061, %v1057
        %v1094 = vpack.c.b16 %v1062, %v1058
        %v1095 = vpack.c.b16 %v1063, %v1059
        %v1096 = vpack.c.b16 %v1064, %v1060
        %v1193 = vunpack.c.l.b16 %v905
        %v1194 = vunpack.c.l.b16 %v906
        %v1195 = vunpack.c.l.b16 %v907
        %v1196 = vunpack.c.l.b16 %v908
        %v1197 = vunpack.c.l.b16 %v909
        %v1198 = vunpack.c.l.b16 %v910
        %v1199 = vunpack.c.l.b16 %v911
        %v1200 = vunpack.c.l.b16 %v912
        %v1201 = vunpack.c.l.b16 %v913
        %v1202 = vunpack.c.l.b16 %v914
        %v1203 = vunpack.c.l.b16 %v915
        %v1204 = vunpack.c.l.b16 %v916
        %v1205 = vunpack.c.l.b16 %v917
        %v1206 = vunpack.c.l.b16 %v918
        %v1207 = vunpack.c.l.b16 %v919
        %v1208 = vunpack.c.l.b16 %v920
        %v1209 = vunpack.c.l.b16 %v921
        %v1210 = vunpack.c.l.b16 %v922
        %v1211 = vunpack.c.l.b16 %v923
        %v1212 = vunpack.c.l.b16 %v924
        %v1213 = vunpack.c.l.b16 %v925
        %v1214 = vunpack.c.l.b16 %v926
        %v1215 = vunpack.c.l.b16 %v927
        %v1216 = vunpack.c.l.b16 %v928
        %v1217 = vunpack.c.l.b16 %v929
        %v1218 = vunpack.c.l.b16 %v930
        %v1219 = vunpack.c.l.b16 %v931
        %v1220 = vunpack.c.l.b16 %v932
        %v1221 = vunpack.c.l.b16 %v933
        %v1222 = vunpack.c.l.b16 %v934
        %v1223 = vunpack.c.l.b16 %v935
        %v1224 = vunpack.c.l.b16 %v936
        %v1225 = vunpack.c.l.b16 %v937
        %v1226 = vunpack.c.l.b16 %v938
        %v1227 = vunpack.c.l.b16 %v939
        %v1228 = vunpack.c.l.b16 %v940
        %v1229 = vunpack.c.l.b16 %v941
        %v1230 = vunpack.c.l.b16 %v942
        %v1231 = vunpack.c.l.b16 %v943
        %v1232 = vunpack.c.l.b16 %v944
        %v1233 = vunpack.c.l.b16 %v945
        %v1234 = vunpack.c.l.b16 %v946
        %v1235 = vunpack.c.l.b16 %v947
        %v1236 = vunpack.c.l.b16 %v948
        %v1237 = vunpack.c.l.b16 %v949
        %v1238 = vunpack.c.l.b16 %v950
        %v1239 = vunpack.c.l.b16 %v951
        %v1240 = vunpack.c.l.b16 %v952
        %v1241 = vunpack.c.l.b16 %v953
        %v1242 = vunpack.c.l.b16 %v954
        %v1243 = vunpack.c.l.b16 %v955
        %v1244 = vunpack.c.l.b16 %v956
        %v1245 = vunpack.c.l.b16 %v957
        %v1246 = vunpack.c.l.b16 %v958
        %v1247 = vunpack.c.l.b16 %v959
        %v1248 = vunpack.c.l.b16 %v960
        %v1249 = vunpack.c.l.b16 %v961
        %v1250 = vunpack.c.l.b16 %v962
        %v1251 = vunpack.c.l.b16 %v963
        %v1252 = vunpack.c.l.b16 %v964
        %v1253 = vunpack.c.l.b16 %v965
        %v1254 = vunpack.c.l.b16 %v966
        %v1255 = vunpack.c.l.b16 %v967
        %v1256 = vunpack.c.l.b16 %v968
        %v1257 = vpack.c.b16 %v1194, %v1193
        %v1258 = vpack.c.b16 %v1196, %v1195
        %v1259 = vpack.c.b16 %v1198, %v1197
        %v1260 = vpack.c.b16 %v1200, %v1199
        %v1261 = vpack.c.b16 %v1202, %v1201
        %v1262 = vpack.c.b16 %v1204, %v1203
        %v1263 = vpack.c.b16 %v1206, %v1205
        %v1264 = vpack.c.b16 %v1208, %v1207
        %v1265 = vpack.c.b16 %v1210, %v1209
        %v1266 = vpack.c.b16 %v1212, %v1211
        %v1267 = vpack.c.b16 %v1214, %v1213
        %v1268 = vpack.c.b16 %v1216, %v1215
        %v1269 = vpack.c.b16 %v1218, %v1217
        %v1270 = vpack.c.b16 %v1220, %v1219
        %v1271 = vpack.c.b16 %v1222, %v1221
        %v1272 = vpack.c.b16 %v1224, %v1223
        %v1273 = vpack.c.b16 %v1226, %v1225
        %v1274 = vpack.c.b16 %v1228, %v1227
        %v1275 = vpack.c.b16 %v1230, %v1229
        %v1276 = vpack.c.b16 %v1232, %v1231
        %v1277 = vpack.c.b16 %v1234, %v1233
        %v1278 = vpack.c.b16 %v1236, %v1235
        %v1279 = vpack.c.b16 %v1238, %v1237
        %v1280 = vpack.c.b16 %v1240, %v1239
        %v1281 = vpack.c.b16 %v1242, %v1241
        %v1282 = vpack.c.b16 %v1244, %v1243
        %v1283 = vpack.c.b16 %v1246, %v1245
        %v1284 = vpack.c.b16 %v1248, %v1247
        %v1285 = vpack.c.b16 %v1250, %v1249
        %v1286 = vpack.c.b16 %v1252, %v1251
        %v1287 = vpack.c.b16 %v1254, %v1253
        %v1288 = vpack.c.b16 %v1256, %v1255
        %1321 = vmatpush.bf16.msra.mxu0 %v1264
        %1322 = vmatpush.bf16.msra.mxu0 %v1263
        %1323 = vmatpush.bf16.msra.mxu0 %v1262
        %1324 = vmatpush.bf16.msra.mxu0 %v1261
        %1325 = vmatpush.bf16.msra.mxu0 %v1260
        %1326 = vmatpush.bf16.msra.mxu0 %v1259
        %1327 = vmatpush.bf16.msra.mxu0 %v1258
        %1328 = vmatpush.bf16.msra.mxu0 %v1257
        %1329 = vmatmul.bf16.gmra.mxu0 %v1065
        %v1330 = vpop.f32.mrf.mxu0
        %v1331 = vadd.f32 0.0, %v1330
        %v1332 = vpop.f32.mrf.mxu0
        %v1333 = vadd.f32 0.0, %v1332
        %1334 = vmatmul.bf16.gmra.mxu0 %v1069
        %v1335 = vpop.f32.mrf.mxu0
        %v1336 = vadd.f32 0.0, %v1335
        %v1337 = vpop.f32.mrf.mxu0
        %v1338 = vadd.f32 0.0, %v1337
        %1339 = vmatmul.bf16.gmra.mxu0 %v1073
        %v1340 = vpop.f32.mrf.mxu0
        %v1341 = vadd.f32 0.0, %v1340
        %v1342 = vpop.f32.mrf.mxu0
        %v1343 = vadd.f32 0.0, %v1342
        %1344 = vmatmul.bf16.gmra.mxu0 %v1077
        %v1345 = vpop.f32.mrf.mxu0
        %v1346 = vadd.f32 0.0, %v1345
        %v1347 = vpop.f32.mrf.mxu0
        %v1348 = vadd.f32 0.0, %v1347
        %1349 = vmatmul.bf16.gmra.mxu0 %v1081
        %v1350 = vpop.f32.mrf.mxu0
        %v1351 = vadd.f32 0.0, %v1350
        %v1352 = vpop.f32.mrf.mxu0
        %v1353 = vadd.f32 0.0, %v1352
        %1354 = vmatmul.bf16.gmra.mxu0 %v1085
        %v1355 = vpop.f32.mrf.mxu0
        %v1356 = vadd.f32 0.0, %v1355
        %v1357 = vpop.f32.mrf.mxu0
        %v1358 = vadd.f32 0.0, %v1357
        %1359 = vmatmul.bf16.gmra.mxu0 %v1089
        %v1360 = vpop.f32.mrf.mxu0
        %v1361 = vadd.f32 0.0, %v1360
        %v1362 = vpop.f32.mrf.mxu0
        %v1363 = vadd.f32 0.0, %v1362
        %1364 = vmatmul.bf16.gmra.mxu0 %v1093
        %v1365 = vpop.f32.mrf.mxu0
        %v1366 = vadd.f32 0.0, %v1365
        %v1367 = vpop.f32.mrf.mxu0
        %v1368 = vadd.f32 0.0, %v1367
        %1369 = vdwg.mxu0
        %1370 = vmatpush.bf16.msra.mxu0 %v1272
        %1371 = vmatpush.bf16.msra.mxu0 %v1271
        %1372 = vmatpush.bf16.msra.mxu0 %v1270
        %1373 = vmatpush.bf16.msra.mxu0 %v1269
        %1374 = vmatpush.bf16.msra.mxu0 %v1268
        %1375 = vmatpush.bf16.msra.mxu0 %v1267
        %1376 = vmatpush.bf16.msra.mxu0 %v1266
        %1377 = vmatpush.bf16.msra.mxu0 %v1265
        %1378 = vmatmul.bf16.gmra.mxu0 %v1066
        %v1379 = vpop.f32.mrf.mxu0
        %v1380 = vadd.f32 %v1331, %v1379
        %v1381 = vpop.f32.mrf.mxu0
        %v1382 = vadd.f32 %v1333, %v1381
        %1383 = vmatmul.bf16.gmra.mxu0 %v1070
        %v1384 = vpop.f32.mrf.mxu0
        %v1385 = vadd.f32 %v1336, %v1384
        %v1386 = vpop.f32.mrf.mxu0
        %v1387 = vadd.f32 %v1338, %v1386
        %1388 = vmatmul.bf16.gmra.mxu0 %v1074
        %v1389 = vpop.f32.mrf.mxu0
        %v1390 = vadd.f32 %v1341, %v1389
        %v1391 = vpop.f32.mrf.mxu0
        %v1392 = vadd.f32 %v1343, %v1391
        %1393 = vmatmul.bf16.gmra.mxu0 %v1078
        %v1394 = vpop.f32.mrf.mxu0
        %v1395 = vadd.f32 %v1346, %v1394
        %v1396 = vpop.f32.mrf.mxu0
        %v1397 = vadd.f32 %v1348, %v1396
        %1398 = vmatmul.bf16.gmra.mxu0 %v1082
        %v1399 = vpop.f32.mrf.mxu0
        %v1400 = vadd.f32 %v1351, %v1399
        %v1401 = vpop.f32.mrf.mxu0
        %v1402 = vadd.f32 %v1353, %v1401
        %1403 = vmatmul.bf16.gmra.mxu0 %v1086
        %v1404 = vpop.f32.mrf.mxu0
        %v1405 = vadd.f32 %v1356, %v1404
        %v1406 = vpop.f32.mrf.mxu0
        %v1407 = vadd.f32 %v1358, %v1406
        %1408 = vmatmul.bf16.gmra.mxu0 %v1090
        %v1409 = vpop.f32.mrf.mxu0
        %v1410 = vadd.f32 %v1361, %v1409
        %v1411 = vpop.f32.mrf.mxu0
        %v1412 = vadd.f32 %v1363, %v1411
        %1413 = vmatmul.bf16.gmra.mxu0 %v1094
        %v1414 = vpop.f32.mrf.mxu0
        %v1415 = vadd.f32 %v1366, %v1414
        %v1416 = vpop.f32.mrf.mxu0
        %v1417 = vadd.f32 %v1368, %v1416
        %1418 = vdwg.mxu0
        %1419 = vmatpush.bf16.msra.mxu0 %v1280
        %1420 = vmatpush.bf16.msra.mxu0 %v1279
        %1421 = vmatpush.bf16.msra.mxu0 %v1278
        %1422 = vmatpush.bf16.msra.mxu0 %v1277
        %1423 = vmatpush.bf16.msra.mxu0 %v1276
        %1424 = vmatpush.bf16.msra.mxu0 %v1275
        %1425 = vmatpush.bf16.msra.mxu0 %v1274
        %1426 = vmatpush.bf16.msra.mxu0 %v1273
        %1427 = vmatmul.bf16.gmra.mxu0 %v1067
        %v1428 = vpop.f32.mrf.mxu0
        %v1429 = vadd.f32 %v1380, %v1428
        %v1430 = vpop.f32.mrf.mxu0
        %v1431 = vadd.f32 %v1382, %v1430
        %1432 = vmatmul.bf16.gmra.mxu0 %v1071
        %v1433 = vpop.f32.mrf.mxu0
        %v1434 = vadd.f32 %v1385, %v1433
        %v1435 = vpop.f32.mrf.mxu0
        %v1436 = vadd.f32 %v1387, %v1435
        %1437 = vmatmul.bf16.gmra.mxu0 %v1075
        %v1438 = vpop.f32.mrf.mxu0
        %v1439 = vadd.f32 %v1390, %v1438
        %v1440 = vpop.f32.mrf.mxu0
        %v1441 = vadd.f32 %v1392, %v1440
        %1442 = vmatmul.bf16.gmra.mxu0 %v1079
        %v1443 = vpop.f32.mrf.mxu0
        %v1444 = vadd.f32 %v1395, %v1443
        %v1445 = vpop.f32.mrf.mxu0
        %v1446 = vadd.f32 %v1397, %v1445
        %1447 = vmatmul.bf16.gmra.mxu0 %v1083
        %v1448 = vpop.f32.mrf.mxu0
        %v1449 = vadd.f32 %v1400, %v1448
        %v1450 = vpop.f32.mrf.mxu0
        %v1451 = vadd.f32 %v1402, %v1450
        %1452 = vmatmul.bf16.gmra.mxu0 %v1087
        %v1453 = vpop.f32.mrf.mxu0
        %v1454 = vadd.f32 %v1405, %v1453
        %v1455 = vpop.f32.mrf.mxu0
        %v1456 = vadd.f32 %v1407, %v1455
        %1457 = vmatmul.bf16.gmra.mxu0 %v1091
        %v1458 = vpop.f32.mrf.mxu0
        %v1459 = vadd.f32 %v1410, %v1458
        %v1460 = vpop.f32.mrf.mxu0
        %v1461 = vadd.f32 %v1412, %v1460
        %1462 = vmatmul.bf16.gmra.mxu0 %v1095
        %v1463 = vpop.f32.mrf.mxu0
        %v1464 = vadd.f32 %v1415, %v1463
        %v1465 = vpop.f32.mrf.mxu0
        %v1466 = vadd.f32 %v1417, %v1465
        %1467 = vdwg.mxu0
        %1468 = vmatpush.bf16.msra.mxu0 %v1288
        %1469 = vmatpush.bf16.msra.mxu0 %v1287
        %1470 = vmatpush.bf16.msra.mxu0 %v1286
        %1471 = vmatpush.bf16.msra.mxu0 %v1285
        %1472 = vmatpush.bf16.msra.mxu0 %v1284
        %1473 = vmatpush.bf16.msra.mxu0 %v1283
        %1474 = vmatpush.bf16.msra.mxu0 %v1282
        %1475 = vmatpush.bf16.msra.mxu0 %v1281
        %1476 = vmatmul.bf16.gmra.mxu0 %v1068
        %v1477 = vpop.f32.mrf.mxu0
        %v1478 = vadd.f32 %v1429, %v1477
        %v1479 = vpop.f32.mrf.mxu0
        %v1480 = vadd.f32 %v1431, %v1479
        %1481 = vmatmul.bf16.gmra.mxu0 %v1072
        %v1482 = vpop.f32.mrf.mxu0
        %v1483 = vadd.f32 %v1434, %v1482
        %v1484 = vpop.f32.mrf.mxu0
        %v1485 = vadd.f32 %v1436, %v1484
        %1486 = vmatmul.bf16.gmra.mxu0 %v1076
        %v1487 = vpop.f32.mrf.mxu0
        %v1488 = vadd.f32 %v1439, %v1487
        %v1489 = vpop.f32.mrf.mxu0
        %v1490 = vadd.f32 %v1441, %v1489
        %1491 = vmatmul.bf16.gmra.mxu0 %v1080
        %v1492 = vpop.f32.mrf.mxu0
        %v1493 = vadd.f32 %v1444, %v1492
        %v1494 = vpop.f32.mrf.mxu0
        %v1495 = vadd.f32 %v1446, %v1494
        %1496 = vmatmul.bf16.gmra.mxu0 %v1084
        %v1497 = vpop.f32.mrf.mxu0
        %v1498 = vadd.f32 %v1449, %v1497
        %v1499 = vpop.f32.mrf.mxu0
        %v1500 = vadd.f32 %v1451, %v1499
        %1501 = vmatmul.bf16.gmra.mxu0 %v1088
        %v1502 = vpop.f32.mrf.mxu0
        %v1503 = vadd.f32 %v1454, %v1502
        %v1504 = vpop.f32.mrf.mxu0
        %v1505 = vadd.f32 %v1456, %v1504
        %1506 = vmatmul.bf16.gmra.mxu0 %v1092
        %v1507 = vpop.f32.mrf.mxu0
        %v1508 = vadd.f32 %v1459, %v1507
        %v1509 = vpop.f32.mrf.mxu0
        %v1510 = vadd.f32 %v1461, %v1509
        %1511 = vmatmul.bf16.gmra.mxu0 %v1096
        %v1512 = vpop.f32.mrf.mxu0
        %v1513 = vadd.f32 %v1464, %v1512
        %v1514 = vpop.f32.mrf.mxu0
        %v1515 = vadd.f32 %v1466, %v1514
        %1516 = vdwg.mxu0
        %v1517 = vld [vmem:[#allocation8] sm:$0x1]
        %v1519 = vperm.slane %v1517, 0
        %v1521 = vmul.f32 %v1478, %v1519
        %v1522 = vmul.f32 %v1480, %v1519
        %v1523 = vmul.f32 %v1483, %v1519
        %v1524 = vmul.f32 %v1485, %v1519
        %v1525 = vmul.f32 %v1488, %v1519
        %v1526 = vmul.f32 %v1490, %v1519
        %v1527 = vmul.f32 %v1493, %v1519
        %v1528 = vmul.f32 %v1495, %v1519
        %v1529 = vmul.f32 %v1498, %v1519
        %v1530 = vmul.f32 %v1500, %v1519
        %v1531 = vmul.f32 %v1503, %v1519
        %v1532 = vmul.f32 %v1505, %v1519
        %v1533 = vmul.f32 %v1508, %v1519
        %v1534 = vmul.f32 %v1510, %v1519
        %v1535 = vmul.f32 %v1513, %v1519
        %v1536 = vmul.f32 %v1515, %v1519
        %v1537 = vld [vmem:[#allocation9] sm:$0x1]
        %v1539 = vperm.slane %v1537, 0
        %v1541 = vadd.f32 %v1521, %v1539
        %v1542 = vadd.f32 %v1522, %v1539
        %v1543 = vadd.f32 %v1523, %v1539
        %v1544 = vadd.f32 %v1524, %v1539
        %v1545 = vadd.f32 %v1525, %v1539
        %v1546 = vadd.f32 %v1526, %v1539
        %v1547 = vadd.f32 %v1527, %v1539
        %v1548 = vadd.f32 %v1528, %v1539
        %v1549 = vadd.f32 %v1529, %v1539
        %v1550 = vadd.f32 %v1530, %v1539
        %v1551 = vadd.f32 %v1531, %v1539
        %v1552 = vadd.f32 %v1532, %v1539
        %v1553 = vadd.f32 %v1533, %v1539
        %v1554 = vadd.f32 %v1534, %v1539
        %v1555 = vadd.f32 %v1535, %v1539
        %v1556 = vadd.f32 %v1536, %v1539
        %v1557 = vmax.f32 %v1541, 0.0
        %v1558 = vmax.f32 %v1542, 0.0
        %v1559 = vmax.f32 %v1543, 0.0
        %v1560 = vmax.f32 %v1544, 0.0
        %v1561 = vmax.f32 %v1545, 0.0
        %v1562 = vmax.f32 %v1546, 0.0
        %v1563 = vmax.f32 %v1547, 0.0
        %v1564 = vmax.f32 %v1548, 0.0
        %v1565 = vmax.f32 %v1549, 0.0
        %v1566 = vmax.f32 %v1550, 0.0
        %v1567 = vmax.f32 %v1551, 0.0
        %v1568 = vmax.f32 %v1552, 0.0
        %v1569 = vmax.f32 %v1553, 0.0
        %v1570 = vmax.f32 %v1554, 0.0
        %v1571 = vmax.f32 %v1555, 0.0
        %v1572 = vmax.f32 %v1556, 0.0
        %1573 = vst [vmem:[#allocation2 + $0x18] sm:$0xff] %v1557
        %1574 = vst [vmem:[#allocation2 + $0x20] sm:$0xff] %v1558
        %1575 = vst [vmem:[#allocation2 + $0x28] sm:$0xff] %v1559
        %1576 = vst [vmem:[#allocation2 + $0x30] sm:$0xff] %v1560
        %1577 = vst [vmem:[#allocation2 + $0x38] sm:$0xff] %v1561
        %1578 = vst [vmem:[#allocation2 + $0x40] sm:$0xff] %v1562
        %1579 = vst [vmem:[#allocation2 + $0x48] sm:$0xff] %v1563
        %1580 = vst [vmem:[#allocation2 + $0x50] sm:$0xff] %v1564
        %1581 = vst [vmem:[#allocation2 + $0x58] sm:$0xff] %v1565
        %1582 = vst [vmem:[#allocation2 + $0x60] sm:$0xff] %v1566
        %1583 = vst [vmem:[#allocation2 + $0x68] sm:$0xff] %v1567
        %1584 = vst [vmem:[#allocation2 + $0x70] sm:$0xff] %v1568
        %1585 = vst [vmem:[#allocation2 + $0x78] sm:$0xff] %v1569
        %1586 = vst [vmem:[#allocation2 + $0x80] sm:$0xff] %v1570
        %1587 = vst [vmem:[#allocation2 + $0x88] sm:$0xff] %v1571
        %1588 = vst [vmem:[#allocation2 + $0x90] sm:$0xff] %v1572
        %s1589 = sadd.s32 %s503, 8
        %p1590 = scmp.lt.s32.totalorder %s1589, 15
        %s1591 = scalar_select %p1590, %s1589, 15
        %p1592 = scmp.lt.s32.totalorder %s36, 1
        %s1593 = scalar_select %p1592, 1, 0
        %s1594 = scvt.s32.f32 %s1593
        %s1595 = smul.u32 %s1591, 8
        %s1596 = smul.addr %s1595, 4
        %s1597 = scalar_lea.vmem %s429, %s1596 [#allocation3]
        %v1598 = vld [vmem:[%s1597] sm:$0xff]
        %v1599 = vld [vmem:[%s1597 + $0x8] sm:$0xff]
        %v1600 = vld [vmem:[%s1597 + $0x10] sm:$0xff]
        %v1601 = vld [vmem:[%s1597 + $0x18] sm:$0xff]
        %v1602 = vld [vmem:[#allocation6] sm:$0xf]
        %v1603 = vld [vmem:[#allocation6 + $0x4] sm:$0xf]
        %v1604 = vld [vmem:[#allocation6 + $0x8] sm:$0xf]
        %v1605 = vld [vmem:[#allocation6 + $0xc] sm:$0xf]
        %v1606 = vld [vmem:[#allocation6 + $0x10] sm:$0xf]
        %v1607 = vld [vmem:[#allocation6 + $0x14] sm:$0xf]
        %v1608 = vld [vmem:[#allocation6 + $0x18] sm:$0xf]
        %v1609 = vld [vmem:[#allocation6 + $0x1c] sm:$0xf]
        %v1610 = vld [vmem:[#allocation6 + $0x20] sm:$0xf]
        %v1611 = vld [vmem:[#allocation6 + $0x24] sm:$0xf]
        %v1612 = vld [vmem:[#allocation6 + $0x28] sm:$0xf]
        %v1613 = vld [vmem:[#allocation6 + $0x2c] sm:$0xf]
        %v1614 = vld [vmem:[#allocation6 + $0x30] sm:$0xf]
        %v1615 = vld [vmem:[#allocation6 + $0x34] sm:$0xf]
        %v1616 = vld [vmem:[#allocation6 + $0x38] sm:$0xf]
        %v1617 = vld [vmem:[#allocation6 + $0x3c] sm:$0xf]
        %v1618 = vld [vmem:[#allocation6 + $0x40] sm:$0xf]
        %v1619 = vld [vmem:[#allocation6 + $0x44] sm:$0xf]
        %v1620 = vld [vmem:[#allocation6 + $0x48] sm:$0xf]
        %v1621 = vld [vmem:[#allocation6 + $0x4c] sm:$0xf]
        %v1622 = vld [vmem:[#allocation6 + $0x50] sm:$0xf]
        %v1623 = vld [vmem:[#allocation6 + $0x54] sm:$0xf]
        %v1624 = vld [vmem:[#allocation6 + $0x58] sm:$0xf]
        %v1625 = vld [vmem:[#allocation6 + $0x5c] sm:$0xf]
        %v1626 = vld [vmem:[#allocation6 + $0x60] sm:$0xf]
        %v1627 = vld [vmem:[#allocation6 + $0x64] sm:$0xf]
        %v1628 = vld [vmem:[#allocation6 + $0x68] sm:$0xf]
        %v1629 = vld [vmem:[#allocation6 + $0x6c] sm:$0xf]
        %v1630 = vld [vmem:[#allocation6 + $0x70] sm:$0xf]
        %v1631 = vld [vmem:[#allocation6 + $0x74] sm:$0xf]
        %v1632 = vld [vmem:[#allocation6 + $0x78] sm:$0xf]
        %v1633 = vld [vmem:[#allocation6 + $0x7c] sm:$0xf]
        %v1634 = vld [vmem:[#allocation6 + $0x80] sm:$0xf]
        %v1635 = vld [vmem:[#allocation6 + $0x84] sm:$0xf]
        %v1636 = vld [vmem:[#allocation6 + $0x88] sm:$0xf]
        %v1637 = vld [vmem:[#allocation6 + $0x8c] sm:$0xf]
        %v1638 = vld [vmem:[#allocation6 + $0x90] sm:$0xf]
        %v1639 = vld [vmem:[#allocation6 + $0x94] sm:$0xf]
        %v1640 = vld [vmem:[#allocation6 + $0x98] sm:$0xf]
        %v1641 = vld [vmem:[#allocation6 + $0x9c] sm:$0xf]
        %v1642 = vld [vmem:[#allocation6 + $0xa0] sm:$0xf]
        %v1643 = vld [vmem:[#allocation6 + $0xa4] sm:$0xf]
        %v1644 = vld [vmem:[#allocation6 + $0xa8] sm:$0xf]
        %v1645 = vld [vmem:[#allocation6 + $0xac] sm:$0xf]
        %v1646 = vld [vmem:[#allocation6 + $0xb0] sm:$0xf]
        %v1647 = vld [vmem:[#allocation6 + $0xb4] sm:$0xf]
        %v1648 = vld [vmem:[#allocation6 + $0xb8] sm:$0xf]
        %v1649 = vld [vmem:[#allocation6 + $0xbc] sm:$0xf]
        %v1650 = vld [vmem:[#allocation6 + $0xc0] sm:$0xf]
        %v1651 = vld [vmem:[#allocation6 + $0xc4] sm:$0xf]
        %v1652 = vld [vmem:[#allocation6 + $0xc8] sm:$0xf]
        %v1653 = vld [vmem:[#allocation6 + $0xcc] sm:$0xf]
        %v1654 = vld [vmem:[#allocation6 + $0xd0] sm:$0xf]
        %v1655 = vld [vmem:[#allocation6 + $0xd4] sm:$0xf]
        %v1656 = vld [vmem:[#allocation6 + $0xd8] sm:$0xf]
        %v1657 = vld [vmem:[#allocation6 + $0xdc] sm:$0xf]
        %v1658 = vld [vmem:[#allocation6 + $0xe0] sm:$0xf]
        %v1659 = vld [vmem:[#allocation6 + $0xe4] sm:$0xf]
        %v1660 = vld [vmem:[#allocation6 + $0xe8] sm:$0xf]
        %v1661 = vld [vmem:[#allocation6 + $0xec] sm:$0xf]
        %v1662 = vld [vmem:[#allocation6 + $0xf0] sm:$0xf]
        %v1663 = vld [vmem:[#allocation6 + $0xf4] sm:$0xf]
        %v1664 = vld [vmem:[#allocation6 + $0xf8] sm:$0xf]
        %v1665 = vld [vmem:[#allocation6 + $0xfc] sm:$0xf]
        %v1670 = vunpack.c.l.b16 %v1598
        %v1671 = vunpack.c.h.b16 %v1598
        %v1672 = vunpack.c.l.b16 %v1599
        %v1673 = vunpack.c.h.b16 %v1599
        %v1674 = vunpack.c.l.b16 %v1600
        %v1675 = vunpack.c.h.b16 %v1600
        %v1676 = vunpack.c.l.b16 %v1601
        %v1677 = vunpack.c.h.b16 %v1601
        %v1678 = vpack.c.b16 %v1674, %v1670
        %v1679 = vpack.c.b16 %v1675, %v1671
        %v1680 = vpack.c.b16 %v1676, %v1672
        %v1681 = vpack.c.b16 %v1677, %v1673
        %v1750 = vunpack.c.l.b16 %v1602
        %v1751 = vunpack.c.l.b16 %v1603
        %v1752 = vunpack.c.l.b16 %v1604
        %v1753 = vunpack.c.l.b16 %v1605
        %v1754 = vunpack.c.l.b16 %v1606
        %v1755 = vunpack.c.l.b16 %v1607
        %v1756 = vunpack.c.l.b16 %v1608
        %v1757 = vunpack.c.l.b16 %v1609
        %v1758 = vunpack.c.l.b16 %v1610
        %v1759 = vunpack.c.l.b16 %v1611
        %v1760 = vunpack.c.l.b16 %v1612
        %v1761 = vunpack.c.l.b16 %v1613
        %v1762 = vunpack.c.l.b16 %v1614
        %v1763 = vunpack.c.l.b16 %v1615
        %v1764 = vunpack.c.l.b16 %v1616
        %v1765 = vunpack.c.l.b16 %v1617
        %v1766 = vunpack.c.l.b16 %v1618
        %v1767 = vunpack.c.l.b16 %v1619
        %v1768 = vunpack.c.l.b16 %v1620
        %v1769 = vunpack.c.l.b16 %v1621
        %v1770 = vunpack.c.l.b16 %v1622
        %v1771 = vunpack.c.l.b16 %v1623
        %v1772 = vunpack.c.l.b16 %v1624
        %v1773 = vunpack.c.l.b16 %v1625
        %v1774 = vunpack.c.l.b16 %v1626
        %v1775 = vunpack.c.l.b16 %v1627
        %v1776 = vunpack.c.l.b16 %v1628
        %v1777 = vunpack.c.l.b16 %v1629
        %v1778 = vunpack.c.l.b16 %v1630
        %v1779 = vunpack.c.l.b16 %v1631
        %v1780 = vunpack.c.l.b16 %v1632
        %v1781 = vunpack.c.l.b16 %v1633
        %v1782 = vunpack.c.l.b16 %v1634
        %v1783 = vunpack.c.l.b16 %v1635
        %v1784 = vunpack.c.l.b16 %v1636
        %v1785 = vunpack.c.l.b16 %v1637
        %v1786 = vunpack.c.l.b16 %v1638
        %v1787 = vunpack.c.l.b16 %v1639
        %v1788 = vunpack.c.l.b16 %v1640
        %v1789 = vunpack.c.l.b16 %v1641
        %v1790 = vunpack.c.l.b16 %v1642
        %v1791 = vunpack.c.l.b16 %v1643
        %v1792 = vunpack.c.l.b16 %v1644
        %v1793 = vunpack.c.l.b16 %v1645
        %v1794 = vunpack.c.l.b16 %v1646
        %v1795 = vunpack.c.l.b16 %v1647
        %v1796 = vunpack.c.l.b16 %v1648
        %v1797 = vunpack.c.l.b16 %v1649
        %v1798 = vunpack.c.l.b16 %v1650
        %v1799 = vunpack.c.l.b16 %v1651
        %v1800 = vunpack.c.l.b16 %v1652
        %v1801 = vunpack.c.l.b16 %v1653
        %v1802 = vunpack.c.l.b16 %v1654
        %v1803 = vunpack.c.l.b16 %v1655
        %v1804 = vunpack.c.l.b16 %v1656
        %v1805 = vunpack.c.l.b16 %v1657
        %v1806 = vunpack.c.l.b16 %v1658
        %v1807 = vunpack.c.l.b16 %v1659
        %v1808 = vunpack.c.l.b16 %v1660
        %v1809 = vunpack.c.l.b16 %v1661
        %v1810 = vunpack.c.l.b16 %v1662
        %v1811 = vunpack.c.l.b16 %v1663
        %v1812 = vunpack.c.l.b16 %v1664
        %v1813 = vunpack.c.l.b16 %v1665
        %v1814 = vpack.c.b16 %v1751, %v1750
        %v1815 = vpack.c.b16 %v1753, %v1752
        %v1816 = vpack.c.b16 %v1755, %v1754
        %v1817 = vpack.c.b16 %v1757, %v1756
        %v1818 = vpack.c.b16 %v1759, %v1758
        %v1819 = vpack.c.b16 %v1761, %v1760
        %v1820 = vpack.c.b16 %v1763, %v1762
        %v1821 = vpack.c.b16 %v1765, %v1764
        %v1822 = vpack.c.b16 %v1767, %v1766
        %v1823 = vpack.c.b16 %v1769, %v1768
        %v1824 = vpack.c.b16 %v1771, %v1770
        %v1825 = vpack.c.b16 %v1773, %v1772
        %v1826 = vpack.c.b16 %v1775, %v1774
        %v1827 = vpack.c.b16 %v1777, %v1776
        %v1828 = vpack.c.b16 %v1779, %v1778
        %v1829 = vpack.c.b16 %v1781, %v1780
        %v1830 = vpack.c.b16 %v1783, %v1782
        %v1831 = vpack.c.b16 %v1785, %v1784
        %v1832 = vpack.c.b16 %v1787, %v1786
        %v1833 = vpack.c.b16 %v1789, %v1788
        %v1834 = vpack.c.b16 %v1791, %v1790
        %v1835 = vpack.c.b16 %v1793, %v1792
        %v1836 = vpack.c.b16 %v1795, %v1794
        %v1837 = vpack.c.b16 %v1797, %v1796
        %v1838 = vpack.c.b16 %v1799, %v1798
        %v1839 = vpack.c.b16 %v1801, %v1800
        %v1840 = vpack.c.b16 %v1803, %v1802
        %v1841 = vpack.c.b16 %v1805, %v1804
        %v1842 = vpack.c.b16 %v1807, %v1806
        %v1843 = vpack.c.b16 %v1809, %v1808
        %v1844 = vpack.c.b16 %v1811, %v1810
        %v1845 = vpack.c.b16 %v1813, %v1812
        %1878 = vmatpush.bf16.msra.mxu0 %v1821
        %1879 = vmatpush.bf16.msra.mxu0 %v1820
        %1880 = vmatpush.bf16.msra.mxu0 %v1819
        %1881 = vmatpush.bf16.msra.mxu0 %v1818
        %1882 = vmatpush.bf16.msra.mxu0 %v1817
        %1883 = vmatpush.bf16.msra.mxu0 %v1816
        %1884 = vmatpush.bf16.msra.mxu0 %v1815
        %1885 = vmatpush.bf16.msra.mxu0 %v1814
        %1886 = vmatmul.bf16.gmra.mxu0 %v1678
        %v1887 = vpop.f32.mrf.mxu0
        %v1888 = vadd.f32 0.0, %v1887
        %v1889 = vpop.f32.mrf.mxu0
        %v1890 = vadd.f32 0.0, %v1889
        %1891 = vdwg.mxu0
        %1892 = vmatpush.bf16.msra.mxu0 %v1829
        %1893 = vmatpush.bf16.msra.mxu0 %v1828
        %1894 = vmatpush.bf16.msra.mxu0 %v1827
        %1895 = vmatpush.bf16.msra.mxu0 %v1826
        %1896 = vmatpush.bf16.msra.mxu0 %v1825
        %1897 = vmatpush.bf16.msra.mxu0 %v1824
        %1898 = vmatpush.bf16.msra.mxu0 %v1823
        %1899 = vmatpush.bf16.msra.mxu0 %v1822
        %1900 = vmatmul.bf16.gmra.mxu0 %v1679
        %v1901 = vpop.f32.mrf.mxu0
        %v1902 = vadd.f32 %v1888, %v1901
        %v1903 = vpop.f32.mrf.mxu0
        %v1904 = vadd.f32 %v1890, %v1903
        %1905 = vdwg.mxu0
        %1906 = vmatpush.bf16.msra.mxu0 %v1837
        %1907 = vmatpush.bf16.msra.mxu0 %v1836
        %1908 = vmatpush.bf16.msra.mxu0 %v1835
        %1909 = vmatpush.bf16.msra.mxu0 %v1834
        %1910 = vmatpush.bf16.msra.mxu0 %v1833
        %1911 = vmatpush.bf16.msra.mxu0 %v1832
        %1912 = vmatpush.bf16.msra.mxu0 %v1831
        %1913 = vmatpush.bf16.msra.mxu0 %v1830
        %1914 = vmatmul.bf16.gmra.mxu0 %v1680
        %v1915 = vpop.f32.mrf.mxu0
        %v1916 = vadd.f32 %v1902, %v1915
        %v1917 = vpop.f32.mrf.mxu0
        %v1918 = vadd.f32 %v1904, %v1917
        %1919 = vdwg.mxu0
        %1920 = vmatpush.bf16.msra.mxu0 %v1845
        %1921 = vmatpush.bf16.msra.mxu0 %v1844
        %1922 = vmatpush.bf16.msra.mxu0 %v1843
        %1923 = vmatpush.bf16.msra.mxu0 %v1842
        %1924 = vmatpush.bf16.msra.mxu0 %v1841
        %1925 = vmatpush.bf16.msra.mxu0 %v1840
        %1926 = vmatpush.bf16.msra.mxu0 %v1839
        %1927 = vmatpush.bf16.msra.mxu0 %v1838
        %1928 = vmatmul.bf16.gmra.mxu0 %v1681
        %v1929 = vpop.f32.mrf.mxu0
        %v1930 = vadd.f32 %v1916, %v1929
        %v1931 = vpop.f32.mrf.mxu0
        %v1932 = vadd.f32 %v1918, %v1931
        %1933 = vdwg.mxu0
        %v1934 = vld [vmem:[#allocation8] sm:$0x1]
        %v1936 = vperm.slane %v1934, 0
        %v1938 = vmul.f32 %v1930, %v1936
        %v1939 = vmul.f32 %v1932, %v1936
        %v1940 = vld [vmem:[#allocation9] sm:$0x1]
        %v1942 = vperm.slane %v1940, 0
        %v1944 = vadd.f32 %v1938, %v1942
        %v1945 = vadd.f32 %v1939, %v1942
        %v1946 = vmax.f32 %v1944, 0.0
        %v1947 = vmax.f32 %v1945, 0.0
        %v1948 = vstv %s1594
        %v1949 = vmul.f32 %v1946, %v1948
        %v1950 = vmul.f32 %v1947, %v1948
        %1951 = vst [vmem:[#allocation2 + $0x98] sm:$0xff] %v1949
        %1952 = vst [vmem:[#allocation2 + $0xa0] sm:$0xff] %v1950
        %v1953 = vlaneseq
        %v1954 = vshrl.u32 %v1953, 7
        %v1955 = vadd.s32 %v1954, 8
        %v1956 = vadd.s32 %v1954, 16
        %v1957 = vadd.s32 %v1954, 24
        %v1958 = vadd.s32 %v1954, 32
        %v1959 = vadd.s32 %v1954, 40
        %v1960 = vadd.s32 %v1954, 48
        %v1961 = vadd.s32 %v1954, 56
        %v1962 = vadd.s32 %v1954, 64
        %v1963 = vadd.s32 %v1954, 72
        %v1964 = vadd.s32 %v1954, 80
        %v1965 = vadd.s32 %v1954, 88
        %v1966 = vadd.s32 %v1954, 96
        %v1967 = vadd.s32 %v1954, 104
        %v1968 = vadd.s32 %v1954, 112
        %v1969 = vadd.s32 %v1954, 120
        %vm1970 = vcmp.lt.s32.totalorder %v1954, 0
        %v1971 = vsub.s32 0, %v1954
        %v1972 = vsel %vm1970, %v1971, %v1954
        %v1973 = vshrl.u32 %v1972, 4
        %v1974 = vand.u32 %v1972, 15
        %v1975 = vsub.s32 0, %v1974
        %v1976 = vsel %vm1970, %v1975, %v1974
        %vm1977 = vcmp.lt.s32.totalorder %v1955, 0
        %v1978 = vsub.s32 0, %v1955
        %v1979 = vsel %vm1977, %v1978, %v1955
        %v1980 = vshrl.u32 %v1979, 4
        %v1981 = vand.u32 %v1979, 15
        %v1982 = vsub.s32 0, %v1981
        %v1983 = vsel %vm1977, %v1982, %v1981
        %vm1984 = vcmp.lt.s32.totalorder %v1956, 0
        %v1985 = vsub.s32 0, %v1956
        %v1986 = vsel %vm1984, %v1985, %v1956
        %v1987 = vshrl.u32 %v1986, 4
        %v1988 = vand.u32 %v1986, 15
        %v1989 = vsub.s32 0, %v1988
        %v1990 = vsel %vm1984, %v1989, %v1988
        %vm1991 = vcmp.lt.s32.totalorder %v1957, 0
        %v1992 = vsub.s32 0, %v1957
        %v1993 = vsel %vm1991, %v1992, %v1957
        %v1994 = vshrl.u32 %v1993, 4
        %v1995 = vand.u32 %v1993, 15
        %v1996 = vsub.s32 0, %v1995
        %v1997 = vsel %vm1991, %v1996, %v1995
        %vm1998 = vcmp.lt.s32.totalorder %v1958, 0
        %v1999 = vsub.s32 0, %v1958
        %v2000 = vsel %vm1998, %v1999, %v1958
        %v2001 = vshrl.u32 %v2000, 4
        %v2002 = vand.u32 %v2000, 15
        %v2003 = vsub.s32 0, %v2002
        %v2004 = vsel %vm1998, %v2003, %v2002
        %vm2005 = vcmp.lt.s32.totalorder %v1959, 0
        %v2006 = vsub.s32 0, %v1959
        %v2007 = vsel %vm2005, %v2006, %v1959
        %v2008 = vshrl.u32 %v2007, 4
        %v2009 = vand.u32 %v2007, 15
        %v2010 = vsub.s32 0, %v2009
        %v2011 = vsel %vm2005, %v2010, %v2009
        %vm2012 = vcmp.lt.s32.totalorder %v1960, 0
        %v2013 = vsub.s32 0, %v1960
        %v2014 = vsel %vm2012, %v2013, %v1960
        %v2015 = vshrl.u32 %v2014, 4
        %v2016 = vand.u32 %v2014, 15
        %v2017 = vsub.s32 0, %v2016
        %v2018 = vsel %vm2012, %v2017, %v2016
        %vm2019 = vcmp.lt.s32.totalorder %v1961, 0
        %v2020 = vsub.s32 0, %v1961
        %v2021 = vsel %vm2019, %v2020, %v1961
        %v2022 = vshrl.u32 %v2021, 4
        %v2023 = vand.u32 %v2021, 15
        %v2024 = vsub.s32 0, %v2023
        %v2025 = vsel %vm2019, %v2024, %v2023
        %vm2026 = vcmp.lt.s32.totalorder %v1962, 0
        %v2027 = vsub.s32 0, %v1962
        %v2028 = vsel %vm2026, %v2027, %v1962
        %v2029 = vshrl.u32 %v2028, 4
        %v2030 = vand.u32 %v2028, 15
        %v2031 = vsub.s32 0, %v2030
        %v2032 = vsel %vm2026, %v2031, %v2030
        %vm2033 = vcmp.lt.s32.totalorder %v1963, 0
        %v2034 = vsub.s32 0, %v1963
        %v2035 = vsel %vm2033, %v2034, %v1963
        %v2036 = vshrl.u32 %v2035, 4
        %v2037 = vand.u32 %v2035, 15
        %v2038 = vsub.s32 0, %v2037
        %v2039 = vsel %vm2033, %v2038, %v2037
        %vm2040 = vcmp.lt.s32.totalorder %v1964, 0
        %v2041 = vsub.s32 0, %v1964
        %v2042 = vsel %vm2040, %v2041, %v1964
        %v2043 = vshrl.u32 %v2042, 4
        %v2044 = vand.u32 %v2042, 15
        %v2045 = vsub.s32 0, %v2044
        %v2046 = vsel %vm2040, %v2045, %v2044
        %vm2047 = vcmp.lt.s32.totalorder %v1965, 0
        %v2048 = vsub.s32 0, %v1965
        %v2049 = vsel %vm2047, %v2048, %v1965
        %v2050 = vshrl.u32 %v2049, 4
        %v2051 = vand.u32 %v2049, 15
        %v2052 = vsub.s32 0, %v2051
        %v2053 = vsel %vm2047, %v2052, %v2051
        %vm2054 = vcmp.lt.s32.totalorder %v1966, 0
        %v2055 = vsub.s32 0, %v1966
        %v2056 = vsel %vm2054, %v2055, %v1966
        %v2057 = vshrl.u32 %v2056, 4
        %v2058 = vand.u32 %v2056, 15
        %v2059 = vsub.s32 0, %v2058
        %v2060 = vsel %vm2054, %v2059, %v2058
        %vm2061 = vcmp.lt.s32.totalorder %v1967, 0
        %v2062 = vsub.s32 0, %v1967
        %v2063 = vsel %vm2061, %v2062, %v1967
        %v2064 = vshrl.u32 %v2063, 4
        %v2065 = vand.u32 %v2063, 15
        %v2066 = vsub.s32 0, %v2065
        %v2067 = vsel %vm2061, %v2066, %v2065
        %vm2068 = vcmp.lt.s32.totalorder %v1968, 0
        %v2069 = vsub.s32 0, %v1968
        %v2070 = vsel %vm2068, %v2069, %v1968
        %v2071 = vshrl.u32 %v2070, 4
        %v2072 = vand.u32 %v2070, 15
        %v2073 = vsub.s32 0, %v2072
        %v2074 = vsel %vm2068, %v2073, %v2072
        %vm2075 = vcmp.lt.s32.totalorder %v1969, 0
        %v2076 = vsub.s32 0, %v1969
        %v2077 = vsel %vm2075, %v2076, %v1969
        %v2078 = vshrl.u32 %v2077, 4
        %v2079 = vand.u32 %v2077, 15
        %v2080 = vsub.s32 0, %v2079
        %v2081 = vsel %vm2075, %v2080, %v2079
        %vm2082 = vcmp.ne.s32.totalorder %v1976, 0
        %vm2083 = vcmp.ne.s32.totalorder %v1983, 0
        %vm2084 = vcmp.ne.s32.totalorder %v1990, 0
        %vm2085 = vcmp.ne.s32.totalorder %v1997, 0
        %vm2086 = vcmp.ne.s32.totalorder %v2004, 0
        %vm2087 = vcmp.ne.s32.totalorder %v2011, 0
        %vm2088 = vcmp.ne.s32.totalorder %v2018, 0
        %vm2089 = vcmp.ne.s32.totalorder %v2025, 0
        %vm2090 = vcmp.ne.s32.totalorder %v2032, 0
        %vm2091 = vcmp.ne.s32.totalorder %v2039, 0
        %vm2092 = vcmp.ne.s32.totalorder %v2046, 0
        %vm2093 = vcmp.ne.s32.totalorder %v2053, 0
        %vm2094 = vcmp.ne.s32.totalorder %v2060, 0
        %vm2095 = vcmp.ne.s32.totalorder %v2067, 0
        %vm2096 = vcmp.ne.s32.totalorder %v2074, 0
        %vm2097 = vcmp.ne.s32.totalorder %v2081, 0
        %vm2098 = vcmp.lt.s32.totalorder %v1976, 0
        %vm2099 = vcmp.lt.s32.totalorder %v1983, 0
        %vm2100 = vcmp.lt.s32.totalorder %v1990, 0
        %vm2101 = vcmp.lt.s32.totalorder %v1997, 0
        %vm2102 = vcmp.lt.s32.totalorder %v2004, 0
        %vm2103 = vcmp.lt.s32.totalorder %v2011, 0
        %vm2104 = vcmp.lt.s32.totalorder %v2018, 0
        %vm2105 = vcmp.lt.s32.totalorder %v2025, 0
        %vm2106 = vcmp.lt.s32.totalorder %v2032, 0
        %vm2107 = vcmp.lt.s32.totalorder %v2039, 0
        %vm2108 = vcmp.lt.s32.totalorder %v2046, 0
        %vm2109 = vcmp.lt.s32.totalorder %v2053, 0
        %vm2110 = vcmp.lt.s32.totalorder %v2060, 0
        %vm2111 = vcmp.lt.s32.totalorder %v2067, 0
        %vm2112 = vcmp.lt.s32.totalorder %v2074, 0
        %vm2113 = vcmp.lt.s32.totalorder %v2081, 0
        %vm2114 = vmand %vm2098, %vm2082
        %vm2115 = vmand %vm2099, %vm2083
        %vm2116 = vmand %vm2100, %vm2084
        %vm2117 = vmand %vm2101, %vm2085
        %vm2118 = vmand %vm2102, %vm2086
        %vm2119 = vmand %vm2103, %vm2087
        %vm2120 = vmand %vm2104, %vm2088
        %vm2121 = vmand %vm2105, %vm2089
        %vm2122 = vmand %vm2106, %vm2090
        %vm2123 = vmand %vm2107, %vm2091
        %vm2124 = vmand %vm2108, %vm2092
        %vm2125 = vmand %vm2109, %vm2093
        %vm2126 = vmand %vm2110, %vm2094
        %vm2127 = vmand %vm2111, %vm2095
        %vm2128 = vmand %vm2112, %vm2096
        %vm2129 = vmand %vm2113, %vm2097
        %v2130 = vadd.s32 %v1976, 16
        %v2131 = vadd.s32 %v1983, 16
        %v2132 = vadd.s32 %v1990, 16
        %v2133 = vadd.s32 %v1997, 16
        %v2134 = vadd.s32 %v2004, 16
        %v2135 = vadd.s32 %v2011, 16
        %v2136 = vadd.s32 %v2018, 16
        %v2137 = vadd.s32 %v2025, 16
        %v2138 = vadd.s32 %v2032, 16
        %v2139 = vadd.s32 %v2039, 16
        %v2140 = vadd.s32 %v2046, 16
        %v2141 = vadd.s32 %v2053, 16
        %v2142 = vadd.s32 %v2060, 16
        %v2143 = vadd.s32 %v2067, 16
        %v2144 = vadd.s32 %v2074, 16
        %v2145 = vadd.s32 %v2081, 16
        %v2146 = vsel %vm2114, %v2130, %v1976
        %v2147 = vsel %vm2115, %v2131, %v1983
        %v2148 = vsel %vm2116, %v2132, %v1990
        %v2149 = vsel %vm2117, %v2133, %v1997
        %v2150 = vsel %vm2118, %v2134, %v2004
        %v2151 = vsel %vm2119, %v2135, %v2011
        %v2152 = vsel %vm2120, %v2136, %v2018
        %v2153 = vsel %vm2121, %v2137, %v2025
        %v2154 = vsel %vm2122, %v2138, %v2032
        %v2155 = vsel %vm2123, %v2139, %v2039
        %v2156 = vsel %vm2124, %v2140, %v2046
        %v2157 = vsel %vm2125, %v2141, %v2053
        %v2158 = vsel %vm2126, %v2142, %v2060
        %v2159 = vsel %vm2127, %v2143, %v2067
        %v2160 = vsel %vm2128, %v2144, %v2074
        %v2161 = vsel %vm2129, %v2145, %v2081
        %vm2162 = vcmp.ne.s32.totalorder %v2146, 0
        %vm2163 = vcmp.ne.s32.totalorder %v2147, 0
        %vm2164 = vcmp.ne.s32.totalorder %v2148, 0
        %vm2165 = vcmp.ne.s32.totalorder %v2149, 0
        %vm2166 = vcmp.ne.s32.totalorder %v2150, 0
        %vm2167 = vcmp.ne.s32.totalorder %v2151, 0
        %vm2168 = vcmp.ne.s32.totalorder %v2152, 0
        %vm2169 = vcmp.ne.s32.totalorder %v2153, 0
        %vm2170 = vcmp.ne.s32.totalorder %v2154, 0
        %vm2171 = vcmp.ne.s32.totalorder %v2155, 0
        %vm2172 = vcmp.ne.s32.totalorder %v2156, 0
        %vm2173 = vcmp.ne.s32.totalorder %v2157, 0
        %vm2174 = vcmp.ne.s32.totalorder %v2158, 0
        %vm2175 = vcmp.ne.s32.totalorder %v2159, 0
        %vm2176 = vcmp.ne.s32.totalorder %v2160, 0
        %vm2177 = vcmp.ne.s32.totalorder %v2161, 0
        %vm2178 = vcmp.ne.s32.totalorder %v2146, 15
        %vm2179 = vcmp.ne.s32.totalorder %v2147, 15
        %vm2180 = vcmp.ne.s32.totalorder %v2148, 15
        %vm2181 = vcmp.ne.s32.totalorder %v2149, 15
        %vm2182 = vcmp.ne.s32.totalorder %v2150, 15
        %vm2183 = vcmp.ne.s32.totalorder %v2151, 15
        %vm2184 = vcmp.ne.s32.totalorder %v2152, 15
        %vm2185 = vcmp.ne.s32.totalorder %v2153, 15
        %vm2186 = vcmp.ne.s32.totalorder %v2154, 15
        %vm2187 = vcmp.ne.s32.totalorder %v2155, 15
        %vm2188 = vcmp.ne.s32.totalorder %v2156, 15
        %vm2189 = vcmp.ne.s32.totalorder %v2157, 15
        %vm2190 = vcmp.ne.s32.totalorder %v2158, 15
        %vm2191 = vcmp.ne.s32.totalorder %v2159, 15
        %vm2192 = vcmp.ne.s32.totalorder %v2160, 15
        %vm2193 = vcmp.ne.s32.totalorder %v2161, 15
        %v2194 = vld [vmem:[#allocation2 + $0x7] sm:$0xff]
        %v2195 = vld [vmem:[#allocation2 + $0xf] sm:$0xff]
        %v2196 = vld [vmem:[#allocation2 + $0x17] sm:$0xff]
        %v2197 = vld [vmem:[#allocation2 + $0x1f] sm:$0xff]
        %v2198 = vld [vmem:[#allocation2 + $0x27] sm:$0xff]
        %v2199 = vld [vmem:[#allocation2 + $0x2f] sm:$0xff]
        %v2200 = vld [vmem:[#allocation2 + $0x37] sm:$0xff]
        %v2201 = vld [vmem:[#allocation2 + $0x3f] sm:$0xff]
        %v2202 = vld [vmem:[#allocation2 + $0x47] sm:$0xff]
        %v2203 = vld [vmem:[#allocation2 + $0x4f] sm:$0xff]
        %v2204 = vld [vmem:[#allocation2 + $0x57] sm:$0xff]
        %v2205 = vld [vmem:[#allocation2 + $0x5f] sm:$0xff]
        %v2206 = vld [vmem:[#allocation2 + $0x67] sm:$0xff]
        %v2207 = vld [vmem:[#allocation2 + $0x6f] sm:$0xff]
        %v2208 = vld [vmem:[#allocation2 + $0x77] sm:$0xff]
        %v2209 = vld [vmem:[#allocation2 + $0x7f] sm:$0xff]
        %v2210 = vpack.c.bf16 %v2195, %v2194
        %v2211 = vpack.c.bf16 %v2197, %v2196
        %v2212 = vpack.c.bf16 %v2199, %v2198
        %v2213 = vpack.c.bf16 %v2201, %v2200
        %v2214 = vpack.c.bf16 %v2203, %v2202
        %v2215 = vpack.c.bf16 %v2205, %v2204
        %v2216 = vpack.c.bf16 %v2207, %v2206
        %v2217 = vpack.c.bf16 %v2209, %v2208
        %v2218 = vld [vmem:[#allocation11] sm:$0xf]
        %v2219 = vld [vmem:[#allocation11 + $0x4] sm:$0xf]
        %v2220 = vld [vmem:[#allocation11 + $0x8] sm:$0xf]
        %v2221 = vld [vmem:[#allocation11 + $0xc] sm:$0xf]
        %v2222 = vld [vmem:[#allocation11 + $0x10] sm:$0xf]
        %v2223 = vld [vmem:[#allocation11 + $0x14] sm:$0xf]
        %v2224 = vld [vmem:[#allocation11 + $0x18] sm:$0xf]
        %v2225 = vld [vmem:[#allocation11 + $0x1c] sm:$0xf]
        %v2226 = vld [vmem:[#allocation11 + $0x20] sm:$0xf]
        %v2227 = vld [vmem:[#allocation11 + $0x24] sm:$0xf]
        %v2228 = vld [vmem:[#allocation11 + $0x28] sm:$0xf]
        %v2229 = vld [vmem:[#allocation11 + $0x2c] sm:$0xf]
        %v2230 = vld [vmem:[#allocation11 + $0x30] sm:$0xf]
        %v2231 = vld [vmem:[#allocation11 + $0x34] sm:$0xf]
        %v2232 = vld [vmem:[#allocation11 + $0x38] sm:$0xf]
        %v2233 = vld [vmem:[#allocation11 + $0x3c] sm:$0xf]
        %v2250 = vunpack.c.l.b16 %v2218
        %v2251 = vunpack.c.l.b16 %v2219
        %v2252 = vunpack.c.l.b16 %v2220
        %v2253 = vunpack.c.l.b16 %v2221
        %v2254 = vunpack.c.l.b16 %v2222
        %v2255 = vunpack.c.l.b16 %v2223
        %v2256 = vunpack.c.l.b16 %v2224
        %v2257 = vunpack.c.l.b16 %v2225
        %v2258 = vunpack.c.l.b16 %v2226
        %v2259 = vunpack.c.l.b16 %v2227
        %v2260 = vunpack.c.l.b16 %v2228
        %v2261 = vunpack.c.l.b16 %v2229
        %v2262 = vunpack.c.l.b16 %v2230
        %v2263 = vunpack.c.l.b16 %v2231
        %v2264 = vunpack.c.l.b16 %v2232
        %v2265 = vunpack.c.l.b16 %v2233
        %v2266 = vpack.c.b16 %v2251, %v2250
        %v2267 = vpack.c.b16 %v2253, %v2252
        %v2268 = vpack.c.b16 %v2255, %v2254
        %v2269 = vpack.c.b16 %v2257, %v2256
        %v2270 = vpack.c.b16 %v2259, %v2258
        %v2271 = vpack.c.b16 %v2261, %v2260
        %v2272 = vpack.c.b16 %v2263, %v2262
        %v2273 = vpack.c.b16 %v2265, %v2264
        %2282 = vmatpush.bf16.msra.mxu0 %v2273
        %2283 = vmatpush.bf16.msra.mxu0 %v2272
        %2284 = vmatpush.bf16.msra.mxu0 %v2271
        %2285 = vmatpush.bf16.msra.mxu0 %v2270
        %2286 = vmatpush.bf16.msra.mxu0 %v2269
        %2287 = vmatpush.bf16.msra.mxu0 %v2268
        %2288 = vmatpush.bf16.msra.mxu0 %v2267
        %2289 = vmatpush.bf16.msra.mxu0 %v2266
        %2290 = vmatmul.bf16.gmra.mxu0 %v2210
        %v2291 = vpop.f32.mrf.mxu0
        %v2292 = vadd.f32 0.0, %v2291
        %v2293 = vpop.f32.mrf.mxu0
        %v2294 = vadd.f32 0.0, %v2293
        %2295 = vmatmul.bf16.gmra.mxu0 %v2211
        %v2296 = vpop.f32.mrf.mxu0
        %v2297 = vadd.f32 0.0, %v2296
        %v2298 = vpop.f32.mrf.mxu0
        %v2299 = vadd.f32 0.0, %v2298
        %2300 = vmatmul.bf16.gmra.mxu0 %v2212
        %v2301 = vpop.f32.mrf.mxu0
        %v2302 = vadd.f32 0.0, %v2301
        %v2303 = vpop.f32.mrf.mxu0
        %v2304 = vadd.f32 0.0, %v2303
        %2305 = vmatmul.bf16.gmra.mxu0 %v2213
        %v2306 = vpop.f32.mrf.mxu0
        %v2307 = vadd.f32 0.0, %v2306
        %v2308 = vpop.f32.mrf.mxu0
        %v2309 = vadd.f32 0.0, %v2308
        %2310 = vmatmul.bf16.gmra.mxu0 %v2214
        %v2311 = vpop.f32.mrf.mxu0
        %v2312 = vadd.f32 0.0, %v2311
        %v2313 = vpop.f32.mrf.mxu0
        %v2314 = vadd.f32 0.0, %v2313
        %2315 = vmatmul.bf16.gmra.mxu0 %v2215
        %v2316 = vpop.f32.mrf.mxu0
        %v2317 = vadd.f32 0.0, %v2316
        %v2318 = vpop.f32.mrf.mxu0
        %v2319 = vadd.f32 0.0, %v2318
        %2320 = vmatmul.bf16.gmra.mxu0 %v2216
        %v2321 = vpop.f32.mrf.mxu0
        %v2322 = vadd.f32 0.0, %v2321
        %v2323 = vpop.f32.mrf.mxu0
        %v2324 = vadd.f32 0.0, %v2323
        %2325 = vmatmul.bf16.gmra.mxu0 %v2217
        %v2326 = vpop.f32.mrf.mxu0
        %v2327 = vadd.f32 0.0, %v2326
        %v2328 = vpop.f32.mrf.mxu0
        %v2329 = vadd.f32 0.0, %v2328
        %2330 = vdwg.mxu0
        %v2331 = vsel %vm2162, 1, 0
        %v2332 = vsel %vm2163, 1, 0
        %v2333 = vsel %vm2164, 1, 0
        %v2334 = vsel %vm2165, 1, 0
        %v2335 = vsel %vm2166, 1, 0
        %v2336 = vsel %vm2167, 1, 0
        %v2337 = vsel %vm2168, 1, 0
        %v2338 = vsel %vm2169, 1, 0
        %v2339 = vsel %vm2170, 1, 0
        %v2340 = vsel %vm2171, 1, 0
        %v2341 = vsel %vm2172, 1, 0
        %v2342 = vsel %vm2173, 1, 0
        %v2343 = vsel %vm2174, 1, 0
        %v2344 = vsel %vm2175, 1, 0
        %v2345 = vsel %vm2176, 1, 0
        %v2346 = vsel %vm2177, 1, 0
        %vm2347 = vcmp.eq.s32.totalorder %v2331, 1
        %vm2348 = vcmp.eq.s32.totalorder %v2332, 1
        %vm2349 = vcmp.eq.s32.totalorder %v2333, 1
        %vm2350 = vcmp.eq.s32.totalorder %v2334, 1
        %vm2351 = vcmp.eq.s32.totalorder %v2335, 1
        %vm2352 = vcmp.eq.s32.totalorder %v2336, 1
        %vm2353 = vcmp.eq.s32.totalorder %v2337, 1
        %vm2354 = vcmp.eq.s32.totalorder %v2338, 1
        %vm2355 = vcmp.eq.s32.totalorder %v2339, 1
        %vm2356 = vcmp.eq.s32.totalorder %v2340, 1
        %vm2357 = vcmp.eq.s32.totalorder %v2341, 1
        %vm2358 = vcmp.eq.s32.totalorder %v2342, 1
        %vm2359 = vcmp.eq.s32.totalorder %v2343, 1
        %vm2360 = vcmp.eq.s32.totalorder %v2344, 1
        %vm2361 = vcmp.eq.s32.totalorder %v2345, 1
        %vm2362 = vcmp.eq.s32.totalorder %v2346, 1
        %v2363 = vsel %vm2347, %v2292, 0.0
        %v2364 = vsel %vm2348, %v2294, 0.0
        %v2365 = vsel %vm2349, %v2297, 0.0
        %v2366 = vsel %vm2350, %v2299, 0.0
        %v2367 = vsel %vm2351, %v2302, 0.0
        %v2368 = vsel %vm2352, %v2304, 0.0
        %v2369 = vsel %vm2353, %v2307, 0.0
        %v2370 = vsel %vm2354, %v2309, 0.0
        %v2371 = vsel %vm2355, %v2312, 0.0
        %v2372 = vsel %vm2356, %v2314, 0.0
        %v2373 = vsel %vm2357, %v2317, 0.0
        %v2374 = vsel %vm2358, %v2319, 0.0
        %v2375 = vsel %vm2359, %v2322, 0.0
        %v2376 = vsel %vm2360, %v2324, 0.0
        %v2377 = vsel %vm2361, %v2327, 0.0
        %v2378 = vsel %vm2362, %v2329, 0.0
        %v2379 = vadd.f32 %v2363, 0.0
        %v2380 = vadd.f32 %v2364, 0.0
        %v2381 = vadd.f32 %v2365, 0.0
        %v2382 = vadd.f32 %v2366, 0.0
        %v2383 = vadd.f32 %v2367, 0.0
        %v2384 = vadd.f32 %v2368, 0.0
        %v2385 = vadd.f32 %v2369, 0.0
        %v2386 = vadd.f32 %v2370, 0.0
        %v2387 = vadd.f32 %v2371, 0.0
        %v2388 = vadd.f32 %v2372, 0.0
        %v2389 = vadd.f32 %v2373, 0.0
        %v2390 = vadd.f32 %v2374, 0.0
        %v2391 = vadd.f32 %v2375, 0.0
        %v2392 = vadd.f32 %v2376, 0.0
        %v2393 = vadd.f32 %v2377, 0.0
        %v2394 = vadd.f32 %v2378, 0.0
        %v2395 = vld [vmem:[#allocation2 + $0x8] sm:$0xff]
        %v2396 = vld [vmem:[#allocation2 + $0x10] sm:$0xff]
        %v2397 = vld [vmem:[#allocation2 + $0x18] sm:$0xff]
        %v2398 = vld [vmem:[#allocation2 + $0x20] sm:$0xff]
        %v2399 = vld [vmem:[#allocation2 + $0x28] sm:$0xff]
        %v2400 = vld [vmem:[#allocation2 + $0x30] sm:$0xff]
        %v2401 = vld [vmem:[#allocation2 + $0x38] sm:$0xff]
        %v2402 = vld [vmem:[#allocation2 + $0x40] sm:$0xff]
        %v2403 = vld [vmem:[#allocation2 + $0x48] sm:$0xff]
        %v2404 = vld [vmem:[#allocation2 + $0x50] sm:$0xff]
        %v2405 = vld [vmem:[#allocation2 + $0x58] sm:$0xff]
        %v2406 = vld [vmem:[#allocation2 + $0x60] sm:$0xff]
        %v2407 = vld [vmem:[#allocation2 + $0x68] sm:$0xff]
        %v2408 = vld [vmem:[#allocation2 + $0x70] sm:$0xff]
        %v2409 = vld [vmem:[#allocation2 + $0x78] sm:$0xff]
        %v2410 = vld [vmem:[#allocation2 + $0x80] sm:$0xff]
        %v2411 = vpack.c.bf16 %v2396, %v2395
        %v2412 = vpack.c.bf16 %v2398, %v2397
        %v2413 = vpack.c.bf16 %v2400, %v2399
        %v2414 = vpack.c.bf16 %v2402, %v2401
        %v2415 = vpack.c.bf16 %v2404, %v2403
        %v2416 = vpack.c.bf16 %v2406, %v2405
        %v2417 = vpack.c.bf16 %v2408, %v2407
        %v2418 = vpack.c.bf16 %v2410, %v2409
        %v2419 = vld [vmem:[#allocation11 + $0x40] sm:$0xf]
        %v2420 = vld [vmem:[#allocation11 + $0x44] sm:$0xf]
        %v2421 = vld [vmem:[#allocation11 + $0x48] sm:$0xf]
        %v2422 = vld [vmem:[#allocation11 + $0x4c] sm:$0xf]
        %v2423 = vld [vmem:[#allocation11 + $0x50] sm:$0xf]
        %v2424 = vld [vmem:[#allocation11 + $0x54] sm:$0xf]
        %v2425 = vld [vmem:[#allocation11 + $0x58] sm:$0xf]
        %v2426 = vld [vmem:[#allocation11 + $0x5c] sm:$0xf]
        %v2427 = vld [vmem:[#allocation11 + $0x60] sm:$0xf]
        %v2428 = vld [vmem:[#allocation11 + $0x64] sm:$0xf]
        %v2429 = vld [vmem:[#allocation11 + $0x68] sm:$0xf]
        %v2430 = vld [vmem:[#allocation11 + $0x6c] sm:$0xf]
        %v2431 = vld [vmem:[#allocation11 + $0x70] sm:$0xf]
        %v2432 = vld [vmem:[#allocation11 + $0x74] sm:$0xf]
        %v2433 = vld [vmem:[#allocation11 + $0x78] sm:$0xf]
        %v2434 = vld [vmem:[#allocation11 + $0x7c] sm:$0xf]
        %v2451 = vunpack.c.l.b16 %v2419
        %v2452 = vunpack.c.l.b16 %v2420
        %v2453 = vunpack.c.l.b16 %v2421
        %v2454 = vunpack.c.l.b16 %v2422
        %v2455 = vunpack.c.l.b16 %v2423
        %v2456 = vunpack.c.l.b16 %v2424
        %v2457 = vunpack.c.l.b16 %v2425
        %v2458 = vunpack.c.l.b16 %v2426
        %v2459 = vunpack.c.l.b16 %v2427
        %v2460 = vunpack.c.l.b16 %v2428
        %v2461 = vunpack.c.l.b16 %v2429
        %v2462 = vunpack.c.l.b16 %v2430
        %v2463 = vunpack.c.l.b16 %v2431
        %v2464 = vunpack.c.l.b16 %v2432
        %v2465 = vunpack.c.l.b16 %v2433
        %v2466 = vunpack.c.l.b16 %v2434
        %v2467 = vpack.c.b16 %v2452, %v2451
        %v2468 = vpack.c.b16 %v2454, %v2453
        %v2469 = vpack.c.b16 %v2456, %v2455
        %v2470 = vpack.c.b16 %v2458, %v2457
        %v2471 = vpack.c.b16 %v2460, %v2459
        %v2472 = vpack.c.b16 %v2462, %v2461
        %v2473 = vpack.c.b16 %v2464, %v2463
        %v2474 = vpack.c.b16 %v2466, %v2465
        %2483 = vmatpush.bf16.msra.mxu0 %v2474
        %2484 = vmatpush.bf16.msra.mxu0 %v2473
        %2485 = vmatpush.bf16.msra.mxu0 %v2472
        %2486 = vmatpush.bf16.msra.mxu0 %v2471
        %2487 = vmatpush.bf16.msra.mxu0 %v2470
        %2488 = vmatpush.bf16.msra.mxu0 %v2469
        %2489 = vmatpush.bf16.msra.mxu0 %v2468
        %2490 = vmatpush.bf16.msra.mxu0 %v2467
        %2491 = vmatmul.bf16.gmra.mxu0 %v2411
        %v2492 = vpop.f32.mrf.mxu0
        %v2493 = vadd.f32 0.0, %v2492
        %v2494 = vpop.f32.mrf.mxu0
        %v2495 = vadd.f32 0.0, %v2494
        %2496 = vmatmul.bf16.gmra.mxu0 %v2412
        %v2497 = vpop.f32.mrf.mxu0
        %v2498 = vadd.f32 0.0, %v2497
        %v2499 = vpop.f32.mrf.mxu0
        %v2500 = vadd.f32 0.0, %v2499
        %2501 = vmatmul.bf16.gmra.mxu0 %v2413
        %v2502 = vpop.f32.mrf.mxu0
        %v2503 = vadd.f32 0.0, %v2502
        %v2504 = vpop.f32.mrf.mxu0
        %v2505 = vadd.f32 0.0, %v2504
        %2506 = vmatmul.bf16.gmra.mxu0 %v2414
        %v2507 = vpop.f32.mrf.mxu0
        %v2508 = vadd.f32 0.0, %v2507
        %v2509 = vpop.f32.mrf.mxu0
        %v2510 = vadd.f32 0.0, %v2509
        %2511 = vmatmul.bf16.gmra.mxu0 %v2415
        %v2512 = vpop.f32.mrf.mxu0
        %v2513 = vadd.f32 0.0, %v2512
        %v2514 = vpop.f32.mrf.mxu0
        %v2515 = vadd.f32 0.0, %v2514
        %2516 = vmatmul.bf16.gmra.mxu0 %v2416
        %v2517 = vpop.f32.mrf.mxu0
        %v2518 = vadd.f32 0.0, %v2517
        %v2519 = vpop.f32.mrf.mxu0
        %v2520 = vadd.f32 0.0, %v2519
        %2521 = vmatmul.bf16.gmra.mxu0 %v2417
        %v2522 = vpop.f32.mrf.mxu0
        %v2523 = vadd.f32 0.0, %v2522
        %v2524 = vpop.f32.mrf.mxu0
        %v2525 = vadd.f32 0.0, %v2524
        %2526 = vmatmul.bf16.gmra.mxu0 %v2418
        %v2527 = vpop.f32.mrf.mxu0
        %v2528 = vadd.f32 0.0, %v2527
        %v2529 = vpop.f32.mrf.mxu0
        %v2530 = vadd.f32 0.0, %v2529
        %2531 = vdwg.mxu0
        %v2532 = vadd.f32 %v2379, %v2493
        %v2533 = vadd.f32 %v2380, %v2495
        %v2534 = vadd.f32 %v2381, %v2498
        %v2535 = vadd.f32 %v2382, %v2500
        %v2536 = vadd.f32 %v2383, %v2503
        %v2537 = vadd.f32 %v2384, %v2505
        %v2538 = vadd.f32 %v2385, %v2508
        %v2539 = vadd.f32 %v2386, %v2510
        %v2540 = vadd.f32 %v2387, %v2513
        %v2541 = vadd.f32 %v2388, %v2515
        %v2542 = vadd.f32 %v2389, %v2518
        %v2543 = vadd.f32 %v2390, %v2520
        %v2544 = vadd.f32 %v2391, %v2523
        %v2545 = vadd.f32 %v2392, %v2525
        %v2546 = vadd.f32 %v2393, %v2528
        %v2547 = vadd.f32 %v2394, %v2530
        %v2548 = vld [vmem:[#allocation2 + $0x9] sm:$0xff]
        %v2549 = vld [vmem:[#allocation2 + $0x11] sm:$0xff]
        %v2550 = vld [vmem:[#allocation2 + $0x19] sm:$0xff]
        %v2551 = vld [vmem:[#allocation2 + $0x21] sm:$0xff]
        %v2552 = vld [vmem:[#allocation2 + $0x29] sm:$0xff]
        %v2553 = vld [vmem:[#allocation2 + $0x31] sm:$0xff]
        %v2554 = vld [vmem:[#allocation2 + $0x39] sm:$0xff]
        %v2555 = vld [vmem:[#allocation2 + $0x41] sm:$0xff]
        %v2556 = vld [vmem:[#allocation2 + $0x49] sm:$0xff]
        %v2557 = vld [vmem:[#allocation2 + $0x51] sm:$0xff]
        %v2558 = vld [vmem:[#allocation2 + $0x59] sm:$0xff]
        %v2559 = vld [vmem:[#allocation2 + $0x61] sm:$0xff]
        %v2560 = vld [vmem:[#allocation2 + $0x69] sm:$0xff]
        %v2561 = vld [vmem:[#allocation2 + $0x71] sm:$0xff]
        %v2562 = vld [vmem:[#allocation2 + $0x79] sm:$0xff]
        %v2563 = vld [vmem:[#allocation2 + $0x81] sm:$0xff]
        %v2564 = vpack.c.bf16 %v2549, %v2548
        %v2565 = vpack.c.bf16 %v2551, %v2550
        %v2566 = vpack.c.bf16 %v2553, %v2552
        %v2567 = vpack.c.bf16 %v2555, %v2554
        %v2568 = vpack.c.bf16 %v2557, %v2556
        %v2569 = vpack.c.bf16 %v2559, %v2558
        %v2570 = vpack.c.bf16 %v2561, %v2560
        %v2571 = vpack.c.bf16 %v2563, %v2562
        %v2572 = vld [vmem:[#allocation11 + $0x80] sm:$0xf]
        %v2573 = vld [vmem:[#allocation11 + $0x84] sm:$0xf]
        %v2574 = vld [vmem:[#allocation11 + $0x88] sm:$0xf]
        %v2575 = vld [vmem:[#allocation11 + $0x8c] sm:$0xf]
        %v2576 = vld [vmem:[#allocation11 + $0x90] sm:$0xf]
        %v2577 = vld [vmem:[#allocation11 + $0x94] sm:$0xf]
        %v2578 = vld [vmem:[#allocation11 + $0x98] sm:$0xf]
        %v2579 = vld [vmem:[#allocation11 + $0x9c] sm:$0xf]
        %v2580 = vld [vmem:[#allocation11 + $0xa0] sm:$0xf]
        %v2581 = vld [vmem:[#allocation11 + $0xa4] sm:$0xf]
        %v2582 = vld [vmem:[#allocation11 + $0xa8] sm:$0xf]
        %v2583 = vld [vmem:[#allocation11 + $0xac] sm:$0xf]
        %v2584 = vld [vmem:[#allocation11 + $0xb0] sm:$0xf]
        %v2585 = vld [vmem:[#allocation11 + $0xb4] sm:$0xf]
        %v2586 = vld [vmem:[#allocation11 + $0xb8] sm:$0xf]
        %v2587 = vld [vmem:[#allocation11 + $0xbc] sm:$0xf]
        %v2604 = vunpack.c.l.b16 %v2572
        %v2605 = vunpack.c.l.b16 %v2573
        %v2606 = vunpack.c.l.b16 %v2574
        %v2607 = vunpack.c.l.b16 %v2575
        %v2608 = vunpack.c.l.b16 %v2576
        %v2609 = vunpack.c.l.b16 %v2577
        %v2610 = vunpack.c.l.b16 %v2578
        %v2611 = vunpack.c.l.b16 %v2579
        %v2612 = vunpack.c.l.b16 %v2580
        %v2613 = vunpack.c.l.b16 %v2581
        %v2614 = vunpack.c.l.b16 %v2582
        %v2615 = vunpack.c.l.b16 %v2583
        %v2616 = vunpack.c.l.b16 %v2584
        %v2617 = vunpack.c.l.b16 %v2585
        %v2618 = vunpack.c.l.b16 %v2586
        %v2619 = vunpack.c.l.b16 %v2587
        %v2620 = vpack.c.b16 %v2605, %v2604
        %v2621 = vpack.c.b16 %v2607, %v2606
        %v2622 = vpack.c.b16 %v2609, %v2608
        %v2623 = vpack.c.b16 %v2611, %v2610
        %v2624 = vpack.c.b16 %v2613, %v2612
        %v2625 = vpack.c.b16 %v2615, %v2614
        %v2626 = vpack.c.b16 %v2617, %v2616
        %v2627 = vpack.c.b16 %v2619, %v2618
        %2636 = vmatpush.bf16.msra.mxu0 %v2627
        %2637 = vmatpush.bf16.msra.mxu0 %v2626
        %2638 = vmatpush.bf16.msra.mxu0 %v2625
        %2639 = vmatpush.bf16.msra.mxu0 %v2624
        %2640 = vmatpush.bf16.msra.mxu0 %v2623
        %2641 = vmatpush.bf16.msra.mxu0 %v2622
        %2642 = vmatpush.bf16.msra.mxu0 %v2621
        %2643 = vmatpush.bf16.msra.mxu0 %v2620
        %2644 = vmatmul.bf16.gmra.mxu0 %v2564
        %v2645 = vpop.f32.mrf.mxu0
        %v2646 = vadd.f32 0.0, %v2645
        %v2647 = vpop.f32.mrf.mxu0
        %v2648 = vadd.f32 0.0, %v2647
        %2649 = vmatmul.bf16.gmra.mxu0 %v2565
        %v2650 = vpop.f32.mrf.mxu0
        %v2651 = vadd.f32 0.0, %v2650
        %v2652 = vpop.f32.mrf.mxu0
        %v2653 = vadd.f32 0.0, %v2652
        %2654 = vmatmul.bf16.gmra.mxu0 %v2566
        %v2655 = vpop.f32.mrf.mxu0
        %v2656 = vadd.f32 0.0, %v2655
        %v2657 = vpop.f32.mrf.mxu0
        %v2658 = vadd.f32 0.0, %v2657
        %2659 = vmatmul.bf16.gmra.mxu0 %v2567
        %v2660 = vpop.f32.mrf.mxu0
        %v2661 = vadd.f32 0.0, %v2660
        %v2662 = vpop.f32.mrf.mxu0
        %v2663 = vadd.f32 0.0, %v2662
        %2664 = vmatmul.bf16.gmra.mxu0 %v2568
        %v2665 = vpop.f32.mrf.mxu0
        %v2666 = vadd.f32 0.0, %v2665
        %v2667 = vpop.f32.mrf.mxu0
        %v2668 = vadd.f32 0.0, %v2667
        %2669 = vmatmul.bf16.gmra.mxu0 %v2569
        %v2670 = vpop.f32.mrf.mxu0
        %v2671 = vadd.f32 0.0, %v2670
        %v2672 = vpop.f32.mrf.mxu0
        %v2673 = vadd.f32 0.0, %v2672
        %2674 = vmatmul.bf16.gmra.mxu0 %v2570
        %v2675 = vpop.f32.mrf.mxu0
        %v2676 = vadd.f32 0.0, %v2675
        %v2677 = vpop.f32.mrf.mxu0
        %v2678 = vadd.f32 0.0, %v2677
        %2679 = vmatmul.bf16.gmra.mxu0 %v2571
        %v2680 = vpop.f32.mrf.mxu0
        %v2681 = vadd.f32 0.0, %v2680
        %v2682 = vpop.f32.mrf.mxu0
        %v2683 = vadd.f32 0.0, %v2682
        %2684 = vdwg.mxu0
        %v2685 = vsel %vm2178, 1, 0
        %v2686 = vsel %vm2179, 1, 0
        %v2687 = vsel %vm2180, 1, 0
        %v2688 = vsel %vm2181, 1, 0
        %v2689 = vsel %vm2182, 1, 0
        %v2690 = vsel %vm2183, 1, 0
        %v2691 = vsel %vm2184, 1, 0
        %v2692 = vsel %vm2185, 1, 0
        %v2693 = vsel %vm2186, 1, 0
        %v2694 = vsel %vm2187, 1, 0
        %v2695 = vsel %vm2188, 1, 0
        %v2696 = vsel %vm2189, 1, 0
        %v2697 = vsel %vm2190, 1, 0
        %v2698 = vsel %vm2191, 1, 0
        %v2699 = vsel %vm2192, 1, 0
        %v2700 = vsel %vm2193, 1, 0
        %vm2701 = vcmp.eq.s32.totalorder %v2685, 1
        %vm2702 = vcmp.eq.s32.totalorder %v2686, 1
        %vm2703 = vcmp.eq.s32.totalorder %v2687, 1
        %vm2704 = vcmp.eq.s32.totalorder %v2688, 1
        %vm2705 = vcmp.eq.s32.totalorder %v2689, 1
        %vm2706 = vcmp.eq.s32.totalorder %v2690, 1
        %vm2707 = vcmp.eq.s32.totalorder %v2691, 1
        %vm2708 = vcmp.eq.s32.totalorder %v2692, 1
        %vm2709 = vcmp.eq.s32.totalorder %v2693, 1
        %vm2710 = vcmp.eq.s32.totalorder %v2694, 1
        %vm2711 = vcmp.eq.s32.totalorder %v2695, 1
        %vm2712 = vcmp.eq.s32.totalorder %v2696, 1
        %vm2713 = vcmp.eq.s32.totalorder %v2697, 1
        %vm2714 = vcmp.eq.s32.totalorder %v2698, 1
        %vm2715 = vcmp.eq.s32.totalorder %v2699, 1
        %vm2716 = vcmp.eq.s32.totalorder %v2700, 1
        %v2717 = vsel %vm2701, %v2646, 0.0
        %v2718 = vsel %vm2702, %v2648, 0.0
        %v2719 = vsel %vm2703, %v2651, 0.0
        %v2720 = vsel %vm2704, %v2653, 0.0
        %v2721 = vsel %vm2705, %v2656, 0.0
        %v2722 = vsel %vm2706, %v2658, 0.0
        %v2723 = vsel %vm2707, %v2661, 0.0
        %v2724 = vsel %vm2708, %v2663, 0.0
        %v2725 = vsel %vm2709, %v2666, 0.0
        %v2726 = vsel %vm2710, %v2668, 0.0
        %v2727 = vsel %vm2711, %v2671, 0.0
        %v2728 = vsel %vm2712, %v2673, 0.0
        %v2729 = vsel %vm2713, %v2676, 0.0
        %v2730 = vsel %vm2714, %v2678, 0.0
        %v2731 = vsel %vm2715, %v2681, 0.0
        %v2732 = vsel %vm2716, %v2683, 0.0
        %v2733 = vadd.f32 %v2532, %v2717
        %v2734 = vadd.f32 %v2533, %v2718
        %v2735 = vadd.f32 %v2534, %v2719
        %v2736 = vadd.f32 %v2535, %v2720
        %v2737 = vadd.f32 %v2536, %v2721
        %v2738 = vadd.f32 %v2537, %v2722
        %v2739 = vadd.f32 %v2538, %v2723
        %v2740 = vadd.f32 %v2539, %v2724
        %v2741 = vadd.f32 %v2540, %v2725
        %v2742 = vadd.f32 %v2541, %v2726
        %v2743 = vadd.f32 %v2542, %v2727
        %v2744 = vadd.f32 %v2543, %v2728
        %v2745 = vadd.f32 %v2544, %v2729
        %v2746 = vadd.f32 %v2545, %v2730
        %v2747 = vadd.f32 %v2546, %v2731
        %v2748 = vadd.f32 %v2547, %v2732
        %v2749 = vld [vmem:[#allocation2 + $0x17] sm:$0xff]
        %v2750 = vld [vmem:[#allocation2 + $0x1f] sm:$0xff]
        %v2751 = vld [vmem:[#allocation2 + $0x27] sm:$0xff]
        %v2752 = vld [vmem:[#allocation2 + $0x2f] sm:$0xff]
        %v2753 = vld [vmem:[#allocation2 + $0x37] sm:$0xff]
        %v2754 = vld [vmem:[#allocation2 + $0x3f] sm:$0xff]
        %v2755 = vld [vmem:[#allocation2 + $0x47] sm:$0xff]
        %v2756 = vld [vmem:[#allocation2 + $0x4f] sm:$0xff]
        %v2757 = vld [vmem:[#allocation2 + $0x57] sm:$0xff]
        %v2758 = vld [vmem:[#allocation2 + $0x5f] sm:$0xff]
        %v2759 = vld [vmem:[#allocation2 + $0x67] sm:$0xff]
        %v2760 = vld [vmem:[#allocation2 + $0x6f] sm:$0xff]
        %v2761 = vld [vmem:[#allocation2 + $0x77] sm:$0xff]
        %v2762 = vld [vmem:[#allocation2 + $0x7f] sm:$0xff]
        %v2763 = vld [vmem:[#allocation2 + $0x87] sm:$0xff]
        %v2764 = vld [vmem:[#allocation2 + $0x8f] sm:$0xff]
        %v2765 = vpack.c.bf16 %v2750, %v2749
        %v2766 = vpack.c.bf16 %v2752, %v2751
        %v2767 = vpack.c.bf16 %v2754, %v2753
        %v2768 = vpack.c.bf16 %v2756, %v2755
        %v2769 = vpack.c.bf16 %v2758, %v2757
        %v2770 = vpack.c.bf16 %v2760, %v2759
        %v2771 = vpack.c.bf16 %v2762, %v2761
        %v2772 = vpack.c.bf16 %v2764, %v2763
        %v2773 = vld [vmem:[#allocation11 + $0xc0] sm:$0xf]
        %v2774 = vld [vmem:[#allocation11 + $0xc4] sm:$0xf]
        %v2775 = vld [vmem:[#allocation11 + $0xc8] sm:$0xf]
        %v2776 = vld [vmem:[#allocation11 + $0xcc] sm:$0xf]
        %v2777 = vld [vmem:[#allocation11 + $0xd0] sm:$0xf]
        %v2778 = vld [vmem:[#allocation11 + $0xd4] sm:$0xf]
        %v2779 = vld [vmem:[#allocation11 + $0xd8] sm:$0xf]
        %v2780 = vld [vmem:[#allocation11 + $0xdc] sm:$0xf]
        %v2781 = vld [vmem:[#allocation11 + $0xe0] sm:$0xf]
        %v2782 = vld [vmem:[#allocation11 + $0xe4] sm:$0xf]
        %v2783 = vld [vmem:[#allocation11 + $0xe8] sm:$0xf]
        %v2784 = vld [vmem:[#allocation11 + $0xec] sm:$0xf]
        %v2785 = vld [vmem:[#allocation11 + $0xf0] sm:$0xf]
        %v2786 = vld [vmem:[#allocation11 + $0xf4] sm:$0xf]
        %v2787 = vld [vmem:[#allocation11 + $0xf8] sm:$0xf]
        %v2788 = vld [vmem:[#allocation11 + $0xfc] sm:$0xf]
        %v2805 = vunpack.c.l.b16 %v2773
        %v2806 = vunpack.c.l.b16 %v2774
        %v2807 = vunpack.c.l.b16 %v2775
        %v2808 = vunpack.c.l.b16 %v2776
        %v2809 = vunpack.c.l.b16 %v2777
        %v2810 = vunpack.c.l.b16 %v2778
        %v2811 = vunpack.c.l.b16 %v2779
        %v2812 = vunpack.c.l.b16 %v2780
        %v2813 = vunpack.c.l.b16 %v2781
        %v2814 = vunpack.c.l.b16 %v2782
        %v2815 = vunpack.c.l.b16 %v2783
        %v2816 = vunpack.c.l.b16 %v2784
        %v2817 = vunpack.c.l.b16 %v2785
        %v2818 = vunpack.c.l.b16 %v2786
        %v2819 = vunpack.c.l.b16 %v2787
        %v2820 = vunpack.c.l.b16 %v2788
        %v2821 = vpack.c.b16 %v2806, %v2805
        %v2822 = vpack.c.b16 %v2808, %v2807
        %v2823 = vpack.c.b16 %v2810, %v2809
        %v2824 = vpack.c.b16 %v2812, %v2811
        %v2825 = vpack.c.b16 %v2814, %v2813
        %v2826 = vpack.c.b16 %v2816, %v2815
        %v2827 = vpack.c.b16 %v2818, %v2817
        %v2828 = vpack.c.b16 %v2820, %v2819
        %2837 = vmatpush.bf16.msra.mxu0 %v2828
        %2838 = vmatpush.bf16.msra.mxu0 %v2827
        %2839 = vmatpush.bf16.msra.mxu0 %v2826
        %2840 = vmatpush.bf16.msra.mxu0 %v2825
        %2841 = vmatpush.bf16.msra.mxu0 %v2824
        %2842 = vmatpush.bf16.msra.mxu0 %v2823
        %2843 = vmatpush.bf16.msra.mxu0 %v2822
        %2844 = vmatpush.bf16.msra.mxu0 %v2821
        %2845 = vmatmul.bf16.gmra.mxu0 %v2765
        %v2846 = vpop.f32.mrf.mxu0
        %v2847 = vadd.f32 0.0, %v2846
        %v2848 = vpop.f32.mrf.mxu0
        %v2849 = vadd.f32 0.0, %v2848
        %2850 = vmatmul.bf16.gmra.mxu0 %v2766
        %v2851 = vpop.f32.mrf.mxu0
        %v2852 = vadd.f32 0.0, %v2851
        %v2853 = vpop.f32.mrf.mxu0
        %v2854 = vadd.f32 0.0, %v2853
        %2855 = vmatmul.bf16.gmra.mxu0 %v2767
        %v2856 = vpop.f32.mrf.mxu0
        %v2857 = vadd.f32 0.0, %v2856
        %v2858 = vpop.f32.mrf.mxu0
        %v2859 = vadd.f32 0.0, %v2858
        %2860 = vmatmul.bf16.gmra.mxu0 %v2768
        %v2861 = vpop.f32.mrf.mxu0
        %v2862 = vadd.f32 0.0, %v2861
        %v2863 = vpop.f32.mrf.mxu0
        %v2864 = vadd.f32 0.0, %v2863
        %2865 = vmatmul.bf16.gmra.mxu0 %v2769
        %v2866 = vpop.f32.mrf.mxu0
        %v2867 = vadd.f32 0.0, %v2866
        %v2868 = vpop.f32.mrf.mxu0
        %v2869 = vadd.f32 0.0, %v2868
        %2870 = vmatmul.bf16.gmra.mxu0 %v2770
        %v2871 = vpop.f32.mrf.mxu0
        %v2872 = vadd.f32 0.0, %v2871
        %v2873 = vpop.f32.mrf.mxu0
        %v2874 = vadd.f32 0.0, %v2873
        %2875 = vmatmul.bf16.gmra.mxu0 %v2771
        %v2876 = vpop.f32.mrf.mxu0
        %v2877 = vadd.f32 0.0, %v2876
        %v2878 = vpop.f32.mrf.mxu0
        %v2879 = vadd.f32 0.0, %v2878
        %2880 = vmatmul.bf16.gmra.mxu0 %v2772
        %v2881 = vpop.f32.mrf.mxu0
        %v2882 = vadd.f32 0.0, %v2881
        %v2883 = vpop.f32.mrf.mxu0
        %v2884 = vadd.f32 0.0, %v2883
        %2885 = vdwg.mxu0
        %v2886 = vsel %vm2347, %v2847, 0.0
        %v2887 = vsel %vm2348, %v2849, 0.0
        %v2888 = vsel %vm2349, %v2852, 0.0
        %v2889 = vsel %vm2350, %v2854, 0.0
        %v2890 = vsel %vm2351, %v2857, 0.0
        %v2891 = vsel %vm2352, %v2859, 0.0
        %v2892 = vsel %vm2353, %v2862, 0.0
        %v2893 = vsel %vm2354, %v2864, 0.0
        %v2894 = vsel %vm2355, %v2867, 0.0
        %v2895 = vsel %vm2356, %v2869, 0.0
        %v2896 = vsel %vm2357, %v2872, 0.0
        %v2897 = vsel %vm2358, %v2874, 0.0
        %v2898 = vsel %vm2359, %v2877, 0.0
        %v2899 = vsel %vm2360, %v2879, 0.0
        %v2900 = vsel %vm2361, %v2882, 0.0
        %v2901 = vsel %vm2362, %v2884, 0.0
        %v2902 = vadd.f32 %v2733, %v2886
        %v2903 = vadd.f32 %v2734, %v2887
        %v2904 = vadd.f32 %v2735, %v2888
        %v2905 = vadd.f32 %v2736, %v2889
        %v2906 = vadd.f32 %v2737, %v2890
        %v2907 = vadd.f32 %v2738, %v2891
        %v2908 = vadd.f32 %v2739, %v2892
        %v2909 = vadd.f32 %v2740, %v2893
        %v2910 = vadd.f32 %v2741, %v2894
        %v2911 = vadd.f32 %v2742, %v2895
        %v2912 = vadd.f32 %v2743, %v2896
        %v2913 = vadd.f32 %v2744, %v2897
        %v2914 = vadd.f32 %v2745, %v2898
        %v2915 = vadd.f32 %v2746, %v2899
        %v2916 = vadd.f32 %v2747, %v2900
        %v2917 = vadd.f32 %v2748, %v2901
        %v2918 = vld [vmem:[#allocation2 + $0x18] sm:$0xff]
        %v2919 = vld [vmem:[#allocation2 + $0x20] sm:$0xff]
        %v2920 = vld [vmem:[#allocation2 + $0x28] sm:$0xff]
        %v2921 = vld [vmem:[#allocation2 + $0x30] sm:$0xff]
        %v2922 = vld [vmem:[#allocation2 + $0x38] sm:$0xff]
        %v2923 = vld [vmem:[#allocation2 + $0x40] sm:$0xff]
        %v2924 = vld [vmem:[#allocation2 + $0x48] sm:$0xff]
        %v2925 = vld [vmem:[#allocation2 + $0x50] sm:$0xff]
        %v2926 = vld [vmem:[#allocation2 + $0x58] sm:$0xff]
        %v2927 = vld [vmem:[#allocation2 + $0x60] sm:$0xff]
        %v2928 = vld [vmem:[#allocation2 + $0x68] sm:$0xff]
        %v2929 = vld [vmem:[#allocation2 + $0x70] sm:$0xff]
        %v2930 = vld [vmem:[#allocation2 + $0x78] sm:$0xff]
        %v2931 = vld [vmem:[#allocation2 + $0x80] sm:$0xff]
        %v2932 = vld [vmem:[#allocation2 + $0x88] sm:$0xff]
        %v2933 = vld [vmem:[#allocation2 + $0x90] sm:$0xff]
        %v2934 = vpack.c.bf16 %v2919, %v2918
        %v2935 = vpack.c.bf16 %v2921, %v2920
        %v2936 = vpack.c.bf16 %v2923, %v2922
        %v2937 = vpack.c.bf16 %v2925, %v2924
        %v2938 = vpack.c.bf16 %v2927, %v2926
        %v2939 = vpack.c.bf16 %v2929, %v2928
        %v2940 = vpack.c.bf16 %v2931, %v2930
        %v2941 = vpack.c.bf16 %v2933, %v2932
        %v2942 = vld [vmem:[#allocation11 + $0x100] sm:$0xf]
        %v2943 = vld [vmem:[#allocation11 + $0x104] sm:$0xf]
        %v2944 = vld [vmem:[#allocation11 + $0x108] sm:$0xf]
        %v2945 = vld [vmem:[#allocation11 + $0x10c] sm:$0xf]
        %v2946 = vld [vmem:[#allocation11 + $0x110] sm:$0xf]
        %v2947 = vld [vmem:[#allocation11 + $0x114] sm:$0xf]
        %v2948 = vld [vmem:[#allocation11 + $0x118] sm:$0xf]
        %v2949 = vld [vmem:[#allocation11 + $0x11c] sm:$0xf]
        %v2950 = vld [vmem:[#allocation11 + $0x120] sm:$0xf]
        %v2951 = vld [vmem:[#allocation11 + $0x124] sm:$0xf]
        %v2952 = vld [vmem:[#allocation11 + $0x128] sm:$0xf]
        %v2953 = vld [vmem:[#allocation11 + $0x12c] sm:$0xf]
        %v2954 = vld [vmem:[#allocation11 + $0x130] sm:$0xf]
        %v2955 = vld [vmem:[#allocation11 + $0x134] sm:$0xf]
        %v2956 = vld [vmem:[#allocation11 + $0x138] sm:$0xf]
        %v2957 = vld [vmem:[#allocation11 + $0x13c] sm:$0xf]
        %v2974 = vunpack.c.l.b16 %v2942
        %v2975 = vunpack.c.l.b16 %v2943
        %v2976 = vunpack.c.l.b16 %v2944
        %v2977 = vunpack.c.l.b16 %v2945
        %v2978 = vunpack.c.l.b16 %v2946
        %v2979 = vunpack.c.l.b16 %v2947
        %v2980 = vunpack.c.l.b16 %v2948
        %v2981 = vunpack.c.l.b16 %v2949
        %v2982 = vunpack.c.l.b16 %v2950
        %v2983 = vunpack.c.l.b16 %v2951
        %v2984 = vunpack.c.l.b16 %v2952
        %v2985 = vunpack.c.l.b16 %v2953
        %v2986 = vunpack.c.l.b16 %v2954
        %v2987 = vunpack.c.l.b16 %v2955
        %v2988 = vunpack.c.l.b16 %v2956
        %v2989 = vunpack.c.l.b16 %v2957
        %v2990 = vpack.c.b16 %v2975, %v2974
        %v2991 = vpack.c.b16 %v2977, %v2976
        %v2992 = vpack.c.b16 %v2979, %v2978
        %v2993 = vpack.c.b16 %v2981, %v2980
        %v2994 = vpack.c.b16 %v2983, %v2982
        %v2995 = vpack.c.b16 %v2985, %v2984
        %v2996 = vpack.c.b16 %v2987, %v2986
        %v2997 = vpack.c.b16 %v2989, %v2988
        %3006 = vmatpush.bf16.msra.mxu0 %v2997
        %3007 = vmatpush.bf16.msra.mxu0 %v2996
        %3008 = vmatpush.bf16.msra.mxu0 %v2995
        %3009 = vmatpush.bf16.msra.mxu0 %v2994
        %3010 = vmatpush.bf16.msra.mxu0 %v2993
        %3011 = vmatpush.bf16.msra.mxu0 %v2992
        %3012 = vmatpush.bf16.msra.mxu0 %v2991
        %3013 = vmatpush.bf16.msra.mxu0 %v2990
        %3014 = vmatmul.bf16.gmra.mxu0 %v2934
        %v3015 = vpop.f32.mrf.mxu0
        %v3016 = vadd.f32 0.0, %v3015
        %v3017 = vpop.f32.mrf.mxu0
        %v3018 = vadd.f32 0.0, %v3017
        %3019 = vmatmul.bf16.gmra.mxu0 %v2935
        %v3020 = vpop.f32.mrf.mxu0
        %v3021 = vadd.f32 0.0, %v3020
        %v3022 = vpop.f32.mrf.mxu0
        %v3023 = vadd.f32 0.0, %v3022
        %3024 = vmatmul.bf16.gmra.mxu0 %v2936
        %v3025 = vpop.f32.mrf.mxu0
        %v3026 = vadd.f32 0.0, %v3025
        %v3027 = vpop.f32.mrf.mxu0
        %v3028 = vadd.f32 0.0, %v3027
        %3029 = vmatmul.bf16.gmra.mxu0 %v2937
        %v3030 = vpop.f32.mrf.mxu0
        %v3031 = vadd.f32 0.0, %v3030
        %v3032 = vpop.f32.mrf.mxu0
        %v3033 = vadd.f32 0.0, %v3032
        %3034 = vmatmul.bf16.gmra.mxu0 %v2938
        %v3035 = vpop.f32.mrf.mxu0
        %v3036 = vadd.f32 0.0, %v3035
        %v3037 = vpop.f32.mrf.mxu0
        %v3038 = vadd.f32 0.0, %v3037
        %3039 = vmatmul.bf16.gmra.mxu0 %v2939
        %v3040 = vpop.f32.mrf.mxu0
        %v3041 = vadd.f32 0.0, %v3040
        %v3042 = vpop.f32.mrf.mxu0
        %v3043 = vadd.f32 0.0, %v3042
        %3044 = vmatmul.bf16.gmra.mxu0 %v2940
        %v3045 = vpop.f32.mrf.mxu0
        %v3046 = vadd.f32 0.0, %v3045
        %v3047 = vpop.f32.mrf.mxu0
        %v3048 = vadd.f32 0.0, %v3047
        %3049 = vmatmul.bf16.gmra.mxu0 %v2941
        %v3050 = vpop.f32.mrf.mxu0
        %v3051 = vadd.f32 0.0, %v3050
        %v3052 = vpop.f32.mrf.mxu0
        %v3053 = vadd.f32 0.0, %v3052
        %3054 = vdwg.mxu0
        %v3055 = vadd.f32 %v2902, %v3016
        %v3056 = vadd.f32 %v2903, %v3018
        %v3057 = vadd.f32 %v2904, %v3021
        %v3058 = vadd.f32 %v2905, %v3023
        %v3059 = vadd.f32 %v2906, %v3026
        %v3060 = vadd.f32 %v2907, %v3028
        %v3061 = vadd.f32 %v2908, %v3031
        %v3062 = vadd.f32 %v2909, %v3033
        %v3063 = vadd.f32 %v2910, %v3036
        %v3064 = vadd.f32 %v2911, %v3038
        %v3065 = vadd.f32 %v2912, %v3041
        %v3066 = vadd.f32 %v2913, %v3043
        %v3067 = vadd.f32 %v2914, %v3046
        %v3068 = vadd.f32 %v2915, %v3048
        %v3069 = vadd.f32 %v2916, %v3051
        %v3070 = vadd.f32 %v2917, %v3053
        %v3071 = vld [vmem:[#allocation2 + $0x19] sm:$0xff]
        %v3072 = vld [vmem:[#allocation2 + $0x21] sm:$0xff]
        %v3073 = vld [vmem:[#allocation2 + $0x29] sm:$0xff]
        %v3074 = vld [vmem:[#allocation2 + $0x31] sm:$0xff]
        %v3075 = vld [vmem:[#allocation2 + $0x39] sm:$0xff]
        %v3076 = vld [vmem:[#allocation2 + $0x41] sm:$0xff]
        %v3077 = vld [vmem:[#allocation2 + $0x49] sm:$0xff]
        %v3078 = vld [vmem:[#allocation2 + $0x51] sm:$0xff]
        %v3079 = vld [vmem:[#allocation2 + $0x59] sm:$0xff]
        %v3080 = vld [vmem:[#allocation2 + $0x61] sm:$0xff]
        %v3081 = vld [vmem:[#allocation2 + $0x69] sm:$0xff]
        %v3082 = vld [vmem:[#allocation2 + $0x71] sm:$0xff]
        %v3083 = vld [vmem:[#allocation2 + $0x79] sm:$0xff]
        %v3084 = vld [vmem:[#allocation2 + $0x81] sm:$0xff]
        %v3085 = vld [vmem:[#allocation2 + $0x89] sm:$0xff]
        %v3086 = vld [vmem:[#allocation2 + $0x91] sm:$0xff]
        %v3087 = vpack.c.bf16 %v3072, %v3071
        %v3088 = vpack.c.bf16 %v3074, %v3073
        %v3089 = vpack.c.bf16 %v3076, %v3075
        %v3090 = vpack.c.bf16 %v3078, %v3077
        %v3091 = vpack.c.bf16 %v3080, %v3079
        %v3092 = vpack.c.bf16 %v3082, %v3081
        %v3093 = vpack.c.bf16 %v3084, %v3083
        %v3094 = vpack.c.bf16 %v3086, %v3085
        %v3095 = vld [vmem:[#allocation11 + $0x140] sm:$0xf]
        %v3096 = vld [vmem:[#allocation11 + $0x144] sm:$0xf]
        %v3097 = vld [vmem:[#allocation11 + $0x148] sm:$0xf]
        %v3098 = vld [vmem:[#allocation11 + $0x14c] sm:$0xf]
        %v3099 = vld [vmem:[#allocation11 + $0x150] sm:$0xf]
        %v3100 = vld [vmem:[#allocation11 + $0x154] sm:$0xf]
        %v3101 = vld [vmem:[#allocation11 + $0x158] sm:$0xf]
        %v3102 = vld [vmem:[#allocation11 + $0x15c] sm:$0xf]
        %v3103 = vld [vmem:[#allocation11 + $0x160] sm:$0xf]
        %v3104 = vld [vmem:[#allocation11 + $0x164] sm:$0xf]
        %v3105 = vld [vmem:[#allocation11 + $0x168] sm:$0xf]
        %v3106 = vld [vmem:[#allocation11 + $0x16c] sm:$0xf]
        %v3107 = vld [vmem:[#allocation11 + $0x170] sm:$0xf]
        %v3108 = vld [vmem:[#allocation11 + $0x174] sm:$0xf]
        %v3109 = vld [vmem:[#allocation11 + $0x178] sm:$0xf]
        %v3110 = vld [vmem:[#allocation11 + $0x17c] sm:$0xf]
        %v3127 = vunpack.c.l.b16 %v3095
        %v3128 = vunpack.c.l.b16 %v3096
        %v3129 = vunpack.c.l.b16 %v3097
        %v3130 = vunpack.c.l.b16 %v3098
        %v3131 = vunpack.c.l.b16 %v3099
        %v3132 = vunpack.c.l.b16 %v3100
        %v3133 = vunpack.c.l.b16 %v3101
        %v3134 = vunpack.c.l.b16 %v3102
        %v3135 = vunpack.c.l.b16 %v3103
        %v3136 = vunpack.c.l.b16 %v3104
        %v3137 = vunpack.c.l.b16 %v3105
        %v3138 = vunpack.c.l.b16 %v3106
        %v3139 = vunpack.c.l.b16 %v3107
        %v3140 = vunpack.c.l.b16 %v3108
        %v3141 = vunpack.c.l.b16 %v3109
        %v3142 = vunpack.c.l.b16 %v3110
        %v3143 = vpack.c.b16 %v3128, %v3127
        %v3144 = vpack.c.b16 %v3130, %v3129
        %v3145 = vpack.c.b16 %v3132, %v3131
        %v3146 = vpack.c.b16 %v3134, %v3133
        %v3147 = vpack.c.b16 %v3136, %v3135
        %v3148 = vpack.c.b16 %v3138, %v3137
        %v3149 = vpack.c.b16 %v3140, %v3139
        %v3150 = vpack.c.b16 %v3142, %v3141
        %3159 = vmatpush.bf16.msra.mxu0 %v3150
        %3160 = vmatpush.bf16.msra.mxu0 %v3149
        %3161 = vmatpush.bf16.msra.mxu0 %v3148
        %3162 = vmatpush.bf16.msra.mxu0 %v3147
        %3163 = vmatpush.bf16.msra.mxu0 %v3146
        %3164 = vmatpush.bf16.msra.mxu0 %v3145
        %3165 = vmatpush.bf16.msra.mxu0 %v3144
        %3166 = vmatpush.bf16.msra.mxu0 %v3143
        %3167 = vmatmul.bf16.gmra.mxu0 %v3087
        %v3168 = vpop.f32.mrf.mxu0
        %v3169 = vadd.f32 0.0, %v3168
        %v3170 = vpop.f32.mrf.mxu0
        %v3171 = vadd.f32 0.0, %v3170
        %3172 = vmatmul.bf16.gmra.mxu0 %v3088
        %v3173 = vpop.f32.mrf.mxu0
        %v3174 = vadd.f32 0.0, %v3173
        %v3175 = vpop.f32.mrf.mxu0
        %v3176 = vadd.f32 0.0, %v3175
        %3177 = vmatmul.bf16.gmra.mxu0 %v3089
        %v3178 = vpop.f32.mrf.mxu0
        %v3179 = vadd.f32 0.0, %v3178
        %v3180 = vpop.f32.mrf.mxu0
        %v3181 = vadd.f32 0.0, %v3180
        %3182 = vmatmul.bf16.gmra.mxu0 %v3090
        %v3183 = vpop.f32.mrf.mxu0
        %v3184 = vadd.f32 0.0, %v3183
        %v3185 = vpop.f32.mrf.mxu0
        %v3186 = vadd.f32 0.0, %v3185
        %3187 = vmatmul.bf16.gmra.mxu0 %v3091
        %v3188 = vpop.f32.mrf.mxu0
        %v3189 = vadd.f32 0.0, %v3188
        %v3190 = vpop.f32.mrf.mxu0
        %v3191 = vadd.f32 0.0, %v3190
        %3192 = vmatmul.bf16.gmra.mxu0 %v3092
        %v3193 = vpop.f32.mrf.mxu0
        %v3194 = vadd.f32 0.0, %v3193
        %v3195 = vpop.f32.mrf.mxu0
        %v3196 = vadd.f32 0.0, %v3195
        %3197 = vmatmul.bf16.gmra.mxu0 %v3093
        %v3198 = vpop.f32.mrf.mxu0
        %v3199 = vadd.f32 0.0, %v3198
        %v3200 = vpop.f32.mrf.mxu0
        %v3201 = vadd.f32 0.0, %v3200
        %3202 = vmatmul.bf16.gmra.mxu0 %v3094
        %v3203 = vpop.f32.mrf.mxu0
        %v3204 = vadd.f32 0.0, %v3203
        %v3205 = vpop.f32.mrf.mxu0
        %v3206 = vadd.f32 0.0, %v3205
        %3207 = vdwg.mxu0
        %v3208 = vsel %vm2701, %v3169, 0.0
        %v3209 = vsel %vm2702, %v3171, 0.0
        %v3210 = vsel %vm2703, %v3174, 0.0
        %v3211 = vsel %vm2704, %v3176, 0.0
        %v3212 = vsel %vm2705, %v3179, 0.0
        %v3213 = vsel %vm2706, %v3181, 0.0
        %v3214 = vsel %vm2707, %v3184, 0.0
        %v3215 = vsel %vm2708, %v3186, 0.0
        %v3216 = vsel %vm2709, %v3189, 0.0
        %v3217 = vsel %vm2710, %v3191, 0.0
        %v3218 = vsel %vm2711, %v3194, 0.0
        %v3219 = vsel %vm2712, %v3196, 0.0
        %v3220 = vsel %vm2713, %v3199, 0.0
        %v3221 = vsel %vm2714, %v3201, 0.0
        %v3222 = vsel %vm2715, %v3204, 0.0
        %v3223 = vsel %vm2716, %v3206, 0.0
        %v3224 = vadd.f32 %v3055, %v3208
        %v3225 = vadd.f32 %v3056, %v3209
        %v3226 = vadd.f32 %v3057, %v3210
        %v3227 = vadd.f32 %v3058, %v3211
        %v3228 = vadd.f32 %v3059, %v3212
        %v3229 = vadd.f32 %v3060, %v3213
        %v3230 = vadd.f32 %v3061, %v3214
        %v3231 = vadd.f32 %v3062, %v3215
        %v3232 = vadd.f32 %v3063, %v3216
        %v3233 = vadd.f32 %v3064, %v3217
        %v3234 = vadd.f32 %v3065, %v3218
        %v3235 = vadd.f32 %v3066, %v3219
        %v3236 = vadd.f32 %v3067, %v3220
        %v3237 = vadd.f32 %v3068, %v3221
        %v3238 = vadd.f32 %v3069, %v3222
        %v3239 = vadd.f32 %v3070, %v3223
        %v3240 = vld [vmem:[#allocation2 + $0x27] sm:$0xff]
        %v3241 = vld [vmem:[#allocation2 + $0x2f] sm:$0xff]
        %v3242 = vld [vmem:[#allocation2 + $0x37] sm:$0xff]
        %v3243 = vld [vmem:[#allocation2 + $0x3f] sm:$0xff]
        %v3244 = vld [vmem:[#allocation2 + $0x47] sm:$0xff]
        %v3245 = vld [vmem:[#allocation2 + $0x4f] sm:$0xff]
        %v3246 = vld [vmem:[#allocation2 + $0x57] sm:$0xff]
        %v3247 = vld [vmem:[#allocation2 + $0x5f] sm:$0xff]
        %v3248 = vld [vmem:[#allocation2 + $0x67] sm:$0xff]
        %v3249 = vld [vmem:[#allocation2 + $0x6f] sm:$0xff]
        %v3250 = vld [vmem:[#allocation2 + $0x77] sm:$0xff]
        %v3251 = vld [vmem:[#allocation2 + $0x7f] sm:$0xff]
        %v3252 = vld [vmem:[#allocation2 + $0x87] sm:$0xff]
        %v3253 = vld [vmem:[#allocation2 + $0x8f] sm:$0xff]
        %v3254 = vld [vmem:[#allocation2 + $0x97] sm:$0xff]
        %v3255 = vld [vmem:[#allocation2 + $0x9f] sm:$0xff]
        %v3256 = vpack.c.bf16 %v3241, %v3240
        %v3257 = vpack.c.bf16 %v3243, %v3242
        %v3258 = vpack.c.bf16 %v3245, %v3244
        %v3259 = vpack.c.bf16 %v3247, %v3246
        %v3260 = vpack.c.bf16 %v3249, %v3248
        %v3261 = vpack.c.bf16 %v3251, %v3250
        %v3262 = vpack.c.bf16 %v3253, %v3252
        %v3263 = vpack.c.bf16 %v3255, %v3254
        %v3264 = vld [vmem:[#allocation11 + $0x180] sm:$0xf]
        %v3265 = vld [vmem:[#allocation11 + $0x184] sm:$0xf]
        %v3266 = vld [vmem:[#allocation11 + $0x188] sm:$0xf]
        %v3267 = vld [vmem:[#allocation11 + $0x18c] sm:$0xf]
        %v3268 = vld [vmem:[#allocation11 + $0x190] sm:$0xf]
        %v3269 = vld [vmem:[#allocation11 + $0x194] sm:$0xf]
        %v3270 = vld [vmem:[#allocation11 + $0x198] sm:$0xf]
        %v3271 = vld [vmem:[#allocation11 + $0x19c] sm:$0xf]
        %v3272 = vld [vmem:[#allocation11 + $0x1a0] sm:$0xf]
        %v3273 = vld [vmem:[#allocation11 + $0x1a4] sm:$0xf]
        %v3274 = vld [vmem:[#allocation11 + $0x1a8] sm:$0xf]
        %v3275 = vld [vmem:[#allocation11 + $0x1ac] sm:$0xf]
        %v3276 = vld [vmem:[#allocation11 + $0x1b0] sm:$0xf]
        %v3277 = vld [vmem:[#allocation11 + $0x1b4] sm:$0xf]
        %v3278 = vld [vmem:[#allocation11 + $0x1b8] sm:$0xf]
        %v3279 = vld [vmem:[#allocation11 + $0x1bc] sm:$0xf]
        %v3296 = vunpack.c.l.b16 %v3264
        %v3297 = vunpack.c.l.b16 %v3265
        %v3298 = vunpack.c.l.b16 %v3266
        %v3299 = vunpack.c.l.b16 %v3267
        %v3300 = vunpack.c.l.b16 %v3268
        %v3301 = vunpack.c.l.b16 %v3269
        %v3302 = vunpack.c.l.b16 %v3270
        %v3303 = vunpack.c.l.b16 %v3271
        %v3304 = vunpack.c.l.b16 %v3272
        %v3305 = vunpack.c.l.b16 %v3273
        %v3306 = vunpack.c.l.b16 %v3274
        %v3307 = vunpack.c.l.b16 %v3275
        %v3308 = vunpack.c.l.b16 %v3276
        %v3309 = vunpack.c.l.b16 %v3277
        %v3310 = vunpack.c.l.b16 %v3278
        %v3311 = vunpack.c.l.b16 %v3279
        %v3312 = vpack.c.b16 %v3297, %v3296
        %v3313 = vpack.c.b16 %v3299, %v3298
        %v3314 = vpack.c.b16 %v3301, %v3300
        %v3315 = vpack.c.b16 %v3303, %v3302
        %v3316 = vpack.c.b16 %v3305, %v3304
        %v3317 = vpack.c.b16 %v3307, %v3306
        %v3318 = vpack.c.b16 %v3309, %v3308
        %v3319 = vpack.c.b16 %v3311, %v3310
        %3328 = vmatpush.bf16.msra.mxu0 %v3319
        %3329 = vmatpush.bf16.msra.mxu0 %v3318
        %3330 = vmatpush.bf16.msra.mxu0 %v3317
        %3331 = vmatpush.bf16.msra.mxu0 %v3316
        %3332 = vmatpush.bf16.msra.mxu0 %v3315
        %3333 = vmatpush.bf16.msra.mxu0 %v3314
        %3334 = vmatpush.bf16.msra.mxu0 %v3313
        %3335 = vmatpush.bf16.msra.mxu0 %v3312
        %3336 = vmatmul.bf16.gmra.mxu0 %v3256
        %v3337 = vpop.f32.mrf.mxu0
        %v3338 = vadd.f32 0.0, %v3337
        %v3339 = vpop.f32.mrf.mxu0
        %v3340 = vadd.f32 0.0, %v3339
        %3341 = vmatmul.bf16.gmra.mxu0 %v3257
        %v3342 = vpop.f32.mrf.mxu0
        %v3343 = vadd.f32 0.0, %v3342
        %v3344 = vpop.f32.mrf.mxu0
        %v3345 = vadd.f32 0.0, %v3344
        %3346 = vmatmul.bf16.gmra.mxu0 %v3258
        %v3347 = vpop.f32.mrf.mxu0
        %v3348 = vadd.f32 0.0, %v3347
        %v3349 = vpop.f32.mrf.mxu0
        %v3350 = vadd.f32 0.0, %v3349
        %3351 = vmatmul.bf16.gmra.mxu0 %v3259
        %v3352 = vpop.f32.mrf.mxu0
        %v3353 = vadd.f32 0.0, %v3352
        %v3354 = vpop.f32.mrf.mxu0
        %v3355 = vadd.f32 0.0, %v3354
        %3356 = vmatmul.bf16.gmra.mxu0 %v3260
        %v3357 = vpop.f32.mrf.mxu0
        %v3358 = vadd.f32 0.0, %v3357
        %v3359 = vpop.f32.mrf.mxu0
        %v3360 = vadd.f32 0.0, %v3359
        %3361 = vmatmul.bf16.gmra.mxu0 %v3261
        %v3362 = vpop.f32.mrf.mxu0
        %v3363 = vadd.f32 0.0, %v3362
        %v3364 = vpop.f32.mrf.mxu0
        %v3365 = vadd.f32 0.0, %v3364
        %3366 = vmatmul.bf16.gmra.mxu0 %v3262
        %v3367 = vpop.f32.mrf.mxu0
        %v3368 = vadd.f32 0.0, %v3367
        %v3369 = vpop.f32.mrf.mxu0
        %v3370 = vadd.f32 0.0, %v3369
        %3371 = vmatmul.bf16.gmra.mxu0 %v3263
        %v3372 = vpop.f32.mrf.mxu0
        %v3373 = vadd.f32 0.0, %v3372
        %v3374 = vpop.f32.mrf.mxu0
        %v3375 = vadd.f32 0.0, %v3374
        %3376 = vdwg.mxu0
        %v3377 = vsel %vm2347, %v3338, 0.0
        %v3378 = vsel %vm2348, %v3340, 0.0
        %v3379 = vsel %vm2349, %v3343, 0.0
        %v3380 = vsel %vm2350, %v3345, 0.0
        %v3381 = vsel %vm2351, %v3348, 0.0
        %v3382 = vsel %vm2352, %v3350, 0.0
        %v3383 = vsel %vm2353, %v3353, 0.0
        %v3384 = vsel %vm2354, %v3355, 0.0
        %v3385 = vsel %vm2355, %v3358, 0.0
        %v3386 = vsel %vm2356, %v3360, 0.0
        %v3387 = vsel %vm2357, %v3363, 0.0
        %v3388 = vsel %vm2358, %v3365, 0.0
        %v3389 = vsel %vm2359, %v3368, 0.0
        %v3390 = vsel %vm2360, %v3370, 0.0
        %v3391 = vsel %vm2361, %v3373, 0.0
        %v3392 = vsel %vm2362, %v3375, 0.0
        %v3393 = vadd.f32 %v3224, %v3377
        %v3394 = vadd.f32 %v3225, %v3378
        %v3395 = vadd.f32 %v3226, %v3379
        %v3396 = vadd.f32 %v3227, %v3380
        %v3397 = vadd.f32 %v3228, %v3381
        %v3398 = vadd.f32 %v3229, %v3382
        %v3399 = vadd.f32 %v3230, %v3383
        %v3400 = vadd.f32 %v3231, %v3384
        %v3401 = vadd.f32 %v3232, %v3385
        %v3402 = vadd.f32 %v3233, %v3386
        %v3403 = vadd.f32 %v3234, %v3387
        %v3404 = vadd.f32 %v3235, %v3388
        %v3405 = vadd.f32 %v3236, %v3389
        %v3406 = vadd.f32 %v3237, %v3390
        %v3407 = vadd.f32 %v3238, %v3391
        %v3408 = vadd.f32 %v3239, %v3392
        %v3409 = vld [vmem:[#allocation2 + $0x28] sm:$0xff]
        %v3410 = vld [vmem:[#allocation2 + $0x30] sm:$0xff]
        %v3411 = vld [vmem:[#allocation2 + $0x38] sm:$0xff]
        %v3412 = vld [vmem:[#allocation2 + $0x40] sm:$0xff]
        %v3413 = vld [vmem:[#allocation2 + $0x48] sm:$0xff]
        %v3414 = vld [vmem:[#allocation2 + $0x50] sm:$0xff]
        %v3415 = vld [vmem:[#allocation2 + $0x58] sm:$0xff]
        %v3416 = vld [vmem:[#allocation2 + $0x60] sm:$0xff]
        %v3417 = vld [vmem:[#allocation2 + $0x68] sm:$0xff]
        %v3418 = vld [vmem:[#allocation2 + $0x70] sm:$0xff]
        %v3419 = vld [vmem:[#allocation2 + $0x78] sm:$0xff]
        %v3420 = vld [vmem:[#allocation2 + $0x80] sm:$0xff]
        %v3421 = vld [vmem:[#allocation2 + $0x88] sm:$0xff]
        %v3422 = vld [vmem:[#allocation2 + $0x90] sm:$0xff]
        %v3423 = vld [vmem:[#allocation2 + $0x98] sm:$0xff]
        %v3424 = vld [vmem:[#allocation2 + $0xa0] sm:$0xff]
        %v3425 = vpack.c.bf16 %v3410, %v3409
        %v3426 = vpack.c.bf16 %v3412, %v3411
        %v3427 = vpack.c.bf16 %v3414, %v3413
        %v3428 = vpack.c.bf16 %v3416, %v3415
        %v3429 = vpack.c.bf16 %v3418, %v3417
        %v3430 = vpack.c.bf16 %v3420, %v3419
        %v3431 = vpack.c.bf16 %v3422, %v3421
        %v3432 = vpack.c.bf16 %v3424, %v3423
        %v3433 = vld [vmem:[#allocation11 + $0x1c0] sm:$0xf]
        %v3434 = vld [vmem:[#allocation11 + $0x1c4] sm:$0xf]
        %v3435 = vld [vmem:[#allocation11 + $0x1c8] sm:$0xf]
        %v3436 = vld [vmem:[#allocation11 + $0x1cc] sm:$0xf]
        %v3437 = vld [vmem:[#allocation11 + $0x1d0] sm:$0xf]
        %v3438 = vld [vmem:[#allocation11 + $0x1d4] sm:$0xf]
        %v3439 = vld [vmem:[#allocation11 + $0x1d8] sm:$0xf]
        %v3440 = vld [vmem:[#allocation11 + $0x1dc] sm:$0xf]
        %v3441 = vld [vmem:[#allocation11 + $0x1e0] sm:$0xf]
        %v3442 = vld [vmem:[#allocation11 + $0x1e4] sm:$0xf]
        %v3443 = vld [vmem:[#allocation11 + $0x1e8] sm:$0xf]
        %v3444 = vld [vmem:[#allocation11 + $0x1ec] sm:$0xf]
        %v3445 = vld [vmem:[#allocation11 + $0x1f0] sm:$0xf]
        %v3446 = vld [vmem:[#allocation11 + $0x1f4] sm:$0xf]
        %v3447 = vld [vmem:[#allocation11 + $0x1f8] sm:$0xf]
        %v3448 = vld [vmem:[#allocation11 + $0x1fc] sm:$0xf]
        %v3465 = vunpack.c.l.b16 %v3433
        %v3466 = vunpack.c.l.b16 %v3434
        %v3467 = vunpack.c.l.b16 %v3435
        %v3468 = vunpack.c.l.b16 %v3436
        %v3469 = vunpack.c.l.b16 %v3437
        %v3470 = vunpack.c.l.b16 %v3438
        %v3471 = vunpack.c.l.b16 %v3439
        %v3472 = vunpack.c.l.b16 %v3440
        %v3473 = vunpack.c.l.b16 %v3441
        %v3474 = vunpack.c.l.b16 %v3442
        %v3475 = vunpack.c.l.b16 %v3443
        %v3476 = vunpack.c.l.b16 %v3444
        %v3477 = vunpack.c.l.b16 %v3445
        %v3478 = vunpack.c.l.b16 %v3446
        %v3479 = vunpack.c.l.b16 %v3447
        %v3480 = vunpack.c.l.b16 %v3448
        %v3481 = vpack.c.b16 %v3466, %v3465
        %v3482 = vpack.c.b16 %v3468, %v3467
        %v3483 = vpack.c.b16 %v3470, %v3469
        %v3484 = vpack.c.b16 %v3472, %v3471
        %v3485 = vpack.c.b16 %v3474, %v3473
        %v3486 = vpack.c.b16 %v3476, %v3475
        %v3487 = vpack.c.b16 %v3478, %v3477
        %v3488 = vpack.c.b16 %v3480, %v3479
        %3497 = vmatpush.bf16.msra.mxu0 %v3488
        %3498 = vmatpush.bf16.msra.mxu0 %v3487
        %3499 = vmatpush.bf16.msra.mxu0 %v3486
        %3500 = vmatpush.bf16.msra.mxu0 %v3485
        %3501 = vmatpush.bf16.msra.mxu0 %v3484
        %3502 = vmatpush.bf16.msra.mxu0 %v3483
        %3503 = vmatpush.bf16.msra.mxu0 %v3482
        %3504 = vmatpush.bf16.msra.mxu0 %v3481
        %3505 = vmatmul.bf16.gmra.mxu0 %v3425
        %v3506 = vpop.f32.mrf.mxu0
        %v3507 = vadd.f32 0.0, %v3506
        %v3508 = vpop.f32.mrf.mxu0
        %v3509 = vadd.f32 0.0, %v3508
        %3510 = vmatmul.bf16.gmra.mxu0 %v3426
        %v3511 = vpop.f32.mrf.mxu0
        %v3512 = vadd.f32 0.0, %v3511
        %v3513 = vpop.f32.mrf.mxu0
        %v3514 = vadd.f32 0.0, %v3513
        %3515 = vmatmul.bf16.gmra.mxu0 %v3427
        %v3516 = vpop.f32.mrf.mxu0
        %v3517 = vadd.f32 0.0, %v3516
        %v3518 = vpop.f32.mrf.mxu0
        %v3519 = vadd.f32 0.0, %v3518
        %3520 = vmatmul.bf16.gmra.mxu0 %v3428
        %v3521 = vpop.f32.mrf.mxu0
        %v3522 = vadd.f32 0.0, %v3521
        %v3523 = vpop.f32.mrf.mxu0
        %v3524 = vadd.f32 0.0, %v3523
        %3525 = vmatmul.bf16.gmra.mxu0 %v3429
        %v3526 = vpop.f32.mrf.mxu0
        %v3527 = vadd.f32 0.0, %v3526
        %v3528 = vpop.f32.mrf.mxu0
        %v3529 = vadd.f32 0.0, %v3528
        %3530 = vmatmul.bf16.gmra.mxu0 %v3430
        %v3531 = vpop.f32.mrf.mxu0
        %v3532 = vadd.f32 0.0, %v3531
        %v3533 = vpop.f32.mrf.mxu0
        %v3534 = vadd.f32 0.0, %v3533
        %3535 = vmatmul.bf16.gmra.mxu0 %v3431
        %v3536 = vpop.f32.mrf.mxu0
        %v3537 = vadd.f32 0.0, %v3536
        %v3538 = vpop.f32.mrf.mxu0
        %v3539 = vadd.f32 0.0, %v3538
        %3540 = vmatmul.bf16.gmra.mxu0 %v3432
        %v3541 = vpop.f32.mrf.mxu0
        %v3542 = vadd.f32 0.0, %v3541
        %v3543 = vpop.f32.mrf.mxu0
        %v3544 = vadd.f32 0.0, %v3543
        %3545 = vdwg.mxu0
        %v3546 = vadd.f32 %v3393, %v3507
        %v3547 = vadd.f32 %v3394, %v3509
        %v3548 = vadd.f32 %v3395, %v3512
        %v3549 = vadd.f32 %v3396, %v3514
        %v3550 = vadd.f32 %v3397, %v3517
        %v3551 = vadd.f32 %v3398, %v3519
        %v3552 = vadd.f32 %v3399, %v3522
        %v3553 = vadd.f32 %v3400, %v3524
        %v3554 = vadd.f32 %v3401, %v3527
        %v3555 = vadd.f32 %v3402, %v3529
        %v3556 = vadd.f32 %v3403, %v3532
        %v3557 = vadd.f32 %v3404, %v3534
        %v3558 = vadd.f32 %v3405, %v3537
        %v3559 = vadd.f32 %v3406, %v3539
        %v3560 = vadd.f32 %v3407, %v3542
        %v3561 = vadd.f32 %v3408, %v3544
        %v3562 = vld [vmem:[#allocation2 + $0x29] sm:$0xff]
        %v3563 = vld [vmem:[#allocation2 + $0x31] sm:$0xff]
        %v3564 = vld [vmem:[#allocation2 + $0x39] sm:$0xff]
        %v3565 = vld [vmem:[#allocation2 + $0x41] sm:$0xff]
        %v3566 = vld [vmem:[#allocation2 + $0x49] sm:$0xff]
        %v3567 = vld [vmem:[#allocation2 + $0x51] sm:$0xff]
        %v3568 = vld [vmem:[#allocation2 + $0x59] sm:$0xff]
        %v3569 = vld [vmem:[#allocation2 + $0x61] sm:$0xff]
        %v3570 = vld [vmem:[#allocation2 + $0x69] sm:$0xff]
        %v3571 = vld [vmem:[#allocation2 + $0x71] sm:$0xff]
        %v3572 = vld [vmem:[#allocation2 + $0x79] sm:$0xff]
        %v3573 = vld [vmem:[#allocation2 + $0x81] sm:$0xff]
        %v3574 = vld [vmem:[#allocation2 + $0x89] sm:$0xff]
        %v3575 = vld [vmem:[#allocation2 + $0x91] sm:$0xff]
        %v3576 = vld [vmem:[#allocation2 + $0x99] sm:$0xff]
        %v3577 = vld [vmem:[#allocation2 + $0xa1] sm:$0xff]
        %v3578 = vpack.c.bf16 %v3563, %v3562
        %v3579 = vpack.c.bf16 %v3565, %v3564
        %v3580 = vpack.c.bf16 %v3567, %v3566
        %v3581 = vpack.c.bf16 %v3569, %v3568
        %v3582 = vpack.c.bf16 %v3571, %v3570
        %v3583 = vpack.c.bf16 %v3573, %v3572
        %v3584 = vpack.c.bf16 %v3575, %v3574
        %v3585 = vpack.c.bf16 %v3577, %v3576
        %v3586 = vld [vmem:[#allocation11 + $0x200] sm:$0xf]
        %v3587 = vld [vmem:[#allocation11 + $0x204] sm:$0xf]
        %v3588 = vld [vmem:[#allocation11 + $0x208] sm:$0xf]
        %v3589 = vld [vmem:[#allocation11 + $0x20c] sm:$0xf]
        %v3590 = vld [vmem:[#allocation11 + $0x210] sm:$0xf]
        %v3591 = vld [vmem:[#allocation11 + $0x214] sm:$0xf]
        %v3592 = vld [vmem:[#allocation11 + $0x218] sm:$0xf]
        %v3593 = vld [vmem:[#allocation11 + $0x21c] sm:$0xf]
        %v3594 = vld [vmem:[#allocation11 + $0x220] sm:$0xf]
        %v3595 = vld [vmem:[#allocation11 + $0x224] sm:$0xf]
        %v3596 = vld [vmem:[#allocation11 + $0x228] sm:$0xf]
        %v3597 = vld [vmem:[#allocation11 + $0x22c] sm:$0xf]
        %v3598 = vld [vmem:[#allocation11 + $0x230] sm:$0xf]
        %v3599 = vld [vmem:[#allocation11 + $0x234] sm:$0xf]
        %v3600 = vld [vmem:[#allocation11 + $0x238] sm:$0xf]
        %v3601 = vld [vmem:[#allocation11 + $0x23c] sm:$0xf]
        %v3618 = vunpack.c.l.b16 %v3586
        %v3619 = vunpack.c.l.b16 %v3587
        %v3620 = vunpack.c.l.b16 %v3588
        %v3621 = vunpack.c.l.b16 %v3589
        %v3622 = vunpack.c.l.b16 %v3590
        %v3623 = vunpack.c.l.b16 %v3591
        %v3624 = vunpack.c.l.b16 %v3592
        %v3625 = vunpack.c.l.b16 %v3593
        %v3626 = vunpack.c.l.b16 %v3594
        %v3627 = vunpack.c.l.b16 %v3595
        %v3628 = vunpack.c.l.b16 %v3596
        %v3629 = vunpack.c.l.b16 %v3597
        %v3630 = vunpack.c.l.b16 %v3598
        %v3631 = vunpack.c.l.b16 %v3599
        %v3632 = vunpack.c.l.b16 %v3600
        %v3633 = vunpack.c.l.b16 %v3601
        %v3634 = vpack.c.b16 %v3619, %v3618
        %v3635 = vpack.c.b16 %v3621, %v3620
        %v3636 = vpack.c.b16 %v3623, %v3622
        %v3637 = vpack.c.b16 %v3625, %v3624
        %v3638 = vpack.c.b16 %v3627, %v3626
        %v3639 = vpack.c.b16 %v3629, %v3628
        %v3640 = vpack.c.b16 %v3631, %v3630
        %v3641 = vpack.c.b16 %v3633, %v3632
        %3650 = vmatpush.bf16.msra.mxu0 %v3641
        %3651 = vmatpush.bf16.msra.mxu0 %v3640
        %3652 = vmatpush.bf16.msra.mxu0 %v3639
        %3653 = vmatpush.bf16.msra.mxu0 %v3638
        %3654 = vmatpush.bf16.msra.mxu0 %v3637
        %3655 = vmatpush.bf16.msra.mxu0 %v3636
        %3656 = vmatpush.bf16.msra.mxu0 %v3635
        %3657 = vmatpush.bf16.msra.mxu0 %v3634
        %3658 = vmatmul.bf16.gmra.mxu0 %v3578
        %v3659 = vpop.f32.mrf.mxu0
        %v3660 = vadd.f32 0.0, %v3659
        %v3661 = vpop.f32.mrf.mxu0
        %v3662 = vadd.f32 0.0, %v3661
        %3663 = vmatmul.bf16.gmra.mxu0 %v3579
        %v3664 = vpop.f32.mrf.mxu0
        %v3665 = vadd.f32 0.0, %v3664
        %v3666 = vpop.f32.mrf.mxu0
        %v3667 = vadd.f32 0.0, %v3666
        %3668 = vmatmul.bf16.gmra.mxu0 %v3580
        %v3669 = vpop.f32.mrf.mxu0
        %v3670 = vadd.f32 0.0, %v3669
        %v3671 = vpop.f32.mrf.mxu0
        %v3672 = vadd.f32 0.0, %v3671
        %3673 = vmatmul.bf16.gmra.mxu0 %v3581
        %v3674 = vpop.f32.mrf.mxu0
        %v3675 = vadd.f32 0.0, %v3674
        %v3676 = vpop.f32.mrf.mxu0
        %v3677 = vadd.f32 0.0, %v3676
        %3678 = vmatmul.bf16.gmra.mxu0 %v3582
        %v3679 = vpop.f32.mrf.mxu0
        %v3680 = vadd.f32 0.0, %v3679
        %v3681 = vpop.f32.mrf.mxu0
        %v3682 = vadd.f32 0.0, %v3681
        %3683 = vmatmul.bf16.gmra.mxu0 %v3583
        %v3684 = vpop.f32.mrf.mxu0
        %v3685 = vadd.f32 0.0, %v3684
        %v3686 = vpop.f32.mrf.mxu0
        %v3687 = vadd.f32 0.0, %v3686
        %3688 = vmatmul.bf16.gmra.mxu0 %v3584
        %v3689 = vpop.f32.mrf.mxu0
        %v3690 = vadd.f32 0.0, %v3689
        %v3691 = vpop.f32.mrf.mxu0
        %v3692 = vadd.f32 0.0, %v3691
        %3693 = vmatmul.bf16.gmra.mxu0 %v3585
        %v3694 = vpop.f32.mrf.mxu0
        %v3695 = vadd.f32 0.0, %v3694
        %v3696 = vpop.f32.mrf.mxu0
        %v3697 = vadd.f32 0.0, %v3696
        %3698 = vdwg.mxu0
        %v3699 = vsel %vm2701, %v3660, 0.0
        %v3700 = vsel %vm2702, %v3662, 0.0
        %v3701 = vsel %vm2703, %v3665, 0.0
        %v3702 = vsel %vm2704, %v3667, 0.0
        %v3703 = vsel %vm2705, %v3670, 0.0
        %v3704 = vsel %vm2706, %v3672, 0.0
        %v3705 = vsel %vm2707, %v3675, 0.0
        %v3706 = vsel %vm2708, %v3677, 0.0
        %v3707 = vsel %vm2709, %v3680, 0.0
        %v3708 = vsel %vm2710, %v3682, 0.0
        %v3709 = vsel %vm2711, %v3685, 0.0
        %v3710 = vsel %vm2712, %v3687, 0.0
        %v3711 = vsel %vm2713, %v3690, 0.0
        %v3712 = vsel %vm2714, %v3692, 0.0
        %v3713 = vsel %vm2715, %v3695, 0.0
        %v3714 = vsel %vm2716, %v3697, 0.0
        %v3715 = vadd.f32 %v3546, %v3699
        %v3716 = vadd.f32 %v3547, %v3700
        %v3717 = vadd.f32 %v3548, %v3701
        %v3718 = vadd.f32 %v3549, %v3702
        %v3719 = vadd.f32 %v3550, %v3703
        %v3720 = vadd.f32 %v3551, %v3704
        %v3721 = vadd.f32 %v3552, %v3705
        %v3722 = vadd.f32 %v3553, %v3706
        %v3723 = vadd.f32 %v3554, %v3707
        %v3724 = vadd.f32 %v3555, %v3708
        %v3725 = vadd.f32 %v3556, %v3709
        %v3726 = vadd.f32 %v3557, %v3710
        %v3727 = vadd.f32 %v3558, %v3711
        %v3728 = vadd.f32 %v3559, %v3712
        %v3729 = vadd.f32 %v3560, %v3713
        %v3730 = vadd.f32 %v3561, %v3714
        %v3731 = vld [vmem:[#allocation12] sm:$0x1]
        %v3733 = vperm.slane %v3731, 0
        %v3735 = vmul.f32 %v3715, %v3733
        %v3736 = vmul.f32 %v3716, %v3733
        %v3737 = vmul.f32 %v3717, %v3733
        %v3738 = vmul.f32 %v3718, %v3733
        %v3739 = vmul.f32 %v3719, %v3733
        %v3740 = vmul.f32 %v3720, %v3733
        %v3741 = vmul.f32 %v3721, %v3733
        %v3742 = vmul.f32 %v3722, %v3733
        %v3743 = vmul.f32 %v3723, %v3733
        %v3744 = vmul.f32 %v3724, %v3733
        %v3745 = vmul.f32 %v3725, %v3733
        %v3746 = vmul.f32 %v3726, %v3733
        %v3747 = vmul.f32 %v3727, %v3733
        %v3748 = vmul.f32 %v3728, %v3733
        %v3749 = vmul.f32 %v3729, %v3733
        %v3750 = vmul.f32 %v3730, %v3733
        %v3751 = vld [vmem:[#allocation14] sm:$0x1]
        %v3753 = vperm.slane %v3751, 0
        %v3755 = vadd.f32 %v3735, %v3753
        %v3756 = vadd.f32 %v3736, %v3753
        %v3757 = vadd.f32 %v3737, %v3753
        %v3758 = vadd.f32 %v3738, %v3753
        %v3759 = vadd.f32 %v3739, %v3753
        %v3760 = vadd.f32 %v3740, %v3753
        %v3761 = vadd.f32 %v3741, %v3753
        %v3762 = vadd.f32 %v3742, %v3753
        %v3763 = vadd.f32 %v3743, %v3753
        %v3764 = vadd.f32 %v3744, %v3753
        %v3765 = vadd.f32 %v3745, %v3753
        %v3766 = vadd.f32 %v3746, %v3753
        %v3767 = vadd.f32 %v3747, %v3753
        %v3768 = vadd.f32 %v3748, %v3753
        %v3769 = vadd.f32 %v3749, %v3753
        %v3770 = vadd.f32 %v3750, %v3753
        %v3771 = vmax.f32 %v3755, 0.0
        %v3772 = vmax.f32 %v3756, 0.0
        %v3773 = vmax.f32 %v3757, 0.0
        %v3774 = vmax.f32 %v3758, 0.0
        %v3775 = vmax.f32 %v3759, 0.0
        %v3776 = vmax.f32 %v3760, 0.0
        %v3777 = vmax.f32 %v3761, 0.0
        %v3778 = vmax.f32 %v3762, 0.0
        %v3779 = vmax.f32 %v3763, 0.0
        %v3780 = vmax.f32 %v3764, 0.0
        %v3781 = vmax.f32 %v3765, 0.0
        %v3782 = vmax.f32 %v3766, 0.0
        %v3783 = vmax.f32 %v3767, 0.0
        %v3784 = vmax.f32 %v3768, 0.0
        %v3785 = vmax.f32 %v3769, 0.0
        %v3786 = vmax.f32 %v3770, 0.0
        %v3787 = vpack.c.bf16 %v3772, %v3771
        %v3788 = vpack.c.bf16 %v3774, %v3773
        %v3789 = vpack.c.bf16 %v3776, %v3775
        %v3790 = vpack.c.bf16 %v3778, %v3777
        %v3791 = vpack.c.bf16 %v3780, %v3779
        %v3792 = vpack.c.bf16 %v3782, %v3781
        %v3793 = vpack.c.bf16 %v3784, %v3783
        %v3794 = vpack.c.bf16 %v3786, %v3785
        %v3795 = vld [vmem:[#allocation15] sm:$0xff]
        %v3796 = vld [vmem:[#allocation15 + $0x8] sm:$0xff]
        %v3797 = vld [vmem:[#allocation15 + $0x10] sm:$0xff]
        %v3798 = vld [vmem:[#allocation15 + $0x18] sm:$0xff]
        %v3799 = vld [vmem:[#allocation15 + $0x20] sm:$0xff]
        %v3800 = vld [vmem:[#allocation15 + $0x28] sm:$0xff]
        %v3801 = vld [vmem:[#allocation15 + $0x30] sm:$0xff]
        %v3802 = vld [vmem:[#allocation15 + $0x38] sm:$0xff]
        %v3803 = vld [vmem:[#allocation15 + $0x40] sm:$0xff]
        %v3804 = vld [vmem:[#allocation15 + $0x48] sm:$0xff]
        %v3805 = vld [vmem:[#allocation15 + $0x50] sm:$0xff]
        %v3806 = vld [vmem:[#allocation15 + $0x58] sm:$0xff]
        %v3807 = vld [vmem:[#allocation15 + $0x60] sm:$0xff]
        %v3808 = vld [vmem:[#allocation15 + $0x68] sm:$0xff]
        %v3809 = vld [vmem:[#allocation15 + $0x70] sm:$0xff]
        %v3810 = vld [vmem:[#allocation15 + $0x78] sm:$0xff]
        %v3811 = vld [vmem:[#allocation15 + $0x80] sm:$0xff]
        %v3812 = vld [vmem:[#allocation15 + $0x88] sm:$0xff]
        %v3813 = vld [vmem:[#allocation15 + $0x90] sm:$0xff]
        %v3814 = vld [vmem:[#allocation15 + $0x98] sm:$0xff]
        %v3815 = vld [vmem:[#allocation15 + $0xa0] sm:$0xff]
        %v3816 = vld [vmem:[#allocation15 + $0xa8] sm:$0xff]
        %v3817 = vld [vmem:[#allocation15 + $0xb0] sm:$0xff]
        %v3818 = vld [vmem:[#allocation15 + $0xb8] sm:$0xff]
        %v3819 = vld [vmem:[#allocation15 + $0xc0] sm:$0xff]
        %v3820 = vld [vmem:[#allocation15 + $0xc8] sm:$0xff]
        %v3821 = vld [vmem:[#allocation15 + $0xd0] sm:$0xff]
        %v3822 = vld [vmem:[#allocation15 + $0xd8] sm:$0xff]
        %v3823 = vld [vmem:[#allocation15 + $0xe0] sm:$0xff]
        %v3824 = vld [vmem:[#allocation15 + $0xe8] sm:$0xff]
        %v3825 = vld [vmem:[#allocation15 + $0xf0] sm:$0xff]
        %v3826 = vld [vmem:[#allocation15 + $0xf8] sm:$0xff]
        %v3859 = vunpack.c.l.b16 %v3795
        %v3860 = vunpack.c.h.b16 %v3795
        %v3861 = vunpack.c.l.b16 %v3796
        %v3862 = vunpack.c.h.b16 %v3796
        %v3863 = vunpack.c.l.b16 %v3797
        %v3864 = vunpack.c.h.b16 %v3797
        %v3865 = vunpack.c.l.b16 %v3798
        %v3866 = vunpack.c.h.b16 %v3798
        %v3867 = vunpack.c.l.b16 %v3799
        %v3868 = vunpack.c.h.b16 %v3799
        %v3869 = vunpack.c.l.b16 %v3800
        %v3870 = vunpack.c.h.b16 %v3800
        %v3871 = vunpack.c.l.b16 %v3801
        %v3872 = vunpack.c.h.b16 %v3801
        %v3873 = vunpack.c.l.b16 %v3802
        %v3874 = vunpack.c.h.b16 %v3802
        %v3875 = vunpack.c.l.b16 %v3803
        %v3876 = vunpack.c.h.b16 %v3803
        %v3877 = vunpack.c.l.b16 %v3804
        %v3878 = vunpack.c.h.b16 %v3804
        %v3879 = vunpack.c.l.b16 %v3805
        %v3880 = vunpack.c.h.b16 %v3805
        %v3881 = vunpack.c.l.b16 %v3806
        %v3882 = vunpack.c.h.b16 %v3806
        %v3883 = vunpack.c.l.b16 %v3807
        %v3884 = vunpack.c.h.b16 %v3807
        %v3885 = vunpack.c.l.b16 %v3808
        %v3886 = vunpack.c.h.b16 %v3808
        %v3887 = vunpack.c.l.b16 %v3809
        %v3888 = vunpack.c.h.b16 %v3809
        %v3889 = vunpack.c.l.b16 %v3810
        %v3890 = vunpack.c.h.b16 %v3810
        %v3891 = vunpack.c.l.b16 %v3811
        %v3892 = vunpack.c.h.b16 %v3811
        %v3893 = vunpack.c.l.b16 %v3812
        %v3894 = vunpack.c.h.b16 %v3812
        %v3895 = vunpack.c.l.b16 %v3813
        %v3896 = vunpack.c.h.b16 %v3813
        %v3897 = vunpack.c.l.b16 %v3814
        %v3898 = vunpack.c.h.b16 %v3814
        %v3899 = vunpack.c.l.b16 %v3815
        %v3900 = vunpack.c.h.b16 %v3815
        %v3901 = vunpack.c.l.b16 %v3816
        %v3902 = vunpack.c.h.b16 %v3816
        %v3903 = vunpack.c.l.b16 %v3817
        %v3904 = vunpack.c.h.b16 %v3817
        %v3905 = vunpack.c.l.b16 %v3818
        %v3906 = vunpack.c.h.b16 %v3818
        %v3907 = vunpack.c.l.b16 %v3819
        %v3908 = vunpack.c.h.b16 %v3819
        %v3909 = vunpack.c.l.b16 %v3820
        %v3910 = vunpack.c.h.b16 %v3820
        %v3911 = vunpack.c.l.b16 %v3821
        %v3912 = vunpack.c.h.b16 %v3821
        %v3913 = vunpack.c.l.b16 %v3822
        %v3914 = vunpack.c.h.b16 %v3822
        %v3915 = vunpack.c.l.b16 %v3823
        %v3916 = vunpack.c.h.b16 %v3823
        %v3917 = vunpack.c.l.b16 %v3824
        %v3918 = vunpack.c.h.b16 %v3824
        %v3919 = vunpack.c.l.b16 %v3825
        %v3920 = vunpack.c.h.b16 %v3825
        %v3921 = vunpack.c.l.b16 %v3826
        %v3922 = vunpack.c.h.b16 %v3826
        %v3923 = vpack.c.b16 %v3863, %v3859
        %v3924 = vpack.c.b16 %v3864, %v3860
        %v3925 = vpack.c.b16 %v3865, %v3861
        %v3926 = vpack.c.b16 %v3866, %v3862
        %v3927 = vpack.c.b16 %v3871, %v3867
        %v3928 = vpack.c.b16 %v3872, %v3868
        %v3929 = vpack.c.b16 %v3873, %v3869
        %v3930 = vpack.c.b16 %v3874, %v3870
        %v3931 = vpack.c.b16 %v3879, %v3875
        %v3932 = vpack.c.b16 %v3880, %v3876
        %v3933 = vpack.c.b16 %v3881, %v3877
        %v3934 = vpack.c.b16 %v3882, %v3878
        %v3935 = vpack.c.b16 %v3887, %v3883
        %v3936 = vpack.c.b16 %v3888, %v3884
        %v3937 = vpack.c.b16 %v3889, %v3885
        %v3938 = vpack.c.b16 %v3890, %v3886
        %v3939 = vpack.c.b16 %v3895, %v3891
        %v3940 = vpack.c.b16 %v3896, %v3892
        %v3941 = vpack.c.b16 %v3897, %v3893
        %v3942 = vpack.c.b16 %v3898, %v3894
        %v3943 = vpack.c.b16 %v3903, %v3899
        %v3944 = vpack.c.b16 %v3904, %v3900
        %v3945 = vpack.c.b16 %v3905, %v3901
        %v3946 = vpack.c.b16 %v3906, %v3902
        %v3947 = vpack.c.b16 %v3911, %v3907
        %v3948 = vpack.c.b16 %v3912, %v3908
        %v3949 = vpack.c.b16 %v3913, %v3909
        %v3950 = vpack.c.b16 %v3914, %v3910
        %v3951 = vpack.c.b16 %v3919, %v3915
        %v3952 = vpack.c.b16 %v3920, %v3916
        %v3953 = vpack.c.b16 %v3921, %v3917
        %v3954 = vpack.c.b16 %v3922, %v3918
        %3987 = vmatpush.bf16.msra.mxu0 %v3951
        %3988 = vmatpush.bf16.msra.mxu0 %v3947
        %3989 = vmatpush.bf16.msra.mxu0 %v3943
        %3990 = vmatpush.bf16.msra.mxu0 %v3939
        %3991 = vmatpush.bf16.msra.mxu0 %v3935
        %3992 = vmatpush.bf16.msra.mxu0 %v3931
        %3993 = vmatpush.bf16.msra.mxu0 %v3927
        %3994 = vmatpush.bf16.msra.mxu0 %v3923
        %3995 = vmatmul.bf16.gmra.mxu0 %v3787
        %v3996 = vpop.f32.mrf.mxu0
        %v3997 = vadd.f32 0.0, %v3996
        %v3998 = vpop.f32.mrf.mxu0
        %v3999 = vadd.f32 0.0, %v3998
        %4000 = vmatmul.bf16.gmra.mxu0 %v3788
        %v4001 = vpop.f32.mrf.mxu0
        %v4002 = vadd.f32 0.0, %v4001
        %v4003 = vpop.f32.mrf.mxu0
        %v4004 = vadd.f32 0.0, %v4003
        %4005 = vmatmul.bf16.gmra.mxu0 %v3789
        %v4006 = vpop.f32.mrf.mxu0
        %v4007 = vadd.f32 0.0, %v4006
        %v4008 = vpop.f32.mrf.mxu0
        %v4009 = vadd.f32 0.0, %v4008
        %4010 = vmatmul.bf16.gmra.mxu0 %v3790
        %v4011 = vpop.f32.mrf.mxu0
        %v4012 = vadd.f32 0.0, %v4011
        %v4013 = vpop.f32.mrf.mxu0
        %v4014 = vadd.f32 0.0, %v4013
        %4015 = vmatmul.bf16.gmra.mxu0 %v3791
        %v4016 = vpop.f32.mrf.mxu0
        %v4017 = vadd.f32 0.0, %v4016
        %v4018 = vpop.f32.mrf.mxu0
        %v4019 = vadd.f32 0.0, %v4018
        %4020 = vmatmul.bf16.gmra.mxu0 %v3792
        %v4021 = vpop.f32.mrf.mxu0
        %v4022 = vadd.f32 0.0, %v4021
        %v4023 = vpop.f32.mrf.mxu0
        %v4024 = vadd.f32 0.0, %v4023
        %4025 = vmatmul.bf16.gmra.mxu0 %v3793
        %v4026 = vpop.f32.mrf.mxu0
        %v4027 = vadd.f32 0.0, %v4026
        %v4028 = vpop.f32.mrf.mxu0
        %v4029 = vadd.f32 0.0, %v4028
        %4030 = vmatmul.bf16.gmra.mxu0 %v3794
        %v4031 = vpop.f32.mrf.mxu0
        %v4032 = vadd.f32 0.0, %v4031
        %v4033 = vpop.f32.mrf.mxu0
        %v4034 = vadd.f32 0.0, %v4033
        %4035 = vdwg.mxu0
        %4036 = vmatpush.bf16.msra.mxu0 %v3952
        %4037 = vmatpush.bf16.msra.mxu0 %v3948
        %4038 = vmatpush.bf16.msra.mxu0 %v3944
        %4039 = vmatpush.bf16.msra.mxu0 %v3940
        %4040 = vmatpush.bf16.msra.mxu0 %v3936
        %4041 = vmatpush.bf16.msra.mxu0 %v3932
        %4042 = vmatpush.bf16.msra.mxu0 %v3928
        %4043 = vmatpush.bf16.msra.mxu0 %v3924
        %4044 = vmatmul.bf16.gmra.mxu0 %v3787
        %v4045 = vpop.f32.mrf.mxu0
        %v4046 = vadd.f32 0.0, %v4045
        %v4047 = vpop.f32.mrf.mxu0
        %v4048 = vadd.f32 0.0, %v4047
        %4049 = vmatmul.bf16.gmra.mxu0 %v3788
        %v4050 = vpop.f32.mrf.mxu0
        %v4051 = vadd.f32 0.0, %v4050
        %v4052 = vpop.f32.mrf.mxu0
        %v4053 = vadd.f32 0.0, %v4052
        %4054 = vmatmul.bf16.gmra.mxu0 %v3789
        %v4055 = vpop.f32.mrf.mxu0
        %v4056 = vadd.f32 0.0, %v4055
        %v4057 = vpop.f32.mrf.mxu0
        %v4058 = vadd.f32 0.0, %v4057
        %4059 = vmatmul.bf16.gmra.mxu0 %v3790
        %v4060 = vpop.f32.mrf.mxu0
        %v4061 = vadd.f32 0.0, %v4060
        %v4062 = vpop.f32.mrf.mxu0
        %v4063 = vadd.f32 0.0, %v4062
        %4064 = vmatmul.bf16.gmra.mxu0 %v3791
        %v4065 = vpop.f32.mrf.mxu0
        %v4066 = vadd.f32 0.0, %v4065
        %v4067 = vpop.f32.mrf.mxu0
        %v4068 = vadd.f32 0.0, %v4067
        %4069 = vmatmul.bf16.gmra.mxu0 %v3792
        %v4070 = vpop.f32.mrf.mxu0
        %v4071 = vadd.f32 0.0, %v4070
        %v4072 = vpop.f32.mrf.mxu0
        %v4073 = vadd.f32 0.0, %v4072
        %4074 = vmatmul.bf16.gmra.mxu0 %v3793
        %v4075 = vpop.f32.mrf.mxu0
        %v4076 = vadd.f32 0.0, %v4075
        %v4077 = vpop.f32.mrf.mxu0
        %v4078 = vadd.f32 0.0, %v4077
        %4079 = vmatmul.bf16.gmra.mxu0 %v3794
        %v4080 = vpop.f32.mrf.mxu0
        %v4081 = vadd.f32 0.0, %v4080
        %v4082 = vpop.f32.mrf.mxu0
        %v4083 = vadd.f32 0.0, %v4082
        %4084 = vdwg.mxu0
        %4085 = vmatpush.bf16.msra.mxu0 %v3953
        %4086 = vmatpush.bf16.msra.mxu0 %v3949
        %4087 = vmatpush.bf16.msra.mxu0 %v3945
        %4088 = vmatpush.bf16.msra.mxu0 %v3941
        %4089 = vmatpush.bf16.msra.mxu0 %v3937
        %4090 = vmatpush.bf16.msra.mxu0 %v3933
        %4091 = vmatpush.bf16.msra.mxu0 %v3929
        %4092 = vmatpush.bf16.msra.mxu0 %v3925
        %4093 = vmatmul.bf16.gmra.mxu0 %v3787
        %v4094 = vpop.f32.mrf.mxu0
        %v4095 = vadd.f32 0.0, %v4094
        %v4096 = vpop.f32.mrf.mxu0
        %v4097 = vadd.f32 0.0, %v4096
        %4098 = vmatmul.bf16.gmra.mxu0 %v3788
        %v4099 = vpop.f32.mrf.mxu0
        %v4100 = vadd.f32 0.0, %v4099
        %v4101 = vpop.f32.mrf.mxu0
        %v4102 = vadd.f32 0.0, %v4101
        %4103 = vmatmul.bf16.gmra.mxu0 %v3789
        %v4104 = vpop.f32.mrf.mxu0
        %v4105 = vadd.f32 0.0, %v4104
        %v4106 = vpop.f32.mrf.mxu0
        %v4107 = vadd.f32 0.0, %v4106
        %4108 = vmatmul.bf16.gmra.mxu0 %v3790
        %v4109 = vpop.f32.mrf.mxu0
        %v4110 = vadd.f32 0.0, %v4109
        %v4111 = vpop.f32.mrf.mxu0
        %v4112 = vadd.f32 0.0, %v4111
        %4113 = vmatmul.bf16.gmra.mxu0 %v3791
        %v4114 = vpop.f32.mrf.mxu0
        %v4115 = vadd.f32 0.0, %v4114
        %v4116 = vpop.f32.mrf.mxu0
        %v4117 = vadd.f32 0.0, %v4116
        %4118 = vmatmul.bf16.gmra.mxu0 %v3792
        %v4119 = vpop.f32.mrf.mxu0
        %v4120 = vadd.f32 0.0, %v4119
        %v4121 = vpop.f32.mrf.mxu0
        %v4122 = vadd.f32 0.0, %v4121
        %4123 = vmatmul.bf16.gmra.mxu0 %v3793
        %v4124 = vpop.f32.mrf.mxu0
        %v4125 = vadd.f32 0.0, %v4124
        %v4126 = vpop.f32.mrf.mxu0
        %v4127 = vadd.f32 0.0, %v4126
        %4128 = vmatmul.bf16.gmra.mxu0 %v3794
        %v4129 = vpop.f32.mrf.mxu0
        %v4130 = vadd.f32 0.0, %v4129
        %v4131 = vpop.f32.mrf.mxu0
        %v4132 = vadd.f32 0.0, %v4131
        %4133 = vdwg.mxu0
        %4134 = vmatpush.bf16.msra.mxu0 %v3954
        %4135 = vmatpush.bf16.msra.mxu0 %v3950
        %4136 = vmatpush.bf16.msra.mxu0 %v3946
        %4137 = vmatpush.bf16.msra.mxu0 %v3942
        %4138 = vmatpush.bf16.msra.mxu0 %v3938
        %4139 = vmatpush.bf16.msra.mxu0 %v3934
        %4140 = vmatpush.bf16.msra.mxu0 %v3930
        %4141 = vmatpush.bf16.msra.mxu0 %v3926
        %4142 = vmatmul.bf16.gmra.mxu0 %v3787
        %v4143 = vpop.f32.mrf.mxu0
        %v4144 = vadd.f32 0.0, %v4143
        %v4145 = vpop.f32.mrf.mxu0
        %v4146 = vadd.f32 0.0, %v4145
        %4147 = vmatmul.bf16.gmra.mxu0 %v3788
        %v4148 = vpop.f32.mrf.mxu0
        %v4149 = vadd.f32 0.0, %v4148
        %v4150 = vpop.f32.mrf.mxu0
        %v4151 = vadd.f32 0.0, %v4150
        %4152 = vmatmul.bf16.gmra.mxu0 %v3789
        %v4153 = vpop.f32.mrf.mxu0
        %v4154 = vadd.f32 0.0, %v4153
        %v4155 = vpop.f32.mrf.mxu0
        %v4156 = vadd.f32 0.0, %v4155
        %4157 = vmatmul.bf16.gmra.mxu0 %v3790
        %v4158 = vpop.f32.mrf.mxu0
        %v4159 = vadd.f32 0.0, %v4158
        %v4160 = vpop.f32.mrf.mxu0
        %v4161 = vadd.f32 0.0, %v4160
        %4162 = vmatmul.bf16.gmra.mxu0 %v3791
        %v4163 = vpop.f32.mrf.mxu0
        %v4164 = vadd.f32 0.0, %v4163
        %v4165 = vpop.f32.mrf.mxu0
        %v4166 = vadd.f32 0.0, %v4165
        %4167 = vmatmul.bf16.gmra.mxu0 %v3792
        %v4168 = vpop.f32.mrf.mxu0
        %v4169 = vadd.f32 0.0, %v4168
        %v4170 = vpop.f32.mrf.mxu0
        %v4171 = vadd.f32 0.0, %v4170
        %4172 = vmatmul.bf16.gmra.mxu0 %v3793
        %v4173 = vpop.f32.mrf.mxu0
        %v4174 = vadd.f32 0.0, %v4173
        %v4175 = vpop.f32.mrf.mxu0
        %v4176 = vadd.f32 0.0, %v4175
        %4177 = vmatmul.bf16.gmra.mxu0 %v3794
        %v4178 = vpop.f32.mrf.mxu0
        %v4179 = vadd.f32 0.0, %v4178
        %v4180 = vpop.f32.mrf.mxu0
        %v4181 = vadd.f32 0.0, %v4180
        %4182 = vdwg.mxu0
        %v4183 = vld [vmem:[%s8] sm:$0xf]
        %v4185 = vperm.slane %v4183, 0
        %v4186 = vperm.slane %v4183, 1
        %v4187 = vperm.slane %v4183, 2
        %v4188 = vperm.slane %v4183, 3
        %v4193 = vmul.f32 %v3997, %v4185
        %v4194 = vmul.f32 %v4046, %v4186
        %v4195 = vmul.f32 %v4095, %v4187
        %v4196 = vmul.f32 %v4144, %v4188
        %v4197 = vmul.f32 %v3999, %v4185
        %v4198 = vmul.f32 %v4048, %v4186
        %v4199 = vmul.f32 %v4097, %v4187
        %v4200 = vmul.f32 %v4146, %v4188
        %v4201 = vmul.f32 %v4002, %v4185
        %v4202 = vmul.f32 %v4051, %v4186
        %v4203 = vmul.f32 %v4100, %v4187
        %v4204 = vmul.f32 %v4149, %v4188
        %v4205 = vmul.f32 %v4004, %v4185
        %v4206 = vmul.f32 %v4053, %v4186
        %v4207 = vmul.f32 %v4102, %v4187
        %v4208 = vmul.f32 %v4151, %v4188
        %v4209 = vmul.f32 %v4007, %v4185
        %v4210 = vmul.f32 %v4056, %v4186
        %v4211 = vmul.f32 %v4105, %v4187
        %v4212 = vmul.f32 %v4154, %v4188
        %v4213 = vmul.f32 %v4009, %v4185
        %v4214 = vmul.f32 %v4058, %v4186
        %v4215 = vmul.f32 %v4107, %v4187
        %v4216 = vmul.f32 %v4156, %v4188
        %v4217 = vmul.f32 %v4012, %v4185
        %v4218 = vmul.f32 %v4061, %v4186
        %v4219 = vmul.f32 %v4110, %v4187
        %v4220 = vmul.f32 %v4159, %v4188
        %v4221 = vmul.f32 %v4014, %v4185
        %v4222 = vmul.f32 %v4063, %v4186
        %v4223 = vmul.f32 %v4112, %v4187
        %v4224 = vmul.f32 %v4161, %v4188
        %v4225 = vmul.f32 %v4017, %v4185
        %v4226 = vmul.f32 %v4066, %v4186
        %v4227 = vmul.f32 %v4115, %v4187
        %v4228 = vmul.f32 %v4164, %v4188
        %v4229 = vmul.f32 %v4019, %v4185
        %v4230 = vmul.f32 %v4068, %v4186
        %v4231 = vmul.f32 %v4117, %v4187
        %v4232 = vmul.f32 %v4166, %v4188
        %v4233 = vmul.f32 %v4022, %v4185
        %v4234 = vmul.f32 %v4071, %v4186
        %v4235 = vmul.f32 %v4120, %v4187
        %v4236 = vmul.f32 %v4169, %v4188
        %v4237 = vmul.f32 %v4024, %v4185
        %v4238 = vmul.f32 %v4073, %v4186
        %v4239 = vmul.f32 %v4122, %v4187
        %v4240 = vmul.f32 %v4171, %v4188
        %v4241 = vmul.f32 %v4027, %v4185
        %v4242 = vmul.f32 %v4076, %v4186
        %v4243 = vmul.f32 %v4125, %v4187
        %v4244 = vmul.f32 %v4174, %v4188
        %v4245 = vmul.f32 %v4029, %v4185
        %v4246 = vmul.f32 %v4078, %v4186
        %v4247 = vmul.f32 %v4127, %v4187
        %v4248 = vmul.f32 %v4176, %v4188
        %v4249 = vmul.f32 %v4032, %v4185
        %v4250 = vmul.f32 %v4081, %v4186
        %v4251 = vmul.f32 %v4130, %v4187
        %v4252 = vmul.f32 %v4179, %v4188
        %v4253 = vmul.f32 %v4034, %v4185
        %v4254 = vmul.f32 %v4083, %v4186
        %v4255 = vmul.f32 %v4132, %v4187
        %v4256 = vmul.f32 %v4181, %v4188
        %v4257 = vld [vmem:[%s9] sm:$0xf]
        %v4259 = vperm.slane %v4257, 0
        %v4260 = vperm.slane %v4257, 1
        %v4261 = vperm.slane %v4257, 2
        %v4262 = vperm.slane %v4257, 3
        %v4267 = vadd.f32 %v4193, %v4259
        %v4268 = vadd.f32 %v4194, %v4260
        %v4269 = vadd.f32 %v4195, %v4261
        %v4270 = vadd.f32 %v4196, %v4262
        %v4271 = vadd.f32 %v4197, %v4259
        %v4272 = vadd.f32 %v4198, %v4260
        %v4273 = vadd.f32 %v4199, %v4261
        %v4274 = vadd.f32 %v4200, %v4262
        %v4275 = vadd.f32 %v4201, %v4259
        %v4276 = vadd.f32 %v4202, %v4260
        %v4277 = vadd.f32 %v4203, %v4261
        %v4278 = vadd.f32 %v4204, %v4262
        %v4279 = vadd.f32 %v4205, %v4259
        %v4280 = vadd.f32 %v4206, %v4260
        %v4281 = vadd.f32 %v4207, %v4261
        %v4282 = vadd.f32 %v4208, %v4262
        %v4283 = vadd.f32 %v4209, %v4259
        %v4284 = vadd.f32 %v4210, %v4260
        %v4285 = vadd.f32 %v4211, %v4261
        %v4286 = vadd.f32 %v4212, %v4262
        %v4287 = vadd.f32 %v4213, %v4259
        %v4288 = vadd.f32 %v4214, %v4260
        %v4289 = vadd.f32 %v4215, %v4261
        %v4290 = vadd.f32 %v4216, %v4262
        %v4291 = vadd.f32 %v4217, %v4259
        %v4292 = vadd.f32 %v4218, %v4260
        %v4293 = vadd.f32 %v4219, %v4261
        %v4294 = vadd.f32 %v4220, %v4262
        %v4295 = vadd.f32 %v4221, %v4259
        %v4296 = vadd.f32 %v4222, %v4260
        %v4297 = vadd.f32 %v4223, %v4261
        %v4298 = vadd.f32 %v4224, %v4262
        %v4299 = vadd.f32 %v4225, %v4259
        %v4300 = vadd.f32 %v4226, %v4260
        %v4301 = vadd.f32 %v4227, %v4261
        %v4302 = vadd.f32 %v4228, %v4262
        %v4303 = vadd.f32 %v4229, %v4259
        %v4304 = vadd.f32 %v4230, %v4260
        %v4305 = vadd.f32 %v4231, %v4261
        %v4306 = vadd.f32 %v4232, %v4262
        %v4307 = vadd.f32 %v4233, %v4259
        %v4308 = vadd.f32 %v4234, %v4260
        %v4309 = vadd.f32 %v4235, %v4261
        %v4310 = vadd.f32 %v4236, %v4262
        %v4311 = vadd.f32 %v4237, %v4259
        %v4312 = vadd.f32 %v4238, %v4260
        %v4313 = vadd.f32 %v4239, %v4261
        %v4314 = vadd.f32 %v4240, %v4262
        %v4315 = vadd.f32 %v4241, %v4259
        %v4316 = vadd.f32 %v4242, %v4260
        %v4317 = vadd.f32 %v4243, %v4261
        %v4318 = vadd.f32 %v4244, %v4262
        %v4319 = vadd.f32 %v4245, %v4259
        %v4320 = vadd.f32 %v4246, %v4260
        %v4321 = vadd.f32 %v4247, %v4261
        %v4322 = vadd.f32 %v4248, %v4262
        %v4323 = vadd.f32 %v4249, %v4259
        %v4324 = vadd.f32 %v4250, %v4260
        %v4325 = vadd.f32 %v4251, %v4261
        %v4326 = vadd.f32 %v4252, %v4262
        %v4327 = vadd.f32 %v4253, %v4259
        %v4328 = vadd.f32 %v4254, %v4260
        %v4329 = vadd.f32 %v4255, %v4261
        %v4330 = vadd.f32 %v4256, %v4262
        %v4331 = vld [vmem:[%s872] sm:$0xff]
        %v4332 = vld [vmem:[%s872 + $0x8] sm:$0xff]
        %v4333 = vld [vmem:[%s872 + $0x10] sm:$0xff]
        %v4334 = vld [vmem:[%s872 + $0x18] sm:$0xff]
        %v4335 = vld [vmem:[%s872 + $0x20] sm:$0xff]
        %v4336 = vld [vmem:[%s872 + $0x28] sm:$0xff]
        %v4337 = vld [vmem:[%s872 + $0x30] sm:$0xff]
        %v4338 = vld [vmem:[%s872 + $0x38] sm:$0xff]
        %v4339 = vld [vmem:[%s872 + $0x40] sm:$0xff]
        %v4340 = vld [vmem:[%s872 + $0x48] sm:$0xff]
        %v4341 = vld [vmem:[%s872 + $0x50] sm:$0xff]
        %v4342 = vld [vmem:[%s872 + $0x58] sm:$0xff]
        %v4343 = vld [vmem:[%s872 + $0x60] sm:$0xff]
        %v4344 = vld [vmem:[%s872 + $0x68] sm:$0xff]
        %v4345 = vld [vmem:[%s872 + $0x70] sm:$0xff]
        %v4346 = vld [vmem:[%s872 + $0x78] sm:$0xff]
        %v4347 = vld [vmem:[%s872 + $0x80] sm:$0xff]
        %v4348 = vld [vmem:[%s872 + $0x88] sm:$0xff]
        %v4349 = vld [vmem:[%s872 + $0x90] sm:$0xff]
        %v4350 = vld [vmem:[%s872 + $0x98] sm:$0xff]
        %v4351 = vld [vmem:[%s872 + $0xa0] sm:$0xff]
        %v4352 = vld [vmem:[%s872 + $0xa8] sm:$0xff]
        %v4353 = vld [vmem:[%s872 + $0xb0] sm:$0xff]
        %v4354 = vld [vmem:[%s872 + $0xb8] sm:$0xff]
        %v4355 = vld [vmem:[%s872 + $0xc0] sm:$0xff]
        %v4356 = vld [vmem:[%s872 + $0xc8] sm:$0xff]
        %v4357 = vld [vmem:[%s872 + $0xd0] sm:$0xff]
        %v4358 = vld [vmem:[%s872 + $0xd8] sm:$0xff]
        %v4359 = vld [vmem:[%s872 + $0xe0] sm:$0xff]
        %v4360 = vld [vmem:[%s872 + $0xe8] sm:$0xff]
        %v4361 = vld [vmem:[%s872 + $0xf0] sm:$0xff]
        %v4362 = vld [vmem:[%s872 + $0xf8] sm:$0xff]
        %v4363 = vunpack.c.l.bf16 %v4331
        %v4364 = vunpack.c.h.bf16 %v4331
        %v4365 = vunpack.c.l.bf16 %v4332
        %v4366 = vunpack.c.h.bf16 %v4332
        %v4367 = vunpack.c.l.bf16 %v4333
        %v4368 = vunpack.c.h.bf16 %v4333
        %v4369 = vunpack.c.l.bf16 %v4334
        %v4370 = vunpack.c.h.bf16 %v4334
        %v4371 = vunpack.c.l.bf16 %v4335
        %v4372 = vunpack.c.h.bf16 %v4335
        %v4373 = vunpack.c.l.bf16 %v4336
        %v4374 = vunpack.c.h.bf16 %v4336
        %v4375 = vunpack.c.l.bf16 %v4337
        %v4376 = vunpack.c.h.bf16 %v4337
        %v4377 = vunpack.c.l.bf16 %v4338
        %v4378 = vunpack.c.h.bf16 %v4338
        %v4379 = vunpack.c.l.bf16 %v4339
        %v4380 = vunpack.c.h.bf16 %v4339
        %v4381 = vunpack.c.l.bf16 %v4340
        %v4382 = vunpack.c.h.bf16 %v4340
        %v4383 = vunpack.c.l.bf16 %v4341
        %v4384 = vunpack.c.h.bf16 %v4341
        %v4385 = vunpack.c.l.bf16 %v4342
        %v4386 = vunpack.c.h.bf16 %v4342
        %v4387 = vunpack.c.l.bf16 %v4343
        %v4388 = vunpack.c.h.bf16 %v4343
        %v4389 = vunpack.c.l.bf16 %v4344
        %v4390 = vunpack.c.h.bf16 %v4344
        %v4391 = vunpack.c.l.bf16 %v4345
        %v4392 = vunpack.c.h.bf16 %v4345
        %v4393 = vunpack.c.l.bf16 %v4346
        %v4394 = vunpack.c.h.bf16 %v4346
        %v4395 = vunpack.c.l.bf16 %v4347
        %v4396 = vunpack.c.h.bf16 %v4347
        %v4397 = vunpack.c.l.bf16 %v4348
        %v4398 = vunpack.c.h.bf16 %v4348
        %v4399 = vunpack.c.l.bf16 %v4349
        %v4400 = vunpack.c.h.bf16 %v4349
        %v4401 = vunpack.c.l.bf16 %v4350
        %v4402 = vunpack.c.h.bf16 %v4350
        %v4403 = vunpack.c.l.bf16 %v4351
        %v4404 = vunpack.c.h.bf16 %v4351
        %v4405 = vunpack.c.l.bf16 %v4352
        %v4406 = vunpack.c.h.bf16 %v4352
        %v4407 = vunpack.c.l.bf16 %v4353
        %v4408 = vunpack.c.h.bf16 %v4353
        %v4409 = vunpack.c.l.bf16 %v4354
        %v4410 = vunpack.c.h.bf16 %v4354
        %v4411 = vunpack.c.l.bf16 %v4355
        %v4412 = vunpack.c.h.bf16 %v4355
        %v4413 = vunpack.c.l.bf16 %v4356
        %v4414 = vunpack.c.h.bf16 %v4356
        %v4415 = vunpack.c.l.bf16 %v4357
        %v4416 = vunpack.c.h.bf16 %v4357
        %v4417 = vunpack.c.l.bf16 %v4358
        %v4418 = vunpack.c.h.bf16 %v4358
        %v4419 = vunpack.c.l.bf16 %v4359
        %v4420 = vunpack.c.h.bf16 %v4359
        %v4421 = vunpack.c.l.bf16 %v4360
        %v4422 = vunpack.c.h.bf16 %v4360
        %v4423 = vunpack.c.l.bf16 %v4361
        %v4424 = vunpack.c.h.bf16 %v4361
        %v4425 = vunpack.c.l.bf16 %v4362
        %v4426 = vunpack.c.h.bf16 %v4362
        %v4427 = vadd.f32 %v4267, %v4363
        %v4428 = vadd.f32 %v4268, %v4364
        %v4429 = vadd.f32 %v4269, %v4365
        %v4430 = vadd.f32 %v4270, %v4366
        %v4431 = vadd.f32 %v4271, %v4367
        %v4432 = vadd.f32 %v4272, %v4368
        %v4433 = vadd.f32 %v4273, %v4369
        %v4434 = vadd.f32 %v4274, %v4370
        %v4435 = vadd.f32 %v4275, %v4371
        %v4436 = vadd.f32 %v4276, %v4372
        %v4437 = vadd.f32 %v4277, %v4373
        %v4438 = vadd.f32 %v4278, %v4374
        %v4439 = vadd.f32 %v4279, %v4375
        %v4440 = vadd.f32 %v4280, %v4376
        %v4441 = vadd.f32 %v4281, %v4377
        %v4442 = vadd.f32 %v4282, %v4378
        %v4443 = vadd.f32 %v4283, %v4379
        %v4444 = vadd.f32 %v4284, %v4380
        %v4445 = vadd.f32 %v4285, %v4381
        %v4446 = vadd.f32 %v4286, %v4382
        %v4447 = vadd.f32 %v4287, %v4383
        %v4448 = vadd.f32 %v4288, %v4384
        %v4449 = vadd.f32 %v4289, %v4385
        %v4450 = vadd.f32 %v4290, %v4386
        %v4451 = vadd.f32 %v4291, %v4387
        %v4452 = vadd.f32 %v4292, %v4388
        %v4453 = vadd.f32 %v4293, %v4389
        %v4454 = vadd.f32 %v4294, %v4390
        %v4455 = vadd.f32 %v4295, %v4391
        %v4456 = vadd.f32 %v4296, %v4392
        %v4457 = vadd.f32 %v4297, %v4393
        %v4458 = vadd.f32 %v4298, %v4394
        %v4459 = vadd.f32 %v4299, %v4395
        %v4460 = vadd.f32 %v4300, %v4396
        %v4461 = vadd.f32 %v4301, %v4397
        %v4462 = vadd.f32 %v4302, %v4398
        %v4463 = vadd.f32 %v4303, %v4399
        %v4464 = vadd.f32 %v4304, %v4400
        %v4465 = vadd.f32 %v4305, %v4401
        %v4466 = vadd.f32 %v4306, %v4402
        %v4467 = vadd.f32 %v4307, %v4403
        %v4468 = vadd.f32 %v4308, %v4404
        %v4469 = vadd.f32 %v4309, %v4405
        %v4470 = vadd.f32 %v4310, %v4406
        %v4471 = vadd.f32 %v4311, %v4407
        %v4472 = vadd.f32 %v4312, %v4408
        %v4473 = vadd.f32 %v4313, %v4409
        %v4474 = vadd.f32 %v4314, %v4410
        %v4475 = vadd.f32 %v4315, %v4411
        %v4476 = vadd.f32 %v4316, %v4412
        %v4477 = vadd.f32 %v4317, %v4413
        %v4478 = vadd.f32 %v4318, %v4414
        %v4479 = vadd.f32 %v4319, %v4415
        %v4480 = vadd.f32 %v4320, %v4416
        %v4481 = vadd.f32 %v4321, %v4417
        %v4482 = vadd.f32 %v4322, %v4418
        %v4483 = vadd.f32 %v4323, %v4419
        %v4484 = vadd.f32 %v4324, %v4420
        %v4485 = vadd.f32 %v4325, %v4421
        %v4486 = vadd.f32 %v4326, %v4422
        %v4487 = vadd.f32 %v4327, %v4423
        %v4488 = vadd.f32 %v4328, %v4424
        %v4489 = vadd.f32 %v4329, %v4425
        %v4490 = vadd.f32 %v4330, %v4426
        %v4491 = vmax.f32 %v4427, 0.0
        %v4492 = vmax.f32 %v4428, 0.0
        %v4493 = vmax.f32 %v4429, 0.0
        %v4494 = vmax.f32 %v4430, 0.0
        %v4495 = vmax.f32 %v4431, 0.0
        %v4496 = vmax.f32 %v4432, 0.0
        %v4497 = vmax.f32 %v4433, 0.0
        %v4498 = vmax.f32 %v4434, 0.0
        %v4499 = vmax.f32 %v4435, 0.0
        %v4500 = vmax.f32 %v4436, 0.0
        %v4501 = vmax.f32 %v4437, 0.0
        %v4502 = vmax.f32 %v4438, 0.0
        %v4503 = vmax.f32 %v4439, 0.0
        %v4504 = vmax.f32 %v4440, 0.0
        %v4505 = vmax.f32 %v4441, 0.0
        %v4506 = vmax.f32 %v4442, 0.0
        %v4507 = vmax.f32 %v4443, 0.0
        %v4508 = vmax.f32 %v4444, 0.0
        %v4509 = vmax.f32 %v4445, 0.0
        %v4510 = vmax.f32 %v4446, 0.0
        %v4511 = vmax.f32 %v4447, 0.0
        %v4512 = vmax.f32 %v4448, 0.0
        %v4513 = vmax.f32 %v4449, 0.0
        %v4514 = vmax.f32 %v4450, 0.0
        %v4515 = vmax.f32 %v4451, 0.0
        %v4516 = vmax.f32 %v4452, 0.0
        %v4517 = vmax.f32 %v4453, 0.0
        %v4518 = vmax.f32 %v4454, 0.0
        %v4519 = vmax.f32 %v4455, 0.0
        %v4520 = vmax.f32 %v4456, 0.0
        %v4521 = vmax.f32 %v4457, 0.0
        %v4522 = vmax.f32 %v4458, 0.0
        %v4523 = vmax.f32 %v4459, 0.0
        %v4524 = vmax.f32 %v4460, 0.0
        %v4525 = vmax.f32 %v4461, 0.0
        %v4526 = vmax.f32 %v4462, 0.0
        %v4527 = vmax.f32 %v4463, 0.0
        %v4528 = vmax.f32 %v4464, 0.0
        %v4529 = vmax.f32 %v4465, 0.0
        %v4530 = vmax.f32 %v4466, 0.0
        %v4531 = vmax.f32 %v4467, 0.0
        %v4532 = vmax.f32 %v4468, 0.0
        %v4533 = vmax.f32 %v4469, 0.0
        %v4534 = vmax.f32 %v4470, 0.0
        %v4535 = vmax.f32 %v4471, 0.0
        %v4536 = vmax.f32 %v4472, 0.0
        %v4537 = vmax.f32 %v4473, 0.0
        %v4538 = vmax.f32 %v4474, 0.0
        %v4539 = vmax.f32 %v4475, 0.0
        %v4540 = vmax.f32 %v4476, 0.0
        %v4541 = vmax.f32 %v4477, 0.0
        %v4542 = vmax.f32 %v4478, 0.0
        %v4543 = vmax.f32 %v4479, 0.0
        %v4544 = vmax.f32 %v4480, 0.0
        %v4545 = vmax.f32 %v4481, 0.0
        %v4546 = vmax.f32 %v4482, 0.0
        %v4547 = vmax.f32 %v4483, 0.0
        %v4548 = vmax.f32 %v4484, 0.0
        %v4549 = vmax.f32 %v4485, 0.0
        %v4550 = vmax.f32 %v4486, 0.0
        %v4551 = vmax.f32 %v4487, 0.0
        %v4552 = vmax.f32 %v4488, 0.0
        %v4553 = vmax.f32 %v4489, 0.0
        %v4554 = vmax.f32 %v4490, 0.0
        %v4555 = vpack.c.bf16 %v4492, %v4491
        %v4556 = vpack.c.bf16 %v4494, %v4493
        %v4557 = vpack.c.bf16 %v4496, %v4495
        %v4558 = vpack.c.bf16 %v4498, %v4497
        %v4559 = vpack.c.bf16 %v4500, %v4499
        %v4560 = vpack.c.bf16 %v4502, %v4501
        %v4561 = vpack.c.bf16 %v4504, %v4503
        %v4562 = vpack.c.bf16 %v4506, %v4505
        %v4563 = vpack.c.bf16 %v4508, %v4507
        %v4564 = vpack.c.bf16 %v4510, %v4509
        %v4565 = vpack.c.bf16 %v4512, %v4511
        %v4566 = vpack.c.bf16 %v4514, %v4513
        %v4567 = vpack.c.bf16 %v4516, %v4515
        %v4568 = vpack.c.bf16 %v4518, %v4517
        %v4569 = vpack.c.bf16 %v4520, %v4519
        %v4570 = vpack.c.bf16 %v4522, %v4521
        %v4571 = vpack.c.bf16 %v4524, %v4523
        %v4572 = vpack.c.bf16 %v4526, %v4525
        %v4573 = vpack.c.bf16 %v4528, %v4527
        %v4574 = vpack.c.bf16 %v4530, %v4529
        %v4575 = vpack.c.bf16 %v4532, %v4531
        %v4576 = vpack.c.bf16 %v4534, %v4533
        %v4577 = vpack.c.bf16 %v4536, %v4535
        %v4578 = vpack.c.bf16 %v4538, %v4537
        %v4579 = vpack.c.bf16 %v4540, %v4539
        %v4580 = vpack.c.bf16 %v4542, %v4541
        %v4581 = vpack.c.bf16 %v4544, %v4543
        %v4582 = vpack.c.bf16 %v4546, %v4545
        %v4583 = vpack.c.bf16 %v4548, %v4547
        %v4584 = vpack.c.bf16 %v4550, %v4549
        %v4585 = vpack.c.bf16 %v4552, %v4551
        %v4586 = vpack.c.bf16 %v4554, %v4553
        %4587 = vst [vmem:[%s501] sm:$0xff] %v4555
        %4588 = vst [vmem:[%s501 + $0x8] sm:$0xff] %v4556
        %4589 = vst [vmem:[%s501 + $0x10] sm:$0xff] %v4557
        %4590 = vst [vmem:[%s501 + $0x18] sm:$0xff] %v4558
        %4591 = vst [vmem:[%s501 + $0x20] sm:$0xff] %v4559
        %4592 = vst [vmem:[%s501 + $0x28] sm:$0xff] %v4560
        %4593 = vst [vmem:[%s501 + $0x30] sm:$0xff] %v4561
        %4594 = vst [vmem:[%s501 + $0x38] sm:$0xff] %v4562
        %4595 = vst [vmem:[%s501 + $0x40] sm:$0xff] %v4563
        %4596 = vst [vmem:[%s501 + $0x48] sm:$0xff] %v4564
        %4597 = vst [vmem:[%s501 + $0x50] sm:$0xff] %v4565
        %4598 = vst [vmem:[%s501 + $0x58] sm:$0xff] %v4566
        %4599 = vst [vmem:[%s501 + $0x60] sm:$0xff] %v4567
        %4600 = vst [vmem:[%s501 + $0x68] sm:$0xff] %v4568
        %4601 = vst [vmem:[%s501 + $0x70] sm:$0xff] %v4569
        %4602 = vst [vmem:[%s501 + $0x78] sm:$0xff] %v4570
        %4603 = vst [vmem:[%s501 + $0x80] sm:$0xff] %v4571
        %4604 = vst [vmem:[%s501 + $0x88] sm:$0xff] %v4572
        %4605 = vst [vmem:[%s501 + $0x90] sm:$0xff] %v4573
        %4606 = vst [vmem:[%s501 + $0x98] sm:$0xff] %v4574
        %4607 = vst [vmem:[%s501 + $0xa0] sm:$0xff] %v4575
        %4608 = vst [vmem:[%s501 + $0xa8] sm:$0xff] %v4576
        %4609 = vst [vmem:[%s501 + $0xb0] sm:$0xff] %v4577
        %4610 = vst [vmem:[%s501 + $0xb8] sm:$0xff] %v4578
        %4611 = vst [vmem:[%s501 + $0xc0] sm:$0xff] %v4579
        %4612 = vst [vmem:[%s501 + $0xc8] sm:$0xff] %v4580
        %4613 = vst [vmem:[%s501 + $0xd0] sm:$0xff] %v4581
        %4614 = vst [vmem:[%s501 + $0xd8] sm:$0xff] %v4582
        %4615 = vst [vmem:[%s501 + $0xe0] sm:$0xff] %v4583
        %4616 = vst [vmem:[%s501 + $0xe8] sm:$0xff] %v4584
        %4617 = vst [vmem:[%s501 + $0xf0] sm:$0xff] %v4585
        %4618 = vst [vmem:[%s501 + $0xf8] sm:$0xff] %v4586
        %s4619 = sand.u32 %s268, 1
        %s4620 = scalar_lea.sflag [#allocation5], %s4619
        %s4621 = sand.u32 %s268, 1
        %s4622 = smul.addr %s4621, 256
        %s4623 = scalar_lea.vmem [#allocation17], %s4622
        // Predicated region
        $region93: #{tpu_custom_call.1} parent=59 // pred_check
          %p4624 = pneg %p278
        $region94: #{tpu_custom_call.1} parent=59 // pred_check_branch
          %4626 = sbr.rel (%p4624) target = $region96
        $region95: #{tpu_custom_call.1} parent=59 // pred_region
          %s4627 = smul.u32 8, %s36
          %4629 = vsyncadd %s4620, 0
          %s4630 = smul.addr %s4627, 8
          %s4631 = smul.addr %s35, 128
          %s4632 = sadd.s32 %s4630, %s4631
          %s4633 = smul.addr %s4632, 4
          %s4634 = scalar_lea.hbm %s10, %s4633
          %s4635 = sshll.u32 %s4623, 4
          %s4636 = int_to_ptr.vmem [resolvable:$true] %s4635
          %s4637 = sshll.u32 %s4634, 4
          %s4638 = int_to_ptr.hbm [resolvable:$true] %s4637
          %4643 = dma.vmem_to_hbm [thread:$0]  %s4636, 4096, %s4638, %s4620, 256, 256, 16
        $region96: #{tpu_custom_call.1} parent=59 // pred_fallthru
          _
      $region60: #{tpu_custom_call.1} parent=5 // pred_fallthru
        _
      %p4644 = scmp.le.s32.totalorder 2, %s26
      // Predicated region
      $region97: #{tpu_custom_call.1} parent=5 // pred_check
        %p4645 = pneg %p4644
      $region98: #{tpu_custom_call.1} parent=5 // pred_check_branch
        %4647 = sbr.rel (%p4645) target = $region100
      $region99: #{tpu_custom_call.1} parent=5 // pred_region
        %s4648 = ssub.s32 %s26, 2
        // Predicated region
        $region101: #{tpu_custom_call.1} parent=99 // pred_check
          %p4649 = pneg %p284
        $region102: #{tpu_custom_call.1} parent=99 // pred_check_branch
          %4651 = sbr.rel (%p4649) target = $region104
        $region103: #{tpu_custom_call.1} parent=99 // pred_region
          %s4652 = sand.u32 %s269, 1
          %s4653 = scalar_lea.sflag [#allocation5], %s4652
          %s4654 = sand.u32 %s269, 1
          %s4655 = smul.addr %s4654, 256
          %s4656 = scalar_lea.vmem [#allocation17], %s4655
          %4658 = dma.done %s4653, 4096
        $region104: #{tpu_custom_call.1} parent=99 // pred_fallthru
          _
      $region100: #{tpu_custom_call.1} parent=5 // pred_fallthru
        _
    $region6: #{tpu_custom_call.1} parent=1 // loop_footer
      %s30 = sadd.s32 1, %s26
    $region7: #{tpu_custom_call.1} parent=1 // loop_footer_branch
      %25 = sbr.rel target = $region3
    $region8: #{tpu_custom_call.1} parent=1 // loop_exit
      _
    %4659 = vsyncpa [#allocation4], 1
    %s4660 = scalar_lea.sflag [#allocation4], 1
    %4661 = vsyncpa %s4660, 1
    %4662 = vsyncpa [#allocation7], 1
    %4663 = vsyncpa [#allocation10], 1
    %4664 = vsyncpa [#allocation13], 1
    %4665 = vsyncpa [#allocation16], 1
    %4666 = vsyncpa [#allocation5], 1
    %s4667 = scalar_lea.sflag [#allocation5], 1
    %4668 = vsyncpa %s4667, 1

</llo_original>
